<compile_context>
chip_gen: v7x
topology: tpu7x:2x2x1
jax: 0.10.0
libtpu: 0.0.40
codegen_flags: <defaults>
</compile_context>

<pallas_src>
import jax
import jax.numpy as jnp
from jax.experimental import pallas as pl
from jax.experimental.pallas import tpu as pltpu

EPS = 1e-5
_LANE = 128
_SUBLANE = 8
_ROW_TILE_TARGET = 512            # <=512 rows x Cin f32, double-buffered, fits v7x VMEM
_VMEM_LIMIT_BYTES = 32 * 1024 * 1024


def _round_up(x, m):
    return (x + m - 1) // m * m


def _phase1_kernel(x_ref, s_ref, w_ref, y_ref, stat_ref):
    # x_ref: (1, TM, Cin) f32, s_ref: (1, 1, Cin) f32, w_ref: (Cin, Cout_pad) bf16
    xs = x_ref[0] * s_ref[0]                              # (TM, Cin) f32, VPU; scale broadcast over rows
    y = jnp.dot(xs.astype(jnp.bfloat16), w_ref[...],
                preferred_element_type=jnp.float32)       # MXU bf16 x bf16 -> f32
    y_ref[0] = y                                          # (TM, Cout_pad) lane-dense store
    ssum = jnp.sum(y, axis=0, keepdims=True)              # (1, Cout_pad)
    ssq = jnp.sum(y * y, axis=0, keepdims=True)           # (1, Cout_pad)
    stat_ref[0, 0] = jnp.concatenate([ssum, ssq], axis=0)  # (2, Cout_pad) per-tile partials


def _make_phase2_kernel(inv_count):
    # inv_count = 1 / (N*H*W)  -- static, baked in (padded rows contribute 0).
    def kernel(stat_ref, g_ref, b_ref, y_ref, o_ref):
        mean = stat_ref[0:1, :] * inv_count               # (1, Cout_pad)
        ex2 = stat_ref[1:2, :] * inv_count
        var = jnp.maximum(ex2 - mean * mean, 0.0)         # biased var (BN training fwd)
        inv = jax.lax.rsqrt(var + EPS)                    # EUP, once per channel
        a = g_ref[...] * inv                              # fold gamma into scale
        b = b_ref[...] - mean * a                         # fold beta/mean into bias
        o_ref[0] = y_ref[0] * a + b                       # (TM, Cout_pad) VPU affine
    return kernel


@jax.jit
def fused_mul_conv1x1_bn(x_nchw, scale_nc11, w_oi11, gamma, beta):
    """x_nchw: (N, Cin, H, W); scale_nc11: (N, Cin, 1, 1);
    w_oi11: (Cout, Cin, 1, 1); gamma/beta: (Cout,).  Returns (N, Cout, H, W)."""
    N, Cin, H, W = x_nchw.shape
    Cout = w_oi11.shape[0]
    HW = H * W
    NHW = N * HW

    # ---- static tiling choices ----
    Cout_pad = _round_up(Cout, _LANE)                     # lane-dense output (344 -> 384)
    if _round_up(HW, _SUBLANE) <= _ROW_TILE_TARGET:
        TM = _round_up(HW, _SUBLANE)                      # one tile covers one image
    else:
        TM = _ROW_TILE_TARGET
    HW_pad = _round_up(HW, TM)
    T = HW_pad // TM

    # ---- layout plumbing only (no broadcast materialization) ----
    x3d = jnp.transpose(x_nchw, (0, 2, 3, 1)).reshape(N, HW, Cin).astype(jnp.float32)
    x3d = jnp.pad(x3d, ((0, 0), (0, HW_pad - HW), (0, 0)))
    s3d = scale_nc11.reshape(N, 1, Cin).astype(jnp.float32)          # tiny (N, 1, Cin)
    w2d = jnp.pad(w_oi11.reshape(Cout, Cin).T.astype(jnp.float32),
                  ((0, 0), (0, Cout_pad - Cout))).astype(jnp.bfloat16)
    g2d = jnp.pad(gamma.astype(jnp.float32), (0, Cout_pad - Cout)).reshape(1, Cout_pad)
    b2d = jnp.pad(beta.astype(jnp.float32), (0, Cout_pad - Cout)).reshape(1, Cout_pad)

    cparams = pltpu.CompilerParams(
        dimension_semantics=("parallel", "parallel"),
        vmem_limit_bytes=_VMEM_LIMIT_BYTES,
    )

    # ---- phase 1: (x*s) @ W + per-tile channel sum / sumsq ----
    y_pad, part = pl.pallas_call(
        _phase1_kernel,
        out_shape=(
            jax.ShapeDtypeStruct((N, HW_pad, Cout_pad), jnp.float32),
            jax.ShapeDtypeStruct((N, T, 2, Cout_pad), jnp.float32),
        ),
        grid=(N, T),
        in_specs=[
            pl.BlockSpec((1, TM, Cin), lambda n, t: (n, t, 0)),
            pl.BlockSpec((1, 1, Cin), lambda n, t: (n, 0, 0)),
            pl.BlockSpec((Cin, Cout_pad), lambda n, t: (0, 0)),      # resident weight
        ],
        out_specs=(
            pl.BlockSpec((1, TM, Cout_pad), lambda n, t: (n, t, 0)),
            pl.BlockSpec((1, 1, 2, Cout_pad), lambda n, t: (n, t, 0, 0)),
        ),
        compiler_params=cparams,
    )(x3d, s3d, w2d)

    # tiny reduction of per-tile partials -> global per-channel sum / sumsq
    stat_tot = jnp.sum(part, axis=(0, 1))                 # (2, Cout_pad)

    # ---- phase 2: normalize y tiles in place ----
    out_pad = pl.pallas_call(
        _make_phase2_kernel(1.0 / float(NHW)),
        out_shape=jax.ShapeDtypeStruct((N, HW_pad, Cout_pad), jnp.float32),
        grid=(N, T),
        in_specs=[
            pl.BlockSpec((2, Cout_pad), lambda n, t: (0, 0)),
            pl.BlockSpec((1, Cout_pad), lambda n, t: (0, 0)),
            pl.BlockSpec((1, Cout_pad), lambda n, t: (0, 0)),
            pl.BlockSpec((1, TM, Cout_pad), lambda n, t: (n, t, 0)),
        ],
        out_specs=pl.BlockSpec((1, TM, Cout_pad), lambda n, t: (n, t, 0)),
        input_output_aliases={3: 0},                      # normalize y in place
        compiler_params=cparams,
    )(stat_tot, g2d, b2d, y_pad)

    # strip padding, back to NCHW
    out = out_pad[:, :HW, :Cout].reshape(N, H, W, Cout)
    return jnp.transpose(out, (0, 3, 1, 2))


def _reference(x_nchw, scale_nc11, w_oi11, gamma, beta, matmul_dtype=jnp.float32):
    """Plain-JAX reference (independent code path).  matmul_dtype lets us
    emulate the kernel's bf16 MXU operands for a tight correctness check."""
    xs = x_nchw * scale_nc11
    w2 = w_oi11.reshape(w_oi11.shape[0], -1)
    y = jnp.einsum("nchw,oc->nohw", xs.astype(matmul_dtype), w2.astype(matmul_dtype),
                   preferred_element_type=jnp.float32)
    mean = jnp.mean(y, axis=(0, 2, 3), keepdims=True)
    var = jnp.mean((y - mean) ** 2, axis=(0, 2, 3), keepdims=True)
    yhat = (y - mean) * jax.lax.rsqrt(var + EPS)
    return yhat * gamma.reshape(1, -1, 1, 1) + beta.reshape(1, -1, 1, 1)


if __name__ == "__main__":
    # First config = the module's real shapes (x552: (1,2064,7,7), x557: (1,2064,1,1),
    # Conv2d 2064->344 1x1, BN(344)); second is a small config exercising N>1
    # scale broadcast and channel padding (136 -> 256 lanes).
    configs = [(1, 2064, 344, 7, 7), (2, 256, 136, 7, 7)]
    key = jax.random.PRNGKey(0)
    for (N, Cin, Cout, H, W) in configs:
        key, k1, k2, k3, k4, k5 = jax.random.split(key, 6)
        x552 = jax.random.normal(k1, (N, Cin, H, W), dtype=jnp.float32)
        x557 = jax.random.normal(k2, (N, Cin, 1, 1), dtype=jnp.float32)
        conv_w = jax.random.normal(k3, (Cout, Cin, 1, 1), dtype=jnp.float32) * 0.05
        gamma = 1.0 + 0.1 * jax.random.normal(k4, (Cout,), dtype=jnp.float32)
        beta = 0.1 * jax.random.normal(k5, (Cout,), dtype=jnp.float32)

        out = jax.block_until_ready(
            fused_mul_conv1x1_bn(x552, x557, conv_w, gamma, beta))
        assert out.shape == (N, Cout, H, W)

        # Tight check vs a reference that rounds the matmul operands to bf16
        # exactly like the kernel (validates fusion / tiling / padding / stats).
        ref_bf16 = _reference(x552, x557, conv_w, gamma, beta, jnp.bfloat16)
        assert jnp.allclose(out, ref_bf16, atol=5e-3, rtol=5e-3), \
            "mismatch vs bf16-matmul reference"

        # Loose check vs a pure-f32 reference (only bf16 operand rounding differs).
        ref_f32 = _reference(x552, x557, conv_w, gamma, beta, jnp.float32)
        assert jnp.allclose(out, ref_f32, atol=3e-2, rtol=3e-2), \
            "mismatch vs f32 reference"

    print("KERNEL_OK")
</pallas_src>

<mosaic_0001>
module attributes {stable_mosaic.version = 11 : i64} {
  func.func @kernel(%arg0: i32, %arg1: i32, %arg2: memref<2x384xf32, #tpu.memory_space<vmem>>, %arg3: memref<1x384xf32, #tpu.memory_space<vmem>>, %arg4: memref<1x384xf32, #tpu.memory_space<vmem>>, %arg5: memref<1x56x384xf32, #tpu.memory_space<vmem>>, %arg6: memref<1x56x384xf32, #tpu.memory_space<vmem>>) attributes {dimension_semantics = [#tpu.dimension_semantics<parallel>, #tpu.dimension_semantics<parallel>], iteration_bounds = array<i64: 1, 1>, scalar_prefetch = 0 : i64, scratch_operands = 0 : i64, tpu.core_type = #tpu.core_type<tc>, window_params = [{pipeline_mode = #tpu.pipeline_mode<synchronous>, transform_indices = @transform_0, window_bounds = array<i64: 2, 384>}, {pipeline_mode = #tpu.pipeline_mode<synchronous>, transform_indices = @transform_1, window_bounds = array<i64: 1, 384>}, {pipeline_mode = #tpu.pipeline_mode<synchronous>, transform_indices = @transform_2, window_bounds = array<i64: 1, 384>}, {transform_indices = @transform_3, window_bounds = array<i64: 1, 56, 384>}, {transform_indices = @transform_4, window_bounds = array<i64: 1, 56, 384>}]} {
    %c0 = arith.constant 0 : index
    %c0_0 = arith.constant 0 : index
    %0 = vector.load %arg2[%c0, %c0_0] : memref<2x384xf32, #tpu.memory_space<vmem>>, vector<1x384xf32>
    %cst = arith.constant 0.0204081628 : f32
    %1 = vector.broadcast %cst : f32 to vector<1x384xf32>
    %2 = arith.mulf %0, %1 : vector<1x384xf32>
    %c1 = arith.constant 1 : index
    %c0_1 = arith.constant 0 : index
    %3 = vector.load %arg2[%c1, %c0_1] : memref<2x384xf32, #tpu.memory_space<vmem>>, vector<1x384xf32>
    %cst_2 = arith.constant 0.0204081628 : f32
    %4 = vector.broadcast %cst_2 : f32 to vector<1x384xf32>
    %5 = arith.mulf %3, %4 : vector<1x384xf32>
    %6 = arith.mulf %2, %2 : vector<1x384xf32>
    %7 = arith.subf %5, %6 : vector<1x384xf32>
    %cst_3 = arith.constant 0.000000e+00 : f32
    %8 = vector.broadcast %cst_3 : f32 to vector<1x384xf32>
    %9 = arith.maximumf %7, %8 : vector<1x384xf32>
    %cst_4 = arith.constant 9.99999974E-6 : f32
    %10 = vector.broadcast %cst_4 : f32 to vector<1x384xf32>
    %11 = arith.addf %9, %10 : vector<1x384xf32>
    %12 = math.rsqrt %11 : vector<1x384xf32>
    %c0_5 = arith.constant 0 : index
    %c0_6 = arith.constant 0 : index
    %13 = vector.load %arg3[%c0_5, %c0_6] : memref<1x384xf32, #tpu.memory_space<vmem>>, vector<1x384xf32>
    %14 = arith.mulf %13, %12 : vector<1x384xf32>
    %c0_7 = arith.constant 0 : index
    %c0_8 = arith.constant 0 : index
    %15 = vector.load %arg4[%c0_7, %c0_8] : memref<1x384xf32, #tpu.memory_space<vmem>>, vector<1x384xf32>
    %16 = arith.mulf %2, %14 : vector<1x384xf32>
    %17 = arith.subf %15, %16 : vector<1x384xf32>
    %c0_9 = arith.constant 0 : index
    %c0_10 = arith.constant 0 : index
    %c0_11 = arith.constant 0 : index
    %18 = vector.load %arg5[%c0_9, %c0_10, %c0_11] : memref<1x56x384xf32, #tpu.memory_space<vmem>>, vector<1x56x384xf32>
    %19 = vector.shape_cast %18 : vector<1x56x384xf32> to vector<56x384xf32>
    %20 = vector.broadcast %14 : vector<1x384xf32> to vector<56x384xf32>
    %21 = arith.mulf %19, %20 : vector<56x384xf32>
    %22 = vector.broadcast %17 : vector<1x384xf32> to vector<56x384xf32>
    %23 = arith.addf %21, %22 : vector<56x384xf32>
    %c0_12 = arith.constant 0 : index
    %c0_13 = arith.constant 0 : index
    %c0_14 = arith.constant 0 : index
    %24 = vector.load %arg6[%c0_12, %c0_13, %c0_14] : memref<1x56x384xf32, #tpu.memory_space<vmem>>, vector<1x56x384xf32>
    %25 = vector.shape_cast %24 : vector<1x56x384xf32> to vector<56x384xf32>
    %26 = vector.shape_cast %23 : vector<56x384xf32> to vector<1x56x384xf32>
    tpu.vector_store %arg6[%c0_12, %c0_13, %c0_14], %26 {strides = array<i32>} : memref<1x56x384xf32, #tpu.memory_space<vmem>>, vector<1x56x384xf32>,
    return
  }
  func.func @transform_0(%arg0: i32, %arg1: i32) -> (i32, i32) {
    %c0_i32 = arith.constant 0 : i32
    %c0_i32_0 = arith.constant 0 : i32
    %c0_i32_1 = arith.constant 0 : i32
    return %c0_i32, %c0_i32_0 : i32, i32
  }
  func.func @transform_1(%arg0: i32, %arg1: i32) -> (i32, i32) {
    %c0_i32 = arith.constant 0 : i32
    %c0_i32_0 = arith.constant 0 : i32
    %c0_i32_1 = arith.constant 0 : i32
    return %c0_i32, %c0_i32_0 : i32, i32
  }
  func.func @transform_2(%arg0: i32, %arg1: i32) -> (i32, i32) {
    %c0_i32 = arith.constant 0 : i32
    %c0_i32_0 = arith.constant 0 : i32
    %c0_i32_1 = arith.constant 0 : i32
    return %c0_i32, %c0_i32_0 : i32, i32
  }
  func.func @transform_3(%arg0: i32, %arg1: i32) -> (i32, i32, i32) {
    %c0_i32 = arith.constant 0 : i32
    %c0_i32_0 = arith.constant 0 : i32
    return %arg0, %arg1, %c0_i32 : i32, i32, i32
  }
  func.func @transform_4(%arg0: i32, %arg1: i32) -> (i32, i32, i32) {
    %c0_i32 = arith.constant 0 : i32
    %c0_i32_0 = arith.constant 0 : i32
    return %arg0, %arg1, %c0_i32 : i32, i32, i32
  }
}

module attributes {stable_mosaic.version = 11 : i64} {
  func.func @_phase1_kernel(%arg0: i32, %arg1: i32, %arg2: memref<1x56x2064xf32, #tpu.memory_space<vmem>>, %arg3: memref<1x1x2064xf32, #tpu.memory_space<vmem>>, %arg4: memref<2064x384xbf16, #tpu.memory_space<vmem>>, %arg5: memref<1x56x384xf32, #tpu.memory_space<vmem>>, %arg6: memref<1x1x2x384xf32, #tpu.memory_space<vmem>>) attributes {dimension_semantics = [#tpu.dimension_semantics<parallel>, #tpu.dimension_semantics<parallel>], iteration_bounds = array<i64: 1, 1>, scalar_prefetch = 0 : i64, scratch_operands = 0 : i64, tpu.core_type = #tpu.core_type<tc>, window_params = [{transform_indices = @transform_0, window_bounds = array<i64: 1, 56, 2064>}, {transform_indices = @transform_1, window_bounds = array<i64: 1, 1, 2064>}, {pipeline_mode = #tpu.pipeline_mode<synchronous>, transform_indices = @transform_2, window_bounds = array<i64: 2064, 384>}, {transform_indices = @transform_3, window_bounds = array<i64: 1, 56, 384>}, {transform_indices = @transform_4, window_bounds = array<i64: 1, 1, 2, 384>}]} {
    %c0 = arith.constant 0 : index
    %c0_0 = arith.constant 0 : index
    %c0_1 = arith.constant 0 : index
    %0 = vector.load %arg2[%c0, %c0_0, %c0_1] : memref<1x56x2064xf32, #tpu.memory_space<vmem>>, vector<1x56x2064xf32>
    %1 = vector.shape_cast %0 : vector<1x56x2064xf32> to vector<56x2064xf32>
    %c0_2 = arith.constant 0 : index
    %c0_3 = arith.constant 0 : index
    %c0_4 = arith.constant 0 : index
    %2 = vector.load %arg3[%c0_2, %c0_3, %c0_4] : memref<1x1x2064xf32, #tpu.memory_space<vmem>>, vector<1x1x2064xf32>
    %3 = vector.shape_cast %2 : vector<1x1x2064xf32> to vector<1x2064xf32>
    %4 = vector.broadcast %3 : vector<1x2064xf32> to vector<56x2064xf32>
    %5 = arith.mulf %1, %4 : vector<56x2064xf32>
    %6 = arith.truncf %5 : vector<56x2064xf32> to vector<56x2064xbf16>
    %c0_5 = arith.constant 0 : index
    %c0_6 = arith.constant 0 : index
    %7 = vector.load %arg4[%c0_5, %c0_6] : memref<2064x384xbf16, #tpu.memory_space<vmem>>, vector<2064x384xbf16>
    %cst = arith.constant dense<0.000000e+00> : vector<56x384xf32>
    %8 = tpu.matmul %6, %7, %cst {dimension_numbers = #tpu.dot_dimension_numbers<[1], [0], [0], [1], [0, 0, 1, 1], [], []>} : vector<56x2064xbf16>, vector<2064x384xbf16>, vector<56x384xf32> -> vector<56x384xf32>
    %c0_7 = arith.constant 0 : index
    %c0_8 = arith.constant 0 : index
    %c0_9 = arith.constant 0 : index
    %9 = vector.load %arg5[%c0_7, %c0_8, %c0_9] : memref<1x56x384xf32, #tpu.memory_space<vmem>>, vector<1x56x384xf32>
    %10 = vector.shape_cast %9 : vector<1x56x384xf32> to vector<56x384xf32>
    %11 = vector.shape_cast %8 : vector<56x384xf32> to vector<1x56x384xf32>
    tpu.vector_store %arg5[%c0_7, %c0_8, %c0_9], %11 {strides = array<i32>} : memref<1x56x384xf32, #tpu.memory_space<vmem>>, vector<1x56x384xf32>,
    %cst_10 = arith.constant dense<0.000000e+00> : vector<384xf32>
    %12 = vector.multi_reduction <add>, %8, %cst_10 [0] : vector<56x384xf32> to vector<384xf32>
    %13 = vector.shape_cast %12 : vector<384xf32> to vector<1x384xf32>
    %14 = arith.mulf %8, %8 : vector<56x384xf32>
    %cst_11 = arith.constant dense<0.000000e+00> : vector<384xf32>
    %15 = vector.multi_reduction <add>, %14, %cst_11 [0] : vector<56x384xf32> to vector<384xf32>
    %16 = vector.shape_cast %15 : vector<384xf32> to vector<1x384xf32>
    %17 = tpu.concatenate %13, %16 in 0 : vector<1x384xf32>, vector<1x384xf32> -> vector<2x384xf32>
    %c0_12 = arith.constant 0 : index
    %c0_13 = arith.constant 0 : index
    %c0_14 = arith.constant 0 : index
    %c0_15 = arith.constant 0 : index
    %18 = vector.load %arg6[%c0_12, %c0_13, %c0_14, %c0_15] : memref<1x1x2x384xf32, #tpu.memory_space<vmem>>, vector<1x1x2x384xf32>
    %19 = vector.shape_cast %18 : vector<1x1x2x384xf32> to vector<2x384xf32>
    %20 = vector.shape_cast %17 : vector<2x384xf32> to vector<1x1x2x384xf32>
    tpu.vector_store %arg6[%c0_12, %c0_13, %c0_14, %c0_15], %20 {strides = array<i32>} : memref<1x1x2x384xf32, #tpu.memory_space<vmem>>, vector<1x1x2x384xf32>,
    return
  }
  func.func @transform_0(%arg0: i32, %arg1: i32) -> (i32, i32, i32) {
    %c0_i32 = arith.constant 0 : i32
    %c0_i32_0 = arith.constant 0 : i32
    return %arg0, %arg1, %c0_i32 : i32, i32, i32
  }
  func.func @transform_1(%arg0: i32, %arg1: i32) -> (i32, i32, i32) {
    %c0_i32 = arith.constant 0 : i32
    %c0_i32_0 = arith.constant 0 : i32
    %c0_i32_1 = arith.constant 0 : i32
    return %arg0, %c0_i32, %c0_i32_0 : i32, i32, i32
  }
  func.func @transform_2(%arg0: i32, %arg1: i32) -> (i32, i32) {
    %c0_i32 = arith.constant 0 : i32
    %c0_i32_0 = arith.constant 0 : i32
    %c0_i32_1 = arith.constant 0 : i32
    return %c0_i32, %c0_i32_0 : i32, i32
  }
  func.func @transform_3(%arg0: i32, %arg1: i32) -> (i32, i32, i32) {
    %c0_i32 = arith.constant 0 : i32
    %c0_i32_0 = arith.constant 0 : i32
    return %arg0, %arg1, %c0_i32 : i32, i32, i32
  }
  func.func @transform_4(%arg0: i32, %arg1: i32) -> (i32, i32, i32, i32) {
    %c0_i32 = arith.constant 0 : i32
    %c0_i32_0 = arith.constant 0 : i32
    %c0_i32_1 = arith.constant 0 : i32
    return %arg0, %arg1, %c0_i32, %c0_i32_0 : i32, i32, i32, i32
  }
}

</mosaic_0001>

<llo_original>
// kernel: fused_mul_conv1x1_bn.3
$region0: #{fused_mul_conv1x1_bn.3}
  #allocation0 [shape = 'u32[]', space=smem, size = 0x4, offset = 0x4, fixed_abs, tag = 'smem constant byte address 0x4 - core index']
  #allocation1 [shape = 'u32[144,128]{1,0:T(1,128)}', space=vmem, size = 0x12000, scoped, tag = 'internal scratch']
  %s0 = inlined_call_operand.vmem [shape: f32[2,384], index: 0, kind: input, shape index: {}]
  %s1 = inlined_call_operand.vmem [shape: f32[1,384], index: 1, kind: input, shape index: {}]
  %s2 = inlined_call_operand.vmem [shape: f32[1,384], index: 2, kind: input, shape index: {}]
  %s3 = inlined_call_operand.vmem [shape: f32[1,56,384], index: 3, kind: input, shape index: {}, may-alias: {3,4}]
  %s4 = inlined_call_operand.vmem [shape: f32[1,56,384], index: 4, kind: output, shape index: {}, may-alias: {3,4}]
  %s5 = sld [smem:[#allocation0]]
  $region26: #{fused_mul_conv1x1_bn.3} parent=0
    _
  %s7 = ssub.s32 1, %s5
  %s8 = scalar_select 0, %s7, %s5
  // Predicated region
  $region2: #{fused_mul_conv1x1_bn.3} parent=0 // pred_check
    _
  $region3: #{fused_mul_conv1x1_bn.3} parent=0 // pred_check_branch
    %10 = sbr.rel (0) target = $region5
  $region4: #{fused_mul_conv1x1_bn.3} parent=0 // pred_region
    _
  $region5: #{fused_mul_conv1x1_bn.3} parent=0 // pred_fallthru
    _
  // Predicated region
  $region6: #{fused_mul_conv1x1_bn.3} parent=0 // pred_check
    _
  $region7: #{fused_mul_conv1x1_bn.3} parent=0 // pred_check_branch
    %12 = sbr.rel (0) target = $region9
  $region8: #{fused_mul_conv1x1_bn.3} parent=0 // pred_region
    _
  $region9: #{fused_mul_conv1x1_bn.3} parent=0 // pred_fallthru
    _
  // Predicated region
  $region10: #{fused_mul_conv1x1_bn.3} parent=0 // pred_check
    _
  $region11: #{fused_mul_conv1x1_bn.3} parent=0 // pred_check_branch
    %14 = sbr.rel (0) target = $region13
  $region12: #{fused_mul_conv1x1_bn.3} parent=0 // pred_region
    _
  $region13: #{fused_mul_conv1x1_bn.3} parent=0 // pred_fallthru
    _
  // Predicated region
  $region14: #{fused_mul_conv1x1_bn.3} parent=0 // pred_check
    _
  $region15: #{fused_mul_conv1x1_bn.3} parent=0 // pred_check_branch
    %16 = sbr.rel (0) target = $region17
  $region16: #{fused_mul_conv1x1_bn.3} parent=0 // pred_region
    _
  $region17: #{fused_mul_conv1x1_bn.3} parent=0 // pred_fallthru
    _
  %v17 = vld [vmem:[%s0] ss:$2 sm:$0x7]
  %v18 = vmul.f32 %v17, 0.020408163
  %s19 = scalar_lea.vmem %s0, 1
  %v20 = vld [vmem:[%s19] ss:$2 sm:$0x7]
  %v21 = vmul.f32 %v20, 0.020408163
  %v22 = vmul.f32 %v18, %v18
  %v23 = vsub.f32 %v21, %v22
  %v24 = vmax.f32 %v23, 0.0
  %v25 = vadd.f32 %v24, 1e-05
  %v26 = vrsqrt.pop %v25
  %v27 = vld [vmem:[%s1] sm:$0x7]
  %v28 = vmul.f32 %v27, %v26
  %v29 = vld [vmem:[%s2] sm:$0x7]
  %v30 = vmul.f32 %v18, %v28
  %v31 = vsub.f32 %v29, %v30
  %v32 = vld [vmem:[%s3] sm:$0xff]
  %v33 = vld [vmem:[%s3 + $0x8] sm:$0xff]
  %v34 = vld [vmem:[%s3 + $0x10] sm:$0xff]
  %v35 = vld [vmem:[%s3 + $0x18] sm:$0xff]
  %v36 = vld [vmem:[%s3 + $0x20] sm:$0xff]
  %v37 = vld [vmem:[%s3 + $0x28] sm:$0xff]
  %v38 = vld [vmem:[%s3 + $0x30] sm:$0xff]
  %v39 = vld [vmem:[%s3 + $0x38] sm:$0xff]
  %v40 = vld [vmem:[%s3 + $0x40] sm:$0xff]
  %v41 = vld [vmem:[%s3 + $0x48] sm:$0xff]
  %v42 = vld [vmem:[%s3 + $0x50] sm:$0xff]
  %v43 = vld [vmem:[%s3 + $0x58] sm:$0xff]
  %v44 = vld [vmem:[%s3 + $0x60] sm:$0xff]
  %v45 = vld [vmem:[%s3 + $0x68] sm:$0xff]
  %v46 = vld [vmem:[%s3 + $0x70] sm:$0xff]
  %v47 = vld [vmem:[%s3 + $0x78] sm:$0xff]
  %v48 = vld [vmem:[%s3 + $0x80] sm:$0xff]
  %v49 = vld [vmem:[%s3 + $0x88] sm:$0xff]
  %v50 = vld [vmem:[%s3 + $0x90] sm:$0xff]
  %v51 = vld [vmem:[%s3 + $0x98] sm:$0xff]
  %v52 = vld [vmem:[%s3 + $0xa0] sm:$0xff]
  %v54 = vlaneseq
  %v55 = vshrl.u32 %v54, 7
  %v56 = vsub.s32 0, %v55
  %v57 = vrot.slane %v28, %v56
  %v58 = vlaneseq
  %v59 = vshrl.u32 %v58, 7
  %v60 = vsub.s32 1, %v59
  %v61 = vrot.slane %v28, %v60
  %v62 = vlaneseq
  %v63 = vshrl.u32 %v62, 7
  %v64 = vsub.s32 2, %v63
  %v65 = vrot.slane %v28, %v64
  %v69 = vmul.f32 %v32, %v57
  %v70 = vmul.f32 %v33, %v61
  %v71 = vmul.f32 %v34, %v65
  %v72 = vmul.f32 %v35, %v57
  %v73 = vmul.f32 %v36, %v61
  %v74 = vmul.f32 %v37, %v65
  %v75 = vmul.f32 %v38, %v57
  %v76 = vmul.f32 %v39, %v61
  %v77 = vmul.f32 %v40, %v65
  %v78 = vmul.f32 %v41, %v57
  %v79 = vmul.f32 %v42, %v61
  %v80 = vmul.f32 %v43, %v65
  %v81 = vmul.f32 %v44, %v57
  %v82 = vmul.f32 %v45, %v61
  %v83 = vmul.f32 %v46, %v65
  %v84 = vmul.f32 %v47, %v57
  %v85 = vmul.f32 %v48, %v61
  %v86 = vmul.f32 %v49, %v65
  %v87 = vmul.f32 %v50, %v57
  %v88 = vmul.f32 %v51, %v61
  %v89 = vmul.f32 %v52, %v65
  %v91 = vlaneseq
  %v92 = vshrl.u32 %v91, 7
  %v93 = vsub.s32 0, %v92
  %v94 = vrot.slane %v31, %v93
  %v95 = vlaneseq
  %v96 = vshrl.u32 %v95, 7
  %v97 = vsub.s32 1, %v96
  %v98 = vrot.slane %v31, %v97
  %v99 = vlaneseq
  %v100 = vshrl.u32 %v99, 7
  %v101 = vsub.s32 2, %v100
  %v102 = vrot.slane %v31, %v101
  %v106 = vadd.f32 %v69, %v94
  %v107 = vadd.f32 %v70, %v98
  %v108 = vadd.f32 %v71, %v102
  %v109 = vadd.f32 %v72, %v94
  %v110 = vadd.f32 %v73, %v98
  %v111 = vadd.f32 %v74, %v102
  %v112 = vadd.f32 %v75, %v94
  %v113 = vadd.f32 %v76, %v98
  %v114 = vadd.f32 %v77, %v102
  %v115 = vadd.f32 %v78, %v94
  %v116 = vadd.f32 %v79, %v98
  %v117 = vadd.f32 %v80, %v102
  %v118 = vadd.f32 %v81, %v94
  %v119 = vadd.f32 %v82, %v98
  %v120 = vadd.f32 %v83, %v102
  %v121 = vadd.f32 %v84, %v94
  %v122 = vadd.f32 %v85, %v98
  %v123 = vadd.f32 %v86, %v102
  %v124 = vadd.f32 %v87, %v94
  %v125 = vadd.f32 %v88, %v98
  %v126 = vadd.f32 %v89, %v102
  %127 = vst [vmem:[%s4] sm:$0xff] %v106
  %128 = vst [vmem:[%s4 + $0x8] sm:$0xff] %v107
  %129 = vst [vmem:[%s4 + $0x10] sm:$0xff] %v108
  %130 = vst [vmem:[%s4 + $0x18] sm:$0xff] %v109
  %131 = vst [vmem:[%s4 + $0x20] sm:$0xff] %v110
  %132 = vst [vmem:[%s4 + $0x28] sm:$0xff] %v111
  %133 = vst [vmem:[%s4 + $0x30] sm:$0xff] %v112
  %134 = vst [vmem:[%s4 + $0x38] sm:$0xff] %v113
  %135 = vst [vmem:[%s4 + $0x40] sm:$0xff] %v114
  %136 = vst [vmem:[%s4 + $0x48] sm:$0xff] %v115
  %137 = vst [vmem:[%s4 + $0x50] sm:$0xff] %v116
  %138 = vst [vmem:[%s4 + $0x58] sm:$0xff] %v117
  %139 = vst [vmem:[%s4 + $0x60] sm:$0xff] %v118
  %140 = vst [vmem:[%s4 + $0x68] sm:$0xff] %v119
  %141 = vst [vmem:[%s4 + $0x70] sm:$0xff] %v120
  %142 = vst [vmem:[%s4 + $0x78] sm:$0xff] %v121
  %143 = vst [vmem:[%s4 + $0x80] sm:$0xff] %v122
  %144 = vst [vmem:[%s4 + $0x88] sm:$0xff] %v123
  %145 = vst [vmem:[%s4 + $0x90] sm:$0xff] %v124
  %146 = vst [vmem:[%s4 + $0x98] sm:$0xff] %v125
  %147 = vst [vmem:[%s4 + $0xa0] sm:$0xff] %v126
  // Predicated region
  $region18: #{fused_mul_conv1x1_bn.3} parent=0 // pred_check
    _
  $region19: #{fused_mul_conv1x1_bn.3} parent=0 // pred_check_branch
    %149 = sbr.rel (0) target = $region21
  $region20: #{fused_mul_conv1x1_bn.3} parent=0 // pred_region
    _
  $region21: #{fused_mul_conv1x1_bn.3} parent=0 // pred_fallthru
    _
  // Predicated region
  $region22: #{fused_mul_conv1x1_bn.3} parent=0 // pred_check
    _
  $region23: #{fused_mul_conv1x1_bn.3} parent=0 // pred_check_branch
    %151 = sbr.rel (0) target = $region25
  $region24: #{fused_mul_conv1x1_bn.3} parent=0 // pred_region
    _
  $region25: #{fused_mul_conv1x1_bn.3} parent=0 // pred_fallthru
    _

// kernel: fused_mul_conv1x1_bn.2
$region0: #{fused_mul_conv1x1_bn.2}
  #allocation0 [shape = 'u32[]', space=smem, size = 0x4, offset = 0x4, fixed_abs, tag = 'smem constant byte address 0x4 - core index']
  #allocation1 [shape = 'u32[144,128]{1,0:T(1,128)}', space=vmem, size = 0x12000, scoped, tag = 'internal scratch']
  %s0 = inlined_call_operand.vmem [shape: f32[1,56,2064], index: 0, kind: input, shape index: {}]
  %s1 = inlined_call_operand.vmem [shape: f32[1,1,2064], index: 1, kind: input, shape index: {}]
  %s2 = inlined_call_operand.vmem [shape: bf16[2064,384], index: 2, kind: input, shape index: {}]
  %s3 = inlined_call_operand.vmem [shape: f32[1,56,384], index: 3, kind: output, shape index: {0}]
  %s4 = inlined_call_operand.vmem [shape: f32[1,1,2,384], index: 4, kind: output, shape index: {1}]
  %5 = xla_tuple %s3, %s4
  %s6 = sld [smem:[#allocation0]]
  $region30: #{fused_mul_conv1x1_bn.2} parent=0
    _
  %s8 = ssub.s32 1, %s6
  %s9 = scalar_select 0, %s8, %s6
  // Predicated region
  $region2: #{fused_mul_conv1x1_bn.2} parent=0 // pred_check
    _
  $region3: #{fused_mul_conv1x1_bn.2} parent=0 // pred_check_branch
    %11 = sbr.rel (0) target = $region5
  $region4: #{fused_mul_conv1x1_bn.2} parent=0 // pred_region
    _
  $region5: #{fused_mul_conv1x1_bn.2} parent=0 // pred_fallthru
    _
  // Predicated region
  $region6: #{fused_mul_conv1x1_bn.2} parent=0 // pred_check
    _
  $region7: #{fused_mul_conv1x1_bn.2} parent=0 // pred_check_branch
    %13 = sbr.rel (0) target = $region9
  $region8: #{fused_mul_conv1x1_bn.2} parent=0 // pred_region
    _
  $region9: #{fused_mul_conv1x1_bn.2} parent=0 // pred_fallthru
    _
  // Predicated region
  $region10: #{fused_mul_conv1x1_bn.2} parent=0 // pred_check
    _
  $region11: #{fused_mul_conv1x1_bn.2} parent=0 // pred_check_branch
    %15 = sbr.rel (0) target = $region13
  $region12: #{fused_mul_conv1x1_bn.2} parent=0 // pred_region
    _
  $region13: #{fused_mul_conv1x1_bn.2} parent=0 // pred_fallthru
    _
  %v17 = vld [vmem:[%s0] sm:$0xff]
  %v18 = vld [vmem:[%s0 + $0x8] sm:$0xff]
  %v19 = vld [vmem:[%s0 + $0x10] sm:$0xff]
  %v20 = vld [vmem:[%s0 + $0x18] sm:$0xff]
  %v21 = vld [vmem:[%s0 + $0x20] sm:$0xff]
  %v22 = vld [vmem:[%s0 + $0x28] sm:$0xff]
  %v23 = vld [vmem:[%s0 + $0x30] sm:$0xff]
  %v24 = vld [vmem:[%s0 + $0x38] sm:$0xff]
  %v25 = vld [vmem:[%s0 + $0x40] sm:$0xff]
  %v26 = vld [vmem:[%s0 + $0x48] sm:$0xff]
  %v27 = vld [vmem:[%s0 + $0x50] sm:$0xff]
  %v28 = vld [vmem:[%s0 + $0x58] sm:$0xff]
  %v29 = vld [vmem:[%s0 + $0x60] sm:$0xff]
  %v30 = vld [vmem:[%s0 + $0x68] sm:$0xff]
  %v31 = vld [vmem:[%s0 + $0x70] sm:$0xff]
  %v32 = vld [vmem:[%s0 + $0x78] sm:$0xff]
  %v33 = vld [vmem:[%s0 + $0x80] sm:$0xff]
  %v34 = vld [vmem:[%s0 + $0x88] sm:$0xff]
  %v35 = vld [vmem:[%s0 + $0x90] sm:$0xff]
  %v36 = vld [vmem:[%s0 + $0x98] sm:$0xff]
  %v37 = vld [vmem:[%s0 + $0xa0] sm:$0xff]
  %v38 = vld [vmem:[%s0 + $0xa8] sm:$0xff]
  %v39 = vld [vmem:[%s0 + $0xb0] sm:$0xff]
  %v40 = vld [vmem:[%s0 + $0xb8] sm:$0xff]
  %v41 = vld [vmem:[%s0 + $0xc0] sm:$0xff]
  %v42 = vld [vmem:[%s0 + $0xc8] sm:$0xff]
  %v43 = vld [vmem:[%s0 + $0xd0] sm:$0xff]
  %v44 = vld [vmem:[%s0 + $0xd8] sm:$0xff]
  %v45 = vld [vmem:[%s0 + $0xe0] sm:$0xff]
  %v46 = vld [vmem:[%s0 + $0xe8] sm:$0xff]
  %v47 = vld [vmem:[%s0 + $0xf0] sm:$0xff]
  %v48 = vld [vmem:[%s0 + $0xf8] sm:$0xff]
  %v49 = vld [vmem:[%s0 + $0x100] sm:$0xff]
  %v50 = vld [vmem:[%s0 + $0x108] sm:$0xff]
  %v51 = vld [vmem:[%s0 + $0x110] sm:$0xff]
  %v52 = vld [vmem:[%s0 + $0x118] sm:$0xff]
  %v53 = vld [vmem:[%s0 + $0x120] sm:$0xff]
  %v54 = vld [vmem:[%s0 + $0x128] sm:$0xff]
  %v55 = vld [vmem:[%s0 + $0x130] sm:$0xff]
  %v56 = vld [vmem:[%s0 + $0x138] sm:$0xff]
  %v57 = vld [vmem:[%s0 + $0x140] sm:$0xff]
  %v58 = vld [vmem:[%s0 + $0x148] sm:$0xff]
  %v59 = vld [vmem:[%s0 + $0x150] sm:$0xff]
  %v60 = vld [vmem:[%s0 + $0x158] sm:$0xff]
  %v61 = vld [vmem:[%s0 + $0x160] sm:$0xff]
  %v62 = vld [vmem:[%s0 + $0x168] sm:$0xff]
  %v63 = vld [vmem:[%s0 + $0x170] sm:$0xff]
  %v64 = vld [vmem:[%s0 + $0x178] sm:$0xff]
  %v65 = vld [vmem:[%s0 + $0x180] sm:$0xff]
  %v66 = vld [vmem:[%s0 + $0x188] sm:$0xff]
  %v67 = vld [vmem:[%s0 + $0x190] sm:$0xff]
  %v68 = vld [vmem:[%s0 + $0x198] sm:$0xff]
  %v69 = vld [vmem:[%s0 + $0x1a0] sm:$0xff]
  %v70 = vld [vmem:[%s0 + $0x1a8] sm:$0xff]
  %v71 = vld [vmem:[%s0 + $0x1b0] sm:$0xff]
  %v72 = vld [vmem:[%s0 + $0x1b8] sm:$0xff]
  %v73 = vld [vmem:[%s0 + $0x1c0] sm:$0xff]
  %v74 = vld [vmem:[%s0 + $0x1c8] sm:$0xff]
  %v75 = vld [vmem:[%s0 + $0x1d0] sm:$0xff]
  %v76 = vld [vmem:[%s0 + $0x1d8] sm:$0xff]
  %v77 = vld [vmem:[%s0 + $0x1e0] sm:$0xff]
  %v78 = vld [vmem:[%s0 + $0x1e8] sm:$0xff]
  %v79 = vld [vmem:[%s0 + $0x1f0] sm:$0xff]
  %v80 = vld [vmem:[%s0 + $0x1f8] sm:$0xff]
  %v81 = vld [vmem:[%s0 + $0x200] sm:$0xff]
  %v82 = vld [vmem:[%s0 + $0x208] sm:$0xff]
  %v83 = vld [vmem:[%s0 + $0x210] sm:$0xff]
  %v84 = vld [vmem:[%s0 + $0x218] sm:$0xff]
  %v85 = vld [vmem:[%s0 + $0x220] sm:$0xff]
  %v86 = vld [vmem:[%s0 + $0x228] sm:$0xff]
  %v87 = vld [vmem:[%s0 + $0x230] sm:$0xff]
  %v88 = vld [vmem:[%s0 + $0x238] sm:$0xff]
  %v89 = vld [vmem:[%s0 + $0x240] sm:$0xff]
  %v90 = vld [vmem:[%s0 + $0x248] sm:$0xff]
  %v91 = vld [vmem:[%s0 + $0x250] sm:$0xff]
  %v92 = vld [vmem:[%s0 + $0x258] sm:$0xff]
  %v93 = vld [vmem:[%s0 + $0x260] sm:$0xff]
  %v94 = vld [vmem:[%s0 + $0x268] sm:$0xff]
  %v95 = vld [vmem:[%s0 + $0x270] sm:$0xff]
  %v96 = vld [vmem:[%s0 + $0x278] sm:$0xff]
  %v97 = vld [vmem:[%s0 + $0x280] sm:$0xff]
  %v98 = vld [vmem:[%s0 + $0x288] sm:$0xff]
  %v99 = vld [vmem:[%s0 + $0x290] sm:$0xff]
  %v100 = vld [vmem:[%s0 + $0x298] sm:$0xff]
  %v101 = vld [vmem:[%s0 + $0x2a0] sm:$0xff]
  %v102 = vld [vmem:[%s0 + $0x2a8] sm:$0xff]
  %v103 = vld [vmem:[%s0 + $0x2b0] sm:$0xff]
  %v104 = vld [vmem:[%s0 + $0x2b8] sm:$0xff]
  %v105 = vld [vmem:[%s0 + $0x2c0] sm:$0xff]
  %v106 = vld [vmem:[%s0 + $0x2c8] sm:$0xff]
  %v107 = vld [vmem:[%s0 + $0x2d0] sm:$0xff]
  %v108 = vld [vmem:[%s0 + $0x2d8] sm:$0xff]
  %v109 = vld [vmem:[%s0 + $0x2e0] sm:$0xff]
  %v110 = vld [vmem:[%s0 + $0x2e8] sm:$0xff]
  %v111 = vld [vmem:[%s0 + $0x2f0] sm:$0xff]
  %v112 = vld [vmem:[%s0 + $0x2f8] sm:$0xff]
  %v113 = vld [vmem:[%s0 + $0x300] sm:$0xff]
  %v114 = vld [vmem:[%s0 + $0x308] sm:$0xff]
  %v115 = vld [vmem:[%s0 + $0x310] sm:$0xff]
  %v116 = vld [vmem:[%s0 + $0x318] sm:$0xff]
  %v117 = vld [vmem:[%s0 + $0x320] sm:$0xff]
  %v118 = vld [vmem:[%s0 + $0x328] sm:$0xff]
  %v119 = vld [vmem:[%s0 + $0x330] sm:$0xff]
  %v120 = vld [vmem:[%s0 + $0x338] sm:$0xff]
  %v121 = vld [vmem:[%s0 + $0x340] sm:$0xff]
  %v122 = vld [vmem:[%s0 + $0x348] sm:$0xff]
  %v123 = vld [vmem:[%s0 + $0x350] sm:$0xff]
  %v124 = vld [vmem:[%s0 + $0x358] sm:$0xff]
  %v125 = vld [vmem:[%s0 + $0x360] sm:$0xff]
  %v126 = vld [vmem:[%s0 + $0x368] sm:$0xff]
  %v127 = vld [vmem:[%s0 + $0x370] sm:$0xff]
  %v128 = vld [vmem:[%s0 + $0x378] sm:$0xff]
  %v129 = vld [vmem:[%s0 + $0x380] sm:$0xff]
  %v130 = vld [vmem:[%s0 + $0x388] sm:$0xff]
  %v131 = vld [vmem:[%s0 + $0x390] sm:$0xff]
  %v132 = vld [vmem:[%s0 + $0x398] sm:$0xff]
  %v133 = vld [vmem:[%s0 + $0x3a0] sm:$0xff]
  %v134 = vld [vmem:[%s0 + $0x3a8] sm:$0xff]
  %v135 = vld [vmem:[%s0 + $0x3b0] sm:$0xff]
  %v136 = vld [vmem:[%s1] sm:$0xff]
  %v137 = vld [vmem:[%s1 + $0x8] sm:$0xff]
  %v138 = vld [vmem:[%s1 + $0x10] sm:$0x1]
  %v142 = vlaneseq
  %v143 = vshrl.u32 %v142, 7
  %v144 = vsub.s32 0, %v143
  %v145 = vrot.slane %v136, %v144
  %v146 = vlaneseq
  %v147 = vshrl.u32 %v146, 7
  %v148 = vsub.s32 1, %v147
  %v149 = vrot.slane %v136, %v148
  %v150 = vlaneseq
  %v151 = vshrl.u32 %v150, 7
  %v152 = vsub.s32 2, %v151
  %v153 = vrot.slane %v136, %v152
  %v154 = vlaneseq
  %v155 = vshrl.u32 %v154, 7
  %v156 = vsub.s32 3, %v155
  %v157 = vrot.slane %v136, %v156
  %v158 = vlaneseq
  %v159 = vshrl.u32 %v158, 7
  %v160 = vsub.s32 4, %v159
  %v161 = vrot.slane %v136, %v160
  %v162 = vlaneseq
  %v163 = vshrl.u32 %v162, 7
  %v164 = vsub.s32 5, %v163
  %v165 = vrot.slane %v136, %v164
  %v166 = vlaneseq
  %v167 = vshrl.u32 %v166, 7
  %v168 = vsub.s32 6, %v167
  %v169 = vrot.slane %v136, %v168
  %v170 = vlaneseq
  %v171 = vshrl.u32 %v170, 7
  %v172 = vsub.s32 7, %v171
  %v173 = vrot.slane %v136, %v172
  %v174 = vlaneseq
  %v175 = vshrl.u32 %v174, 7
  %v176 = vsub.s32 0, %v175
  %v177 = vrot.slane %v137, %v176
  %v178 = vlaneseq
  %v179 = vshrl.u32 %v178, 7
  %v180 = vsub.s32 1, %v179
  %v181 = vrot.slane %v137, %v180
  %v182 = vlaneseq
  %v183 = vshrl.u32 %v182, 7
  %v184 = vsub.s32 2, %v183
  %v185 = vrot.slane %v137, %v184
  %v186 = vlaneseq
  %v187 = vshrl.u32 %v186, 7
  %v188 = vsub.s32 3, %v187
  %v189 = vrot.slane %v137, %v188
  %v190 = vlaneseq
  %v191 = vshrl.u32 %v190, 7
  %v192 = vsub.s32 4, %v191
  %v193 = vrot.slane %v137, %v192
  %v194 = vlaneseq
  %v195 = vshrl.u32 %v194, 7
  %v196 = vsub.s32 5, %v195
  %v197 = vrot.slane %v137, %v196
  %v198 = vlaneseq
  %v199 = vshrl.u32 %v198, 7
  %v200 = vsub.s32 6, %v199
  %v201 = vrot.slane %v137, %v200
  %v202 = vlaneseq
  %v203 = vshrl.u32 %v202, 7
  %v204 = vsub.s32 7, %v203
  %v205 = vrot.slane %v137, %v204
  %v206 = vlaneseq
  %v207 = vshrl.u32 %v206, 7
  %v208 = vsub.s32 0, %v207
  %v209 = vrot.slane %v138, %v208
  %v227 = vmul.f32 %v17, %v145
  %v228 = vmul.f32 %v18, %v149
  %v229 = vmul.f32 %v19, %v153
  %v230 = vmul.f32 %v20, %v157
  %v231 = vmul.f32 %v21, %v161
  %v232 = vmul.f32 %v22, %v165
  %v233 = vmul.f32 %v23, %v169
  %v234 = vmul.f32 %v24, %v173
  %v235 = vmul.f32 %v25, %v177
  %v236 = vmul.f32 %v26, %v181
  %v237 = vmul.f32 %v27, %v185
  %v238 = vmul.f32 %v28, %v189
  %v239 = vmul.f32 %v29, %v193
  %v240 = vmul.f32 %v30, %v197
  %v241 = vmul.f32 %v31, %v201
  %v242 = vmul.f32 %v32, %v205
  %v243 = vmul.f32 %v33, %v209
  %v244 = vmul.f32 %v34, %v145
  %v245 = vmul.f32 %v35, %v149
  %v246 = vmul.f32 %v36, %v153
  %v247 = vmul.f32 %v37, %v157
  %v248 = vmul.f32 %v38, %v161
  %v249 = vmul.f32 %v39, %v165
  %v250 = vmul.f32 %v40, %v169
  %v251 = vmul.f32 %v41, %v173
  %v252 = vmul.f32 %v42, %v177
  %v253 = vmul.f32 %v43, %v181
  %v254 = vmul.f32 %v44, %v185
  %v255 = vmul.f32 %v45, %v189
  %v256 = vmul.f32 %v46, %v193
  %v257 = vmul.f32 %v47, %v197
  %v258 = vmul.f32 %v48, %v201
  %v259 = vmul.f32 %v49, %v205
  %v260 = vmul.f32 %v50, %v209
  %v261 = vmul.f32 %v51, %v145
  %v262 = vmul.f32 %v52, %v149
  %v263 = vmul.f32 %v53, %v153
  %v264 = vmul.f32 %v54, %v157
  %v265 = vmul.f32 %v55, %v161
  %v266 = vmul.f32 %v56, %v165
  %v267 = vmul.f32 %v57, %v169
  %v268 = vmul.f32 %v58, %v173
  %v269 = vmul.f32 %v59, %v177
  %v270 = vmul.f32 %v60, %v181
  %v271 = vmul.f32 %v61, %v185
  %v272 = vmul.f32 %v62, %v189
  %v273 = vmul.f32 %v63, %v193
  %v274 = vmul.f32 %v64, %v197
  %v275 = vmul.f32 %v65, %v201
  %v276 = vmul.f32 %v66, %v205
  %v277 = vmul.f32 %v67, %v209
  %v278 = vmul.f32 %v68, %v145
  %v279 = vmul.f32 %v69, %v149
  %v280 = vmul.f32 %v70, %v153
  %v281 = vmul.f32 %v71, %v157
  %v282 = vmul.f32 %v72, %v161
  %v283 = vmul.f32 %v73, %v165
  %v284 = vmul.f32 %v74, %v169
  %v285 = vmul.f32 %v75, %v173
  %v286 = vmul.f32 %v76, %v177
  %v287 = vmul.f32 %v77, %v181
  %v288 = vmul.f32 %v78, %v185
  %v289 = vmul.f32 %v79, %v189
  %v290 = vmul.f32 %v80, %v193
  %v291 = vmul.f32 %v81, %v197
  %v292 = vmul.f32 %v82, %v201
  %v293 = vmul.f32 %v83, %v205
  %v294 = vmul.f32 %v84, %v209
  %v295 = vmul.f32 %v85, %v145
  %v296 = vmul.f32 %v86, %v149
  %v297 = vmul.f32 %v87, %v153
  %v298 = vmul.f32 %v88, %v157
  %v299 = vmul.f32 %v89, %v161
  %v300 = vmul.f32 %v90, %v165
  %v301 = vmul.f32 %v91, %v169
  %v302 = vmul.f32 %v92, %v173
  %v303 = vmul.f32 %v93, %v177
  %v304 = vmul.f32 %v94, %v181
  %v305 = vmul.f32 %v95, %v185
  %v306 = vmul.f32 %v96, %v189
  %v307 = vmul.f32 %v97, %v193
  %v308 = vmul.f32 %v98, %v197
  %v309 = vmul.f32 %v99, %v201
  %v310 = vmul.f32 %v100, %v205
  %v311 = vmul.f32 %v101, %v209
  %v312 = vmul.f32 %v102, %v145
  %v313 = vmul.f32 %v103, %v149
  %v314 = vmul.f32 %v104, %v153
  %v315 = vmul.f32 %v105, %v157
  %v316 = vmul.f32 %v106, %v161
  %v317 = vmul.f32 %v107, %v165
  %v318 = vmul.f32 %v108, %v169
  %v319 = vmul.f32 %v109, %v173
  %v320 = vmul.f32 %v110, %v177
  %v321 = vmul.f32 %v111, %v181
  %v322 = vmul.f32 %v112, %v185
  %v323 = vmul.f32 %v113, %v189
  %v324 = vmul.f32 %v114, %v193
  %v325 = vmul.f32 %v115, %v197
  %v326 = vmul.f32 %v116, %v201
  %v327 = vmul.f32 %v117, %v205
  %v328 = vmul.f32 %v118, %v209
  %v329 = vmul.f32 %v119, %v145
  %v330 = vmul.f32 %v120, %v149
  %v331 = vmul.f32 %v121, %v153
  %v332 = vmul.f32 %v122, %v157
  %v333 = vmul.f32 %v123, %v161
  %v334 = vmul.f32 %v124, %v165
  %v335 = vmul.f32 %v125, %v169
  %v336 = vmul.f32 %v126, %v173
  %v337 = vmul.f32 %v127, %v177
  %v338 = vmul.f32 %v128, %v181
  %v339 = vmul.f32 %v129, %v185
  %v340 = vmul.f32 %v130, %v189
  %v341 = vmul.f32 %v131, %v193
  %v342 = vmul.f32 %v132, %v197
  %v343 = vmul.f32 %v133, %v201
  %v344 = vmul.f32 %v134, %v205
  %v345 = vmul.f32 %v135, %v209
  %v346 = vpack.c.bf16 %v244, %v227
  %v347 = vpack.c.bf16 %v245, %v228
  %v348 = vpack.c.bf16 %v246, %v229
  %v349 = vpack.c.bf16 %v247, %v230
  %v350 = vpack.c.bf16 %v248, %v231
  %v351 = vpack.c.bf16 %v249, %v232
  %v352 = vpack.c.bf16 %v250, %v233
  %v353 = vpack.c.bf16 %v251, %v234
  %v354 = vpack.c.bf16 %v252, %v235
  %v355 = vpack.c.bf16 %v253, %v236
  %v356 = vpack.c.bf16 %v254, %v237
  %v357 = vpack.c.bf16 %v255, %v238
  %v358 = vpack.c.bf16 %v256, %v239
  %v359 = vpack.c.bf16 %v257, %v240
  %v360 = vpack.c.bf16 %v258, %v241
  %v361 = vpack.c.bf16 %v259, %v242
  %v362 = vpack.c.bf16 %v260, %v243
  %v363 = vpack.c.bf16 %v278, %v261
  %v364 = vpack.c.bf16 %v279, %v262
  %v365 = vpack.c.bf16 %v280, %v263
  %v366 = vpack.c.bf16 %v281, %v264
  %v367 = vpack.c.bf16 %v282, %v265
  %v368 = vpack.c.bf16 %v283, %v266
  %v369 = vpack.c.bf16 %v284, %v267
  %v370 = vpack.c.bf16 %v285, %v268
  %v371 = vpack.c.bf16 %v286, %v269
  %v372 = vpack.c.bf16 %v287, %v270
  %v373 = vpack.c.bf16 %v288, %v271
  %v374 = vpack.c.bf16 %v289, %v272
  %v375 = vpack.c.bf16 %v290, %v273
  %v376 = vpack.c.bf16 %v291, %v274
  %v377 = vpack.c.bf16 %v292, %v275
  %v378 = vpack.c.bf16 %v293, %v276
  %v379 = vpack.c.bf16 %v294, %v277
  %v380 = vpack.c.bf16 %v312, %v295
  %v381 = vpack.c.bf16 %v313, %v296
  %v382 = vpack.c.bf16 %v314, %v297
  %v383 = vpack.c.bf16 %v315, %v298
  %v384 = vpack.c.bf16 %v316, %v299
  %v385 = vpack.c.bf16 %v317, %v300
  %v386 = vpack.c.bf16 %v318, %v301
  %v387 = vpack.c.bf16 %v319, %v302
  %v388 = vpack.c.bf16 %v320, %v303
  %v389 = vpack.c.bf16 %v321, %v304
  %v390 = vpack.c.bf16 %v322, %v305
  %v391 = vpack.c.bf16 %v323, %v306
  %v392 = vpack.c.bf16 %v324, %v307
  %v393 = vpack.c.bf16 %v325, %v308
  %v394 = vpack.c.bf16 %v326, %v309
  %v395 = vpack.c.bf16 %v327, %v310
  %v396 = vpack.c.bf16 %v328, %v311
  %v397 = vpack.c.bf16 %v329, %v329
  %v398 = vpack.c.bf16 %v330, %v330
  %v399 = vpack.c.bf16 %v331, %v331
  %v400 = vpack.c.bf16 %v332, %v332
  %v401 = vpack.c.bf16 %v333, %v333
  %v402 = vpack.c.bf16 %v334, %v334
  %v403 = vpack.c.bf16 %v335, %v335
  %v404 = vpack.c.bf16 %v336, %v336
  %v405 = vpack.c.bf16 %v337, %v337
  %v406 = vpack.c.bf16 %v338, %v338
  %v407 = vpack.c.bf16 %v339, %v339
  %v408 = vpack.c.bf16 %v340, %v340
  %v409 = vpack.c.bf16 %v341, %v341
  %v410 = vpack.c.bf16 %v342, %v342
  %v411 = vpack.c.bf16 %v343, %v343
  %v412 = vpack.c.bf16 %v344, %v344
  %v413 = vpack.c.bf16 %v345, %v345
  %v414 = vld [vmem:[%s2] sm:$0xff]
  %v415 = vld [vmem:[%s2 + $0x8] sm:$0xf]
  %v416 = vld [vmem:[%s2 + $0xc] sm:$0xff]
  %v417 = vld [vmem:[%s2 + $0x14] sm:$0xf]
  %v418 = vld [vmem:[%s2 + $0x18] sm:$0xff]
  %v419 = vld [vmem:[%s2 + $0x20] sm:$0xf]
  %v420 = vld [vmem:[%s2 + $0x24] sm:$0xff]
  %v421 = vld [vmem:[%s2 + $0x2c] sm:$0xf]
  %v422 = vld [vmem:[%s2 + $0x30] sm:$0xff]
  %v423 = vld [vmem:[%s2 + $0x38] sm:$0xf]
  %v424 = vld [vmem:[%s2 + $0x3c] sm:$0xff]
  %v425 = vld [vmem:[%s2 + $0x44] sm:$0xf]
  %v426 = vld [vmem:[%s2 + $0x48] sm:$0xff]
  %v427 = vld [vmem:[%s2 + $0x50] sm:$0xf]
  %v428 = vld [vmem:[%s2 + $0x54] sm:$0xff]
  %v429 = vld [vmem:[%s2 + $0x5c] sm:$0xf]
  %v430 = vld [vmem:[%s2 + $0x60] sm:$0xff]
  %v431 = vld [vmem:[%s2 + $0x68] sm:$0xf]
  %v432 = vld [vmem:[%s2 + $0x6c] sm:$0xff]
  %v433 = vld [vmem:[%s2 + $0x74] sm:$0xf]
  %v434 = vld [vmem:[%s2 + $0x78] sm:$0xff]
  %v435 = vld [vmem:[%s2 + $0x80] sm:$0xf]
  %v436 = vld [vmem:[%s2 + $0x84] sm:$0xff]
  %v437 = vld [vmem:[%s2 + $0x8c] sm:$0xf]
  %v438 = vld [vmem:[%s2 + $0x90] sm:$0xff]
  %v439 = vld [vmem:[%s2 + $0x98] sm:$0xf]
  %v440 = vld [vmem:[%s2 + $0x9c] sm:$0xff]
  %v441 = vld [vmem:[%s2 + $0xa4] sm:$0xf]
  %v442 = vld [vmem:[%s2 + $0xa8] sm:$0xff]
  %v443 = vld [vmem:[%s2 + $0xb0] sm:$0xf]
  %v444 = vld [vmem:[%s2 + $0xb4] sm:$0xff]
  %v445 = vld [vmem:[%s2 + $0xbc] sm:$0xf]
  %v446 = vld [vmem:[%s2 + $0xc0] sm:$0xff]
  %v447 = vld [vmem:[%s2 + $0xc8] sm:$0xf]
  %v448 = vld [vmem:[%s2 + $0xcc] sm:$0xff]
  %v449 = vld [vmem:[%s2 + $0xd4] sm:$0xf]
  %v450 = vld [vmem:[%s2 + $0xd8] sm:$0xff]
  %v451 = vld [vmem:[%s2 + $0xe0] sm:$0xf]
  %v452 = vld [vmem:[%s2 + $0xe4] sm:$0xff]
  %v453 = vld [vmem:[%s2 + $0xec] sm:$0xf]
  %v454 = vld [vmem:[%s2 + $0xf0] sm:$0xff]
  %v455 = vld [vmem:[%s2 + $0xf8] sm:$0xf]
  %v456 = vld [vmem:[%s2 + $0xfc] sm:$0xff]
  %v457 = vld [vmem:[%s2 + $0x104] sm:$0xf]
  %v458 = vld [vmem:[%s2 + $0x108] sm:$0xff]
  %v459 = vld [vmem:[%s2 + $0x110] sm:$0xf]
  %v460 = vld [vmem:[%s2 + $0x114] sm:$0xff]
  %v461 = vld [vmem:[%s2 + $0x11c] sm:$0xf]
  %v462 = vld [vmem:[%s2 + $0x120] sm:$0xff]
  %v463 = vld [vmem:[%s2 + $0x128] sm:$0xf]
  %v464 = vld [vmem:[%s2 + $0x12c] sm:$0xff]
  %v465 = vld [vmem:[%s2 + $0x134] sm:$0xf]
  %v466 = vld [vmem:[%s2 + $0x138] sm:$0xff]
  %v467 = vld [vmem:[%s2 + $0x140] sm:$0xf]
  %v468 = vld [vmem:[%s2 + $0x144] sm:$0xff]
  %v469 = vld [vmem:[%s2 + $0x14c] sm:$0xf]
  %v470 = vld [vmem:[%s2 + $0x150] sm:$0xff]
  %v471 = vld [vmem:[%s2 + $0x158] sm:$0xf]
  %v472 = vld [vmem:[%s2 + $0x15c] sm:$0xff]
  %v473 = vld [vmem:[%s2 + $0x164] sm:$0xf]
  %v474 = vld [vmem:[%s2 + $0x168] sm:$0xff]
  %v475 = vld [vmem:[%s2 + $0x170] sm:$0xf]
  %v476 = vld [vmem:[%s2 + $0x174] sm:$0xff]
  %v477 = vld [vmem:[%s2 + $0x17c] sm:$0xf]
  %v478 = vld [vmem:[%s2 + $0x180] sm:$0xff]
  %v479 = vld [vmem:[%s2 + $0x188] sm:$0xf]
  %v480 = vld [vmem:[%s2 + $0x18c] sm:$0xff]
  %v481 = vld [vmem:[%s2 + $0x194] sm:$0xf]
  %v482 = vld [vmem:[%s2 + $0x198] sm:$0xff]
  %v483 = vld [vmem:[%s2 + $0x1a0] sm:$0xf]
  %v484 = vld [vmem:[%s2 + $0x1a4] sm:$0xff]
  %v485 = vld [vmem:[%s2 + $0x1ac] sm:$0xf]
  %v486 = vld [vmem:[%s2 + $0x1b0] sm:$0xff]
  %v487 = vld [vmem:[%s2 + $0x1b8] sm:$0xf]
  %v488 = vld [vmem:[%s2 + $0x1bc] sm:$0xff]
  %v489 = vld [vmem:[%s2 + $0x1c4] sm:$0xf]
  %v490 = vld [vmem:[%s2 + $0x1c8] sm:$0xff]
  %v491 = vld [vmem:[%s2 + $0x1d0] sm:$0xf]
  %v492 = vld [vmem:[%s2 + $0x1d4] sm:$0xff]
  %v493 = vld [vmem:[%s2 + $0x1dc] sm:$0xf]
  %v494 = vld [vmem:[%s2 + $0x1e0] sm:$0xff]
  %v495 = vld [vmem:[%s2 + $0x1e8] sm:$0xf]
  %v496 = vld [vmem:[%s2 + $0x1ec] sm:$0xff]
  %v497 = vld [vmem:[%s2 + $0x1f4] sm:$0xf]
  %v498 = vld [vmem:[%s2 + $0x1f8] sm:$0xff]
  %v499 = vld [vmem:[%s2 + $0x200] sm:$0xf]
  %v500 = vld [vmem:[%s2 + $0x204] sm:$0xff]
  %v501 = vld [vmem:[%s2 + $0x20c] sm:$0xf]
  %v502 = vld [vmem:[%s2 + $0x210] sm:$0xff]
  %v503 = vld [vmem:[%s2 + $0x218] sm:$0xf]
  %v504 = vld [vmem:[%s2 + $0x21c] sm:$0xff]
  %v505 = vld [vmem:[%s2 + $0x224] sm:$0xf]
  %v506 = vld [vmem:[%s2 + $0x228] sm:$0xff]
  %v507 = vld [vmem:[%s2 + $0x230] sm:$0xf]
  %v508 = vld [vmem:[%s2 + $0x234] sm:$0xff]
  %v509 = vld [vmem:[%s2 + $0x23c] sm:$0xf]
  %v510 = vld [vmem:[%s2 + $0x240] sm:$0xff]
  %v511 = vld [vmem:[%s2 + $0x248] sm:$0xf]
  %v512 = vld [vmem:[%s2 + $0x24c] sm:$0xff]
  %v513 = vld [vmem:[%s2 + $0x254] sm:$0xf]
  %v514 = vld [vmem:[%s2 + $0x258] sm:$0xff]
  %v515 = vld [vmem:[%s2 + $0x260] sm:$0xf]
  %v516 = vld [vmem:[%s2 + $0x264] sm:$0xff]
  %v517 = vld [vmem:[%s2 + $0x26c] sm:$0xf]
  %v518 = vld [vmem:[%s2 + $0x270] sm:$0xff]
  %v519 = vld [vmem:[%s2 + $0x278] sm:$0xf]
  %v520 = vld [vmem:[%s2 + $0x27c] sm:$0xff]
  %v521 = vld [vmem:[%s2 + $0x284] sm:$0xf]
  %v522 = vld [vmem:[%s2 + $0x288] sm:$0xff]
  %v523 = vld [vmem:[%s2 + $0x290] sm:$0xf]
  %v524 = vld [vmem:[%s2 + $0x294] sm:$0xff]
  %v525 = vld [vmem:[%s2 + $0x29c] sm:$0xf]
  %v526 = vld [vmem:[%s2 + $0x2a0] sm:$0xff]
  %v527 = vld [vmem:[%s2 + $0x2a8] sm:$0xf]
  %v528 = vld [vmem:[%s2 + $0x2ac] sm:$0xff]
  %v529 = vld [vmem:[%s2 + $0x2b4] sm:$0xf]
  %v530 = vld [vmem:[%s2 + $0x2b8] sm:$0xff]
  %v531 = vld [vmem:[%s2 + $0x2c0] sm:$0xf]
  %v532 = vld [vmem:[%s2 + $0x2c4] sm:$0xff]
  %v533 = vld [vmem:[%s2 + $0x2cc] sm:$0xf]
  %v534 = vld [vmem:[%s2 + $0x2d0] sm:$0xff]
  %v535 = vld [vmem:[%s2 + $0x2d8] sm:$0xf]
  %v536 = vld [vmem:[%s2 + $0x2dc] sm:$0xff]
  %v537 = vld [vmem:[%s2 + $0x2e4] sm:$0xf]
  %v538 = vld [vmem:[%s2 + $0x2e8] sm:$0xff]
  %v539 = vld [vmem:[%s2 + $0x2f0] sm:$0xf]
  %v540 = vld [vmem:[%s2 + $0x2f4] sm:$0xff]
  %v541 = vld [vmem:[%s2 + $0x2fc] sm:$0xf]
  %v542 = vld [vmem:[%s2 + $0x300] sm:$0xff]
  %v543 = vld [vmem:[%s2 + $0x308] sm:$0xf]
  %v544 = vld [vmem:[%s2 + $0x30c] sm:$0xff]
  %v545 = vld [vmem:[%s2 + $0x314] sm:$0xf]
  %v546 = vld [vmem:[%s2 + $0x318] sm:$0xff]
  %v547 = vld [vmem:[%s2 + $0x320] sm:$0xf]
  %v548 = vld [vmem:[%s2 + $0x324] sm:$0xff]
  %v549 = vld [vmem:[%s2 + $0x32c] sm:$0xf]
  %v550 = vld [vmem:[%s2 + $0x330] sm:$0xff]
  %v551 = vld [vmem:[%s2 + $0x338] sm:$0xf]
  %v552 = vld [vmem:[%s2 + $0x33c] sm:$0xff]
  %v553 = vld [vmem:[%s2 + $0x344] sm:$0xf]
  %v554 = vld [vmem:[%s2 + $0x348] sm:$0xff]
  %v555 = vld [vmem:[%s2 + $0x350] sm:$0xf]
  %v556 = vld [vmem:[%s2 + $0x354] sm:$0xff]
  %v557 = vld [vmem:[%s2 + $0x35c] sm:$0xf]
  %v558 = vld [vmem:[%s2 + $0x360] sm:$0xff]
  %v559 = vld [vmem:[%s2 + $0x368] sm:$0xf]
  %v560 = vld [vmem:[%s2 + $0x36c] sm:$0xff]
  %v561 = vld [vmem:[%s2 + $0x374] sm:$0xf]
  %v562 = vld [vmem:[%s2 + $0x378] sm:$0xff]
  %v563 = vld [vmem:[%s2 + $0x380] sm:$0xf]
  %v564 = vld [vmem:[%s2 + $0x384] sm:$0xff]
  %v565 = vld [vmem:[%s2 + $0x38c] sm:$0xf]
  %v566 = vld [vmem:[%s2 + $0x390] sm:$0xff]
  %v567 = vld [vmem:[%s2 + $0x398] sm:$0xf]
  %v568 = vld [vmem:[%s2 + $0x39c] sm:$0xff]
  %v569 = vld [vmem:[%s2 + $0x3a4] sm:$0xf]
  %v570 = vld [vmem:[%s2 + $0x3a8] sm:$0xff]
  %v571 = vld [vmem:[%s2 + $0x3b0] sm:$0xf]
  %v572 = vld [vmem:[%s2 + $0x3b4] sm:$0xff]
  %v573 = vld [vmem:[%s2 + $0x3bc] sm:$0xf]
  %v574 = vld [vmem:[%s2 + $0x3c0] sm:$0xff]
  %v575 = vld [vmem:[%s2 + $0x3c8] sm:$0xf]
  %v576 = vld [vmem:[%s2 + $0x3cc] sm:$0xff]
  %v577 = vld [vmem:[%s2 + $0x3d4] sm:$0xf]
  %v578 = vld [vmem:[%s2 + $0x3d8] sm:$0xff]
  %v579 = vld [vmem:[%s2 + $0x3e0] sm:$0xf]
  %v580 = vld [vmem:[%s2 + $0x3e4] sm:$0xff]
  %v581 = vld [vmem:[%s2 + $0x3ec] sm:$0xf]
  %v582 = vld [vmem:[%s2 + $0x3f0] sm:$0xff]
  %v583 = vld [vmem:[%s2 + $0x3f8] sm:$0xf]
  %v584 = vld [vmem:[%s2 + $0x3fc] sm:$0xff]
  %v585 = vld [vmem:[%s2 + $0x404] sm:$0xf]
  %v586 = vld [vmem:[%s2 + $0x408] sm:$0xff]
  %v587 = vld [vmem:[%s2 + $0x410] sm:$0xf]
  %v588 = vld [vmem:[%s2 + $0x414] sm:$0xff]
  %v589 = vld [vmem:[%s2 + $0x41c] sm:$0xf]
  %v590 = vld [vmem:[%s2 + $0x420] sm:$0xff]
  %v591 = vld [vmem:[%s2 + $0x428] sm:$0xf]
  %v592 = vld [vmem:[%s2 + $0x42c] sm:$0xff]
  %v593 = vld [vmem:[%s2 + $0x434] sm:$0xf]
  %v594 = vld [vmem:[%s2 + $0x438] sm:$0xff]
  %v595 = vld [vmem:[%s2 + $0x440] sm:$0xf]
  %v596 = vld [vmem:[%s2 + $0x444] sm:$0xff]
  %v597 = vld [vmem:[%s2 + $0x44c] sm:$0xf]
  %v598 = vld [vmem:[%s2 + $0x450] sm:$0xff]
  %v599 = vld [vmem:[%s2 + $0x458] sm:$0xf]
  %v600 = vld [vmem:[%s2 + $0x45c] sm:$0xff]
  %v601 = vld [vmem:[%s2 + $0x464] sm:$0xf]
  %v602 = vld [vmem:[%s2 + $0x468] sm:$0xff]
  %v603 = vld [vmem:[%s2 + $0x470] sm:$0xf]
  %v604 = vld [vmem:[%s2 + $0x474] sm:$0xff]
  %v605 = vld [vmem:[%s2 + $0x47c] sm:$0xf]
  %v606 = vld [vmem:[%s2 + $0x480] sm:$0xff]
  %v607 = vld [vmem:[%s2 + $0x488] sm:$0xf]
  %v608 = vld [vmem:[%s2 + $0x48c] sm:$0xff]
  %v609 = vld [vmem:[%s2 + $0x494] sm:$0xf]
  %v610 = vld [vmem:[%s2 + $0x498] sm:$0xff]
  %v611 = vld [vmem:[%s2 + $0x4a0] sm:$0xf]
  %v612 = vld [vmem:[%s2 + $0x4a4] sm:$0xff]
  %v613 = vld [vmem:[%s2 + $0x4ac] sm:$0xf]
  %v614 = vld [vmem:[%s2 + $0x4b0] sm:$0xff]
  %v615 = vld [vmem:[%s2 + $0x4b8] sm:$0xf]
  %v616 = vld [vmem:[%s2 + $0x4bc] sm:$0xff]
  %v617 = vld [vmem:[%s2 + $0x4c4] sm:$0xf]
  %v618 = vld [vmem:[%s2 + $0x4c8] sm:$0xff]
  %v619 = vld [vmem:[%s2 + $0x4d0] sm:$0xf]
  %v620 = vld [vmem:[%s2 + $0x4d4] sm:$0xff]
  %v621 = vld [vmem:[%s2 + $0x4dc] sm:$0xf]
  %v622 = vld [vmem:[%s2 + $0x4e0] sm:$0xff]
  %v623 = vld [vmem:[%s2 + $0x4e8] sm:$0xf]
  %v624 = vld [vmem:[%s2 + $0x4ec] sm:$0xff]
  %v625 = vld [vmem:[%s2 + $0x4f4] sm:$0xf]
  %v626 = vld [vmem:[%s2 + $0x4f8] sm:$0xff]
  %v627 = vld [vmem:[%s2 + $0x500] sm:$0xf]
  %v628 = vld [vmem:[%s2 + $0x504] sm:$0xff]
  %v629 = vld [vmem:[%s2 + $0x50c] sm:$0xf]
  %v630 = vld [vmem:[%s2 + $0x510] sm:$0xff]
  %v631 = vld [vmem:[%s2 + $0x518] sm:$0xf]
  %v632 = vld [vmem:[%s2 + $0x51c] sm:$0xff]
  %v633 = vld [vmem:[%s2 + $0x524] sm:$0xf]
  %v634 = vld [vmem:[%s2 + $0x528] sm:$0xff]
  %v635 = vld [vmem:[%s2 + $0x530] sm:$0xf]
  %v636 = vld [vmem:[%s2 + $0x534] sm:$0xff]
  %v637 = vld [vmem:[%s2 + $0x53c] sm:$0xf]
  %v638 = vld [vmem:[%s2 + $0x540] sm:$0xff]
  %v639 = vld [vmem:[%s2 + $0x548] sm:$0xf]
  %v640 = vld [vmem:[%s2 + $0x54c] sm:$0xff]
  %v641 = vld [vmem:[%s2 + $0x554] sm:$0xf]
  %v642 = vld [vmem:[%s2 + $0x558] sm:$0xff]
  %v643 = vld [vmem:[%s2 + $0x560] sm:$0xf]
  %v644 = vld [vmem:[%s2 + $0x564] sm:$0xff]
  %v645 = vld [vmem:[%s2 + $0x56c] sm:$0xf]
  %v646 = vld [vmem:[%s2 + $0x570] sm:$0xff]
  %v647 = vld [vmem:[%s2 + $0x578] sm:$0xf]
  %v648 = vld [vmem:[%s2 + $0x57c] sm:$0xff]
  %v649 = vld [vmem:[%s2 + $0x584] sm:$0xf]
  %v650 = vld [vmem:[%s2 + $0x588] sm:$0xff]
  %v651 = vld [vmem:[%s2 + $0x590] sm:$0xf]
  %v652 = vld [vmem:[%s2 + $0x594] sm:$0xff]
  %v653 = vld [vmem:[%s2 + $0x59c] sm:$0xf]
  %v654 = vld [vmem:[%s2 + $0x5a0] sm:$0xff]
  %v655 = vld [vmem:[%s2 + $0x5a8] sm:$0xf]
  %v656 = vld [vmem:[%s2 + $0x5ac] sm:$0xff]
  %v657 = vld [vmem:[%s2 + $0x5b4] sm:$0xf]
  %v658 = vld [vmem:[%s2 + $0x5b8] sm:$0xff]
  %v659 = vld [vmem:[%s2 + $0x5c0] sm:$0xf]
  %v660 = vld [vmem:[%s2 + $0x5c4] sm:$0xff]
  %v661 = vld [vmem:[%s2 + $0x5cc] sm:$0xf]
  %v662 = vld [vmem:[%s2 + $0x5d0] sm:$0xff]
  %v663 = vld [vmem:[%s2 + $0x5d8] sm:$0xf]
  %v664 = vld [vmem:[%s2 + $0x5dc] sm:$0xff]
  %v665 = vld [vmem:[%s2 + $0x5e4] sm:$0xf]
  %v666 = vld [vmem:[%s2 + $0x5e8] sm:$0xff]
  %v667 = vld [vmem:[%s2 + $0x5f0] sm:$0xf]
  %v668 = vld [vmem:[%s2 + $0x5f4] sm:$0xff]
  %v669 = vld [vmem:[%s2 + $0x5fc] sm:$0xf]
  %v670 = vld [vmem:[%s2 + $0x600] sm:$0xff]
  %v671 = vld [vmem:[%s2 + $0x608] sm:$0xf]
  %v672 = vld [vmem:[%s2 + $0x60c] sm:$0xff]
  %v673 = vld [vmem:[%s2 + $0x614] sm:$0xf]
  %v674 = vld [vmem:[%s2 + $0x618] sm:$0xff]
  %v675 = vld [vmem:[%s2 + $0x620] sm:$0xf]
  %v676 = vld [vmem:[%s2 + $0x624] sm:$0xff]
  %v677 = vld [vmem:[%s2 + $0x62c] sm:$0xf]
  %v678 = vld [vmem:[%s2 + $0x630] sm:$0xff]
  %v679 = vld [vmem:[%s2 + $0x638] sm:$0xf]
  %v680 = vld [vmem:[%s2 + $0x63c] sm:$0xff]
  %v681 = vld [vmem:[%s2 + $0x644] sm:$0xf]
  %v682 = vld [vmem:[%s2 + $0x648] sm:$0xff]
  %v683 = vld [vmem:[%s2 + $0x650] sm:$0xf]
  %v684 = vld [vmem:[%s2 + $0x654] sm:$0xff]
  %v685 = vld [vmem:[%s2 + $0x65c] sm:$0xf]
  %v686 = vld [vmem:[%s2 + $0x660] sm:$0xff]
  %v687 = vld [vmem:[%s2 + $0x668] sm:$0xf]
  %v688 = vld [vmem:[%s2 + $0x66c] sm:$0xff]
  %v689 = vld [vmem:[%s2 + $0x674] sm:$0xf]
  %v690 = vld [vmem:[%s2 + $0x678] sm:$0xff]
  %v691 = vld [vmem:[%s2 + $0x680] sm:$0xf]
  %v692 = vld [vmem:[%s2 + $0x684] sm:$0xff]
  %v693 = vld [vmem:[%s2 + $0x68c] sm:$0xf]
  %v694 = vld [vmem:[%s2 + $0x690] sm:$0xff]
  %v695 = vld [vmem:[%s2 + $0x698] sm:$0xf]
  %v696 = vld [vmem:[%s2 + $0x69c] sm:$0xff]
  %v697 = vld [vmem:[%s2 + $0x6a4] sm:$0xf]
  %v698 = vld [vmem:[%s2 + $0x6a8] sm:$0xff]
  %v699 = vld [vmem:[%s2 + $0x6b0] sm:$0xf]
  %v700 = vld [vmem:[%s2 + $0x6b4] sm:$0xff]
  %v701 = vld [vmem:[%s2 + $0x6bc] sm:$0xf]
  %v702 = vld [vmem:[%s2 + $0x6c0] sm:$0xff]
  %v703 = vld [vmem:[%s2 + $0x6c8] sm:$0xf]
  %v704 = vld [vmem:[%s2 + $0x6cc] sm:$0xff]
  %v705 = vld [vmem:[%s2 + $0x6d4] sm:$0xf]
  %v706 = vld [vmem:[%s2 + $0x6d8] sm:$0xff]
  %v707 = vld [vmem:[%s2 + $0x6e0] sm:$0xf]
  %v708 = vld [vmem:[%s2 + $0x6e4] sm:$0xff]
  %v709 = vld [vmem:[%s2 + $0x6ec] sm:$0xf]
  %v710 = vld [vmem:[%s2 + $0x6f0] sm:$0xff]
  %v711 = vld [vmem:[%s2 + $0x6f8] sm:$0xf]
  %v712 = vld [vmem:[%s2 + $0x6fc] sm:$0xff]
  %v713 = vld [vmem:[%s2 + $0x704] sm:$0xf]
  %v714 = vld [vmem:[%s2 + $0x708] sm:$0xff]
  %v715 = vld [vmem:[%s2 + $0x710] sm:$0xf]
  %v716 = vld [vmem:[%s2 + $0x714] sm:$0xff]
  %v717 = vld [vmem:[%s2 + $0x71c] sm:$0xf]
  %v718 = vld [vmem:[%s2 + $0x720] sm:$0xff]
  %v719 = vld [vmem:[%s2 + $0x728] sm:$0xf]
  %v720 = vld [vmem:[%s2 + $0x72c] sm:$0xff]
  %v721 = vld [vmem:[%s2 + $0x734] sm:$0xf]
  %v722 = vld [vmem:[%s2 + $0x738] sm:$0xff]
  %v723 = vld [vmem:[%s2 + $0x740] sm:$0xf]
  %v724 = vld [vmem:[%s2 + $0x744] sm:$0xff]
  %v725 = vld [vmem:[%s2 + $0x74c] sm:$0xf]
  %v726 = vld [vmem:[%s2 + $0x750] sm:$0xff]
  %v727 = vld [vmem:[%s2 + $0x758] sm:$0xf]
  %v728 = vld [vmem:[%s2 + $0x75c] sm:$0xff]
  %v729 = vld [vmem:[%s2 + $0x764] sm:$0xf]
  %v730 = vld [vmem:[%s2 + $0x768] sm:$0xff]
  %v731 = vld [vmem:[%s2 + $0x770] sm:$0xf]
  %v732 = vld [vmem:[%s2 + $0x774] sm:$0xff]
  %v733 = vld [vmem:[%s2 + $0x77c] sm:$0xf]
  %v734 = vld [vmem:[%s2 + $0x780] sm:$0xff]
  %v735 = vld [vmem:[%s2 + $0x788] sm:$0xf]
  %v736 = vld [vmem:[%s2 + $0x78c] sm:$0xff]
  %v737 = vld [vmem:[%s2 + $0x794] sm:$0xf]
  %v738 = vld [vmem:[%s2 + $0x798] sm:$0xff]
  %v739 = vld [vmem:[%s2 + $0x7a0] sm:$0xf]
  %v740 = vld [vmem:[%s2 + $0x7a4] sm:$0xff]
  %v741 = vld [vmem:[%s2 + $0x7ac] sm:$0xf]
  %v742 = vld [vmem:[%s2 + $0x7b0] sm:$0xff]
  %v743 = vld [vmem:[%s2 + $0x7b8] sm:$0xf]
  %v744 = vld [vmem:[%s2 + $0x7bc] sm:$0xff]
  %v745 = vld [vmem:[%s2 + $0x7c4] sm:$0xf]
  %v746 = vld [vmem:[%s2 + $0x7c8] sm:$0xff]
  %v747 = vld [vmem:[%s2 + $0x7d0] sm:$0xf]
  %v748 = vld [vmem:[%s2 + $0x7d4] sm:$0xff]
  %v749 = vld [vmem:[%s2 + $0x7dc] sm:$0xf]
  %v750 = vld [vmem:[%s2 + $0x7e0] sm:$0xff]
  %v751 = vld [vmem:[%s2 + $0x7e8] sm:$0xf]
  %v752 = vld [vmem:[%s2 + $0x7ec] sm:$0xff]
  %v753 = vld [vmem:[%s2 + $0x7f4] sm:$0xf]
  %v754 = vld [vmem:[%s2 + $0x7f8] sm:$0xff]
  %v755 = vld [vmem:[%s2 + $0x800] sm:$0xf]
  %v756 = vld [vmem:[%s2 + $0x804] sm:$0xff]
  %v757 = vld [vmem:[%s2 + $0x80c] sm:$0xf]
  %v758 = vld [vmem:[%s2 + $0x810] sm:$0xff]
  %v759 = vld [vmem:[%s2 + $0x818] sm:$0xf]
  %v760 = vld [vmem:[%s2 + $0x81c] sm:$0xff]
  %v761 = vld [vmem:[%s2 + $0x824] sm:$0xf]
  %v762 = vld [vmem:[%s2 + $0x828] sm:$0xff]
  %v763 = vld [vmem:[%s2 + $0x830] sm:$0xf]
  %v764 = vld [vmem:[%s2 + $0x834] sm:$0xff]
  %v765 = vld [vmem:[%s2 + $0x83c] sm:$0xf]
  %v766 = vld [vmem:[%s2 + $0x840] sm:$0xff]
  %v767 = vld [vmem:[%s2 + $0x848] sm:$0xf]
  %v768 = vld [vmem:[%s2 + $0x84c] sm:$0xff]
  %v769 = vld [vmem:[%s2 + $0x854] sm:$0xf]
  %v770 = vld [vmem:[%s2 + $0x858] sm:$0xff]
  %v771 = vld [vmem:[%s2 + $0x860] sm:$0xf]
  %v772 = vld [vmem:[%s2 + $0x864] sm:$0xff]
  %v773 = vld [vmem:[%s2 + $0x86c] sm:$0xf]
  %v774 = vld [vmem:[%s2 + $0x870] sm:$0xff]
  %v775 = vld [vmem:[%s2 + $0x878] sm:$0xf]
  %v776 = vld [vmem:[%s2 + $0x87c] sm:$0xff]
  %v777 = vld [vmem:[%s2 + $0x884] sm:$0xf]
  %v778 = vld [vmem:[%s2 + $0x888] sm:$0xff]
  %v779 = vld [vmem:[%s2 + $0x890] sm:$0xf]
  %v780 = vld [vmem:[%s2 + $0x894] sm:$0xff]
  %v781 = vld [vmem:[%s2 + $0x89c] sm:$0xf]
  %v782 = vld [vmem:[%s2 + $0x8a0] sm:$0xff]
  %v783 = vld [vmem:[%s2 + $0x8a8] sm:$0xf]
  %v784 = vld [vmem:[%s2 + $0x8ac] sm:$0xff]
  %v785 = vld [vmem:[%s2 + $0x8b4] sm:$0xf]
  %v786 = vld [vmem:[%s2 + $0x8b8] sm:$0xff]
  %v787 = vld [vmem:[%s2 + $0x8c0] sm:$0xf]
  %v788 = vld [vmem:[%s2 + $0x8c4] sm:$0xff]
  %v789 = vld [vmem:[%s2 + $0x8cc] sm:$0xf]
  %v790 = vld [vmem:[%s2 + $0x8d0] sm:$0xff]
  %v791 = vld [vmem:[%s2 + $0x8d8] sm:$0xf]
  %v792 = vld [vmem:[%s2 + $0x8dc] sm:$0xff]
  %v793 = vld [vmem:[%s2 + $0x8e4] sm:$0xf]
  %v794 = vld [vmem:[%s2 + $0x8e8] sm:$0xff]
  %v795 = vld [vmem:[%s2 + $0x8f0] sm:$0xf]
  %v796 = vld [vmem:[%s2 + $0x8f4] sm:$0xff]
  %v797 = vld [vmem:[%s2 + $0x8fc] sm:$0xf]
  %v798 = vld [vmem:[%s2 + $0x900] sm:$0xff]
  %v799 = vld [vmem:[%s2 + $0x908] sm:$0xf]
  %v800 = vld [vmem:[%s2 + $0x90c] sm:$0xff]
  %v801 = vld [vmem:[%s2 + $0x914] sm:$0xf]
  %v802 = vld [vmem:[%s2 + $0x918] sm:$0xff]
  %v803 = vld [vmem:[%s2 + $0x920] sm:$0xf]
  %v804 = vld [vmem:[%s2 + $0x924] sm:$0xff]
  %v805 = vld [vmem:[%s2 + $0x92c] sm:$0xf]
  %v806 = vld [vmem:[%s2 + $0x930] sm:$0xff]
  %v807 = vld [vmem:[%s2 + $0x938] sm:$0xf]
  %v808 = vld [vmem:[%s2 + $0x93c] sm:$0xff]
  %v809 = vld [vmem:[%s2 + $0x944] sm:$0xf]
  %v810 = vld [vmem:[%s2 + $0x948] sm:$0xff]
  %v811 = vld [vmem:[%s2 + $0x950] sm:$0xf]
  %v812 = vld [vmem:[%s2 + $0x954] sm:$0xff]
  %v813 = vld [vmem:[%s2 + $0x95c] sm:$0xf]
  %v814 = vld [vmem:[%s2 + $0x960] sm:$0xff]
  %v815 = vld [vmem:[%s2 + $0x968] sm:$0xf]
  %v816 = vld [vmem:[%s2 + $0x96c] sm:$0xff]
  %v817 = vld [vmem:[%s2 + $0x974] sm:$0xf]
  %v818 = vld [vmem:[%s2 + $0x978] sm:$0xff]
  %v819 = vld [vmem:[%s2 + $0x980] sm:$0xf]
  %v820 = vld [vmem:[%s2 + $0x984] sm:$0xff]
  %v821 = vld [vmem:[%s2 + $0x98c] sm:$0xf]
  %v822 = vld [vmem:[%s2 + $0x990] sm:$0xff]
  %v823 = vld [vmem:[%s2 + $0x998] sm:$0xf]
  %v824 = vld [vmem:[%s2 + $0x99c] sm:$0xff]
  %v825 = vld [vmem:[%s2 + $0x9a4] sm:$0xf]
  %v826 = vld [vmem:[%s2 + $0x9a8] sm:$0xff]
  %v827 = vld [vmem:[%s2 + $0x9b0] sm:$0xf]
  %v828 = vld [vmem:[%s2 + $0x9b4] sm:$0xff]
  %v829 = vld [vmem:[%s2 + $0x9bc] sm:$0xf]
  %v830 = vld [vmem:[%s2 + $0x9c0] sm:$0xff]
  %v831 = vld [vmem:[%s2 + $0x9c8] sm:$0xf]
  %v832 = vld [vmem:[%s2 + $0x9cc] sm:$0xff]
  %v833 = vld [vmem:[%s2 + $0x9d4] sm:$0xf]
  %v834 = vld [vmem:[%s2 + $0x9d8] sm:$0xff]
  %v835 = vld [vmem:[%s2 + $0x9e0] sm:$0xf]
  %v836 = vld [vmem:[%s2 + $0x9e4] sm:$0xff]
  %v837 = vld [vmem:[%s2 + $0x9ec] sm:$0xf]
  %v838 = vld [vmem:[%s2 + $0x9f0] sm:$0xff]
  %v839 = vld [vmem:[%s2 + $0x9f8] sm:$0xf]
  %v840 = vld [vmem:[%s2 + $0x9fc] sm:$0xff]
  %v841 = vld [vmem:[%s2 + $0xa04] sm:$0xf]
  %v842 = vld [vmem:[%s2 + $0xa08] sm:$0xff]
  %v843 = vld [vmem:[%s2 + $0xa10] sm:$0xf]
  %v844 = vld [vmem:[%s2 + $0xa14] sm:$0xff]
  %v845 = vld [vmem:[%s2 + $0xa1c] sm:$0xf]
  %v846 = vld [vmem:[%s2 + $0xa20] sm:$0xff]
  %v847 = vld [vmem:[%s2 + $0xa28] sm:$0xf]
  %v848 = vld [vmem:[%s2 + $0xa2c] sm:$0xff]
  %v849 = vld [vmem:[%s2 + $0xa34] sm:$0xf]
  %v850 = vld [vmem:[%s2 + $0xa38] sm:$0xff]
  %v851 = vld [vmem:[%s2 + $0xa40] sm:$0xf]
  %v852 = vld [vmem:[%s2 + $0xa44] sm:$0xff]
  %v853 = vld [vmem:[%s2 + $0xa4c] sm:$0xf]
  %v854 = vld [vmem:[%s2 + $0xa50] sm:$0xff]
  %v855 = vld [vmem:[%s2 + $0xa58] sm:$0xf]
  %v856 = vld [vmem:[%s2 + $0xa5c] sm:$0xff]
  %v857 = vld [vmem:[%s2 + $0xa64] sm:$0xf]
  %v858 = vld [vmem:[%s2 + $0xa68] sm:$0xff]
  %v859 = vld [vmem:[%s2 + $0xa70] sm:$0xf]
  %v860 = vld [vmem:[%s2 + $0xa74] sm:$0xff]
  %v861 = vld [vmem:[%s2 + $0xa7c] sm:$0xf]
  %v862 = vld [vmem:[%s2 + $0xa80] sm:$0xff]
  %v863 = vld [vmem:[%s2 + $0xa88] sm:$0xf]
  %v864 = vld [vmem:[%s2 + $0xa8c] sm:$0xff]
  %v865 = vld [vmem:[%s2 + $0xa94] sm:$0xf]
  %v866 = vld [vmem:[%s2 + $0xa98] sm:$0xff]
  %v867 = vld [vmem:[%s2 + $0xaa0] sm:$0xf]
  %v868 = vld [vmem:[%s2 + $0xaa4] sm:$0xff]
  %v869 = vld [vmem:[%s2 + $0xaac] sm:$0xf]
  %v870 = vld [vmem:[%s2 + $0xab0] sm:$0xff]
  %v871 = vld [vmem:[%s2 + $0xab8] sm:$0xf]
  %v872 = vld [vmem:[%s2 + $0xabc] sm:$0xff]
  %v873 = vld [vmem:[%s2 + $0xac4] sm:$0xf]
  %v874 = vld [vmem:[%s2 + $0xac8] sm:$0xff]
  %v875 = vld [vmem:[%s2 + $0xad0] sm:$0xf]
  %v876 = vld [vmem:[%s2 + $0xad4] sm:$0xff]
  %v877 = vld [vmem:[%s2 + $0xadc] sm:$0xf]
  %v878 = vld [vmem:[%s2 + $0xae0] sm:$0xff]
  %v879 = vld [vmem:[%s2 + $0xae8] sm:$0xf]
  %v880 = vld [vmem:[%s2 + $0xaec] sm:$0xff]
  %v881 = vld [vmem:[%s2 + $0xaf4] sm:$0xf]
  %v882 = vld [vmem:[%s2 + $0xaf8] sm:$0xff]
  %v883 = vld [vmem:[%s2 + $0xb00] sm:$0xf]
  %v884 = vld [vmem:[%s2 + $0xb04] sm:$0xff]
  %v885 = vld [vmem:[%s2 + $0xb0c] sm:$0xf]
  %v886 = vld [vmem:[%s2 + $0xb10] sm:$0xff]
  %v887 = vld [vmem:[%s2 + $0xb18] sm:$0xf]
  %v888 = vld [vmem:[%s2 + $0xb1c] sm:$0xff]
  %v889 = vld [vmem:[%s2 + $0xb24] sm:$0xf]
  %v890 = vld [vmem:[%s2 + $0xb28] sm:$0xff]
  %v891 = vld [vmem:[%s2 + $0xb30] sm:$0xf]
  %v892 = vld [vmem:[%s2 + $0xb34] sm:$0xff]
  %v893 = vld [vmem:[%s2 + $0xb3c] sm:$0xf]
  %v894 = vld [vmem:[%s2 + $0xb40] sm:$0xff]
  %v895 = vld [vmem:[%s2 + $0xb48] sm:$0xf]
  %v896 = vld [vmem:[%s2 + $0xb4c] sm:$0xff]
  %v897 = vld [vmem:[%s2 + $0xb54] sm:$0xf]
  %v898 = vld [vmem:[%s2 + $0xb58] sm:$0xff]
  %v899 = vld [vmem:[%s2 + $0xb60] sm:$0xf]
  %v900 = vld [vmem:[%s2 + $0xb64] sm:$0xff]
  %v901 = vld [vmem:[%s2 + $0xb6c] sm:$0xf]
  %v902 = vld [vmem:[%s2 + $0xb70] sm:$0xff]
  %v903 = vld [vmem:[%s2 + $0xb78] sm:$0xf]
  %v904 = vld [vmem:[%s2 + $0xb7c] sm:$0xff]
  %v905 = vld [vmem:[%s2 + $0xb84] sm:$0xf]
  %v906 = vld [vmem:[%s2 + $0xb88] sm:$0xff]
  %v907 = vld [vmem:[%s2 + $0xb90] sm:$0xf]
  %v908 = vld [vmem:[%s2 + $0xb94] sm:$0xff]
  %v909 = vld [vmem:[%s2 + $0xb9c] sm:$0xf]
  %v910 = vld [vmem:[%s2 + $0xba0] sm:$0xff]
  %v911 = vld [vmem:[%s2 + $0xba8] sm:$0xf]
  %v912 = vld [vmem:[%s2 + $0xbac] sm:$0xff]
  %v913 = vld [vmem:[%s2 + $0xbb4] sm:$0xf]
  %v914 = vld [vmem:[%s2 + $0xbb8] sm:$0xff]
  %v915 = vld [vmem:[%s2 + $0xbc0] sm:$0xf]
  %v916 = vld [vmem:[%s2 + $0xbc4] sm:$0xff]
  %v917 = vld [vmem:[%s2 + $0xbcc] sm:$0xf]
  %v918 = vld [vmem:[%s2 + $0xbd0] sm:$0xff]
  %v919 = vld [vmem:[%s2 + $0xbd8] sm:$0xf]
  %v920 = vld [vmem:[%s2 + $0xbdc] sm:$0xff]
  %v921 = vld [vmem:[%s2 + $0xbe4] sm:$0xf]
  %v922 = vld [vmem:[%s2 + $0xbe8] sm:$0xff]
  %v923 = vld [vmem:[%s2 + $0xbf0] sm:$0xf]
  %v924 = vld [vmem:[%s2 + $0xbf4] sm:$0xff]
  %v925 = vld [vmem:[%s2 + $0xbfc] sm:$0xf]
  %v926 = vld [vmem:[%s2 + $0xc00] sm:$0xff]
  %v927 = vld [vmem:[%s2 + $0xc08] sm:$0xf]
  %v928 = vld [vmem:[%s2 + $0xc0c] sm:$0xff]
  %v929 = vld [vmem:[%s2 + $0xc14] sm:$0xf]
  %v1446 = vunpack.c.l.b16 %v414
  %v1447 = vunpack.c.h.b16 %v414
  %v1448 = vunpack.c.l.b16 %v415
  %v1449 = vunpack.c.l.b16 %v416
  %v1450 = vunpack.c.h.b16 %v416
  %v1451 = vunpack.c.l.b16 %v417
  %v1452 = vunpack.c.l.b16 %v418
  %v1453 = vunpack.c.h.b16 %v418
  %v1454 = vunpack.c.l.b16 %v419
  %v1455 = vunpack.c.l.b16 %v420
  %v1456 = vunpack.c.h.b16 %v420
  %v1457 = vunpack.c.l.b16 %v421
  %v1458 = vunpack.c.l.b16 %v422
  %v1459 = vunpack.c.h.b16 %v422
  %v1460 = vunpack.c.l.b16 %v423
  %v1461 = vunpack.c.l.b16 %v424
  %v1462 = vunpack.c.h.b16 %v424
  %v1463 = vunpack.c.l.b16 %v425
  %v1464 = vunpack.c.l.b16 %v426
  %v1465 = vunpack.c.h.b16 %v426
  %v1466 = vunpack.c.l.b16 %v427
  %v1467 = vunpack.c.l.b16 %v428
  %v1468 = vunpack.c.h.b16 %v428
  %v1469 = vunpack.c.l.b16 %v429
  %v1470 = vunpack.c.l.b16 %v430
  %v1471 = vunpack.c.h.b16 %v430
  %v1472 = vunpack.c.l.b16 %v431
  %v1473 = vunpack.c.l.b16 %v432
  %v1474 = vunpack.c.h.b16 %v432
  %v1475 = vunpack.c.l.b16 %v433
  %v1476 = vunpack.c.l.b16 %v434
  %v1477 = vunpack.c.h.b16 %v434
  %v1478 = vunpack.c.l.b16 %v435
  %v1479 = vunpack.c.l.b16 %v436
  %v1480 = vunpack.c.h.b16 %v436
  %v1481 = vunpack.c.l.b16 %v437
  %v1482 = vunpack.c.l.b16 %v438
  %v1483 = vunpack.c.h.b16 %v438
  %v1484 = vunpack.c.l.b16 %v439
  %v1485 = vunpack.c.l.b16 %v440
  %v1486 = vunpack.c.h.b16 %v440
  %v1487 = vunpack.c.l.b16 %v441
  %v1488 = vunpack.c.l.b16 %v442
  %v1489 = vunpack.c.h.b16 %v442
  %v1490 = vunpack.c.l.b16 %v443
  %v1491 = vunpack.c.l.b16 %v444
  %v1492 = vunpack.c.h.b16 %v444
  %v1493 = vunpack.c.l.b16 %v445
  %v1494 = vunpack.c.l.b16 %v446
  %v1495 = vunpack.c.h.b16 %v446
  %v1496 = vunpack.c.l.b16 %v447
  %v1497 = vunpack.c.l.b16 %v448
  %v1498 = vunpack.c.h.b16 %v448
  %v1499 = vunpack.c.l.b16 %v449
  %v1500 = vunpack.c.l.b16 %v450
  %v1501 = vunpack.c.h.b16 %v450
  %v1502 = vunpack.c.l.b16 %v451
  %v1503 = vunpack.c.l.b16 %v452
  %v1504 = vunpack.c.h.b16 %v452
  %v1505 = vunpack.c.l.b16 %v453
  %v1506 = vunpack.c.l.b16 %v454
  %v1507 = vunpack.c.h.b16 %v454
  %v1508 = vunpack.c.l.b16 %v455
  %v1509 = vunpack.c.l.b16 %v456
  %v1510 = vunpack.c.h.b16 %v456
  %v1511 = vunpack.c.l.b16 %v457
  %v1512 = vunpack.c.l.b16 %v458
  %v1513 = vunpack.c.h.b16 %v458
  %v1514 = vunpack.c.l.b16 %v459
  %v1515 = vunpack.c.l.b16 %v460
  %v1516 = vunpack.c.h.b16 %v460
  %v1517 = vunpack.c.l.b16 %v461
  %v1518 = vunpack.c.l.b16 %v462
  %v1519 = vunpack.c.h.b16 %v462
  %v1520 = vunpack.c.l.b16 %v463
  %v1521 = vunpack.c.l.b16 %v464
  %v1522 = vunpack.c.h.b16 %v464
  %v1523 = vunpack.c.l.b16 %v465
  %v1524 = vunpack.c.l.b16 %v466
  %v1525 = vunpack.c.h.b16 %v466
  %v1526 = vunpack.c.l.b16 %v467
  %v1527 = vunpack.c.l.b16 %v468
  %v1528 = vunpack.c.h.b16 %v468
  %v1529 = vunpack.c.l.b16 %v469
  %v1530 = vunpack.c.l.b16 %v470
  %v1531 = vunpack.c.h.b16 %v470
  %v1532 = vunpack.c.l.b16 %v471
  %v1533 = vunpack.c.l.b16 %v472
  %v1534 = vunpack.c.h.b16 %v472
  %v1535 = vunpack.c.l.b16 %v473
  %v1536 = vunpack.c.l.b16 %v474
  %v1537 = vunpack.c.h.b16 %v474
  %v1538 = vunpack.c.l.b16 %v475
  %v1539 = vunpack.c.l.b16 %v476
  %v1540 = vunpack.c.h.b16 %v476
  %v1541 = vunpack.c.l.b16 %v477
  %v1542 = vunpack.c.l.b16 %v478
  %v1543 = vunpack.c.h.b16 %v478
  %v1544 = vunpack.c.l.b16 %v479
  %v1545 = vunpack.c.l.b16 %v480
  %v1546 = vunpack.c.h.b16 %v480
  %v1547 = vunpack.c.l.b16 %v481
  %v1548 = vunpack.c.l.b16 %v482
  %v1549 = vunpack.c.h.b16 %v482
  %v1550 = vunpack.c.l.b16 %v483
  %v1551 = vunpack.c.l.b16 %v484
  %v1552 = vunpack.c.h.b16 %v484
  %v1553 = vunpack.c.l.b16 %v485
  %v1554 = vunpack.c.l.b16 %v486
  %v1555 = vunpack.c.h.b16 %v486
  %v1556 = vunpack.c.l.b16 %v487
  %v1557 = vunpack.c.l.b16 %v488
  %v1558 = vunpack.c.h.b16 %v488
  %v1559 = vunpack.c.l.b16 %v489
  %v1560 = vunpack.c.l.b16 %v490
  %v1561 = vunpack.c.h.b16 %v490
  %v1562 = vunpack.c.l.b16 %v491
  %v1563 = vunpack.c.l.b16 %v492
  %v1564 = vunpack.c.h.b16 %v492
  %v1565 = vunpack.c.l.b16 %v493
  %v1566 = vunpack.c.l.b16 %v494
  %v1567 = vunpack.c.h.b16 %v494
  %v1568 = vunpack.c.l.b16 %v495
  %v1569 = vunpack.c.l.b16 %v496
  %v1570 = vunpack.c.h.b16 %v496
  %v1571 = vunpack.c.l.b16 %v497
  %v1572 = vunpack.c.l.b16 %v498
  %v1573 = vunpack.c.h.b16 %v498
  %v1574 = vunpack.c.l.b16 %v499
  %v1575 = vunpack.c.l.b16 %v500
  %v1576 = vunpack.c.h.b16 %v500
  %v1577 = vunpack.c.l.b16 %v501
  %v1578 = vunpack.c.l.b16 %v502
  %v1579 = vunpack.c.h.b16 %v502
  %v1580 = vunpack.c.l.b16 %v503
  %v1581 = vunpack.c.l.b16 %v504
  %v1582 = vunpack.c.h.b16 %v504
  %v1583 = vunpack.c.l.b16 %v505
  %v1584 = vunpack.c.l.b16 %v506
  %v1585 = vunpack.c.h.b16 %v506
  %v1586 = vunpack.c.l.b16 %v507
  %v1587 = vunpack.c.l.b16 %v508
  %v1588 = vunpack.c.h.b16 %v508
  %v1589 = vunpack.c.l.b16 %v509
  %v1590 = vunpack.c.l.b16 %v510
  %v1591 = vunpack.c.h.b16 %v510
  %v1592 = vunpack.c.l.b16 %v511
  %v1593 = vunpack.c.l.b16 %v512
  %v1594 = vunpack.c.h.b16 %v512
  %v1595 = vunpack.c.l.b16 %v513
  %v1596 = vunpack.c.l.b16 %v514
  %v1597 = vunpack.c.h.b16 %v514
  %v1598 = vunpack.c.l.b16 %v515
  %v1599 = vunpack.c.l.b16 %v516
  %v1600 = vunpack.c.h.b16 %v516
  %v1601 = vunpack.c.l.b16 %v517
  %v1602 = vunpack.c.l.b16 %v518
  %v1603 = vunpack.c.h.b16 %v518
  %v1604 = vunpack.c.l.b16 %v519
  %v1605 = vunpack.c.l.b16 %v520
  %v1606 = vunpack.c.h.b16 %v520
  %v1607 = vunpack.c.l.b16 %v521
  %v1608 = vunpack.c.l.b16 %v522
  %v1609 = vunpack.c.h.b16 %v522
  %v1610 = vunpack.c.l.b16 %v523
  %v1611 = vunpack.c.l.b16 %v524
  %v1612 = vunpack.c.h.b16 %v524
  %v1613 = vunpack.c.l.b16 %v525
  %v1614 = vunpack.c.l.b16 %v526
  %v1615 = vunpack.c.h.b16 %v526
  %v1616 = vunpack.c.l.b16 %v527
  %v1617 = vunpack.c.l.b16 %v528
  %v1618 = vunpack.c.h.b16 %v528
  %v1619 = vunpack.c.l.b16 %v529
  %v1620 = vunpack.c.l.b16 %v530
  %v1621 = vunpack.c.h.b16 %v530
  %v1622 = vunpack.c.l.b16 %v531
  %v1623 = vunpack.c.l.b16 %v532
  %v1624 = vunpack.c.h.b16 %v532
  %v1625 = vunpack.c.l.b16 %v533
  %v1626 = vunpack.c.l.b16 %v534
  %v1627 = vunpack.c.h.b16 %v534
  %v1628 = vunpack.c.l.b16 %v535
  %v1629 = vunpack.c.l.b16 %v536
  %v1630 = vunpack.c.h.b16 %v536
  %v1631 = vunpack.c.l.b16 %v537
  %v1632 = vunpack.c.l.b16 %v538
  %v1633 = vunpack.c.h.b16 %v538
  %v1634 = vunpack.c.l.b16 %v539
  %v1635 = vunpack.c.l.b16 %v540
  %v1636 = vunpack.c.h.b16 %v540
  %v1637 = vunpack.c.l.b16 %v541
  %v1638 = vunpack.c.l.b16 %v542
  %v1639 = vunpack.c.h.b16 %v542
  %v1640 = vunpack.c.l.b16 %v543
  %v1641 = vunpack.c.l.b16 %v544
  %v1642 = vunpack.c.h.b16 %v544
  %v1643 = vunpack.c.l.b16 %v545
  %v1644 = vunpack.c.l.b16 %v546
  %v1645 = vunpack.c.h.b16 %v546
  %v1646 = vunpack.c.l.b16 %v547
  %v1647 = vunpack.c.l.b16 %v548
  %v1648 = vunpack.c.h.b16 %v548
  %v1649 = vunpack.c.l.b16 %v549
  %v1650 = vunpack.c.l.b16 %v550
  %v1651 = vunpack.c.h.b16 %v550
  %v1652 = vunpack.c.l.b16 %v551
  %v1653 = vunpack.c.l.b16 %v552
  %v1654 = vunpack.c.h.b16 %v552
  %v1655 = vunpack.c.l.b16 %v553
  %v1656 = vunpack.c.l.b16 %v554
  %v1657 = vunpack.c.h.b16 %v554
  %v1658 = vunpack.c.l.b16 %v555
  %v1659 = vunpack.c.l.b16 %v556
  %v1660 = vunpack.c.h.b16 %v556
  %v1661 = vunpack.c.l.b16 %v557
  %v1662 = vunpack.c.l.b16 %v558
  %v1663 = vunpack.c.h.b16 %v558
  %v1664 = vunpack.c.l.b16 %v559
  %v1665 = vunpack.c.l.b16 %v560
  %v1666 = vunpack.c.h.b16 %v560
  %v1667 = vunpack.c.l.b16 %v561
  %v1668 = vunpack.c.l.b16 %v562
  %v1669 = vunpack.c.h.b16 %v562
  %v1670 = vunpack.c.l.b16 %v563
  %v1671 = vunpack.c.l.b16 %v564
  %v1672 = vunpack.c.h.b16 %v564
  %v1673 = vunpack.c.l.b16 %v565
  %v1674 = vunpack.c.l.b16 %v566
  %v1675 = vunpack.c.h.b16 %v566
  %v1676 = vunpack.c.l.b16 %v567
  %v1677 = vunpack.c.l.b16 %v568
  %v1678 = vunpack.c.h.b16 %v568
  %v1679 = vunpack.c.l.b16 %v569
  %v1680 = vunpack.c.l.b16 %v570
  %v1681 = vunpack.c.h.b16 %v570
  %v1682 = vunpack.c.l.b16 %v571
  %v1683 = vunpack.c.l.b16 %v572
  %v1684 = vunpack.c.h.b16 %v572
  %v1685 = vunpack.c.l.b16 %v573
  %v1686 = vunpack.c.l.b16 %v574
  %v1687 = vunpack.c.h.b16 %v574
  %v1688 = vunpack.c.l.b16 %v575
  %v1689 = vunpack.c.l.b16 %v576
  %v1690 = vunpack.c.h.b16 %v576
  %v1691 = vunpack.c.l.b16 %v577
  %v1692 = vunpack.c.l.b16 %v578
  %v1693 = vunpack.c.h.b16 %v578
  %v1694 = vunpack.c.l.b16 %v579
  %v1695 = vunpack.c.l.b16 %v580
  %v1696 = vunpack.c.h.b16 %v580
  %v1697 = vunpack.c.l.b16 %v581
  %v1698 = vunpack.c.l.b16 %v582
  %v1699 = vunpack.c.h.b16 %v582
  %v1700 = vunpack.c.l.b16 %v583
  %v1701 = vunpack.c.l.b16 %v584
  %v1702 = vunpack.c.h.b16 %v584
  %v1703 = vunpack.c.l.b16 %v585
  %v1704 = vunpack.c.l.b16 %v586
  %v1705 = vunpack.c.h.b16 %v586
  %v1706 = vunpack.c.l.b16 %v587
  %v1707 = vunpack.c.l.b16 %v588
  %v1708 = vunpack.c.h.b16 %v588
  %v1709 = vunpack.c.l.b16 %v589
  %v1710 = vunpack.c.l.b16 %v590
  %v1711 = vunpack.c.h.b16 %v590
  %v1712 = vunpack.c.l.b16 %v591
  %v1713 = vunpack.c.l.b16 %v592
  %v1714 = vunpack.c.h.b16 %v592
  %v1715 = vunpack.c.l.b16 %v593
  %v1716 = vunpack.c.l.b16 %v594
  %v1717 = vunpack.c.h.b16 %v594
  %v1718 = vunpack.c.l.b16 %v595
  %v1719 = vunpack.c.l.b16 %v596
  %v1720 = vunpack.c.h.b16 %v596
  %v1721 = vunpack.c.l.b16 %v597
  %v1722 = vunpack.c.l.b16 %v598
  %v1723 = vunpack.c.h.b16 %v598
  %v1724 = vunpack.c.l.b16 %v599
  %v1725 = vunpack.c.l.b16 %v600
  %v1726 = vunpack.c.h.b16 %v600
  %v1727 = vunpack.c.l.b16 %v601
  %v1728 = vunpack.c.l.b16 %v602
  %v1729 = vunpack.c.h.b16 %v602
  %v1730 = vunpack.c.l.b16 %v603
  %v1731 = vunpack.c.l.b16 %v604
  %v1732 = vunpack.c.h.b16 %v604
  %v1733 = vunpack.c.l.b16 %v605
  %v1734 = vunpack.c.l.b16 %v606
  %v1735 = vunpack.c.h.b16 %v606
  %v1736 = vunpack.c.l.b16 %v607
  %v1737 = vunpack.c.l.b16 %v608
  %v1738 = vunpack.c.h.b16 %v608
  %v1739 = vunpack.c.l.b16 %v609
  %v1740 = vunpack.c.l.b16 %v610
  %v1741 = vunpack.c.h.b16 %v610
  %v1742 = vunpack.c.l.b16 %v611
  %v1743 = vunpack.c.l.b16 %v612
  %v1744 = vunpack.c.h.b16 %v612
  %v1745 = vunpack.c.l.b16 %v613
  %v1746 = vunpack.c.l.b16 %v614
  %v1747 = vunpack.c.h.b16 %v614
  %v1748 = vunpack.c.l.b16 %v615
  %v1749 = vunpack.c.l.b16 %v616
  %v1750 = vunpack.c.h.b16 %v616
  %v1751 = vunpack.c.l.b16 %v617
  %v1752 = vunpack.c.l.b16 %v618
  %v1753 = vunpack.c.h.b16 %v618
  %v1754 = vunpack.c.l.b16 %v619
  %v1755 = vunpack.c.l.b16 %v620
  %v1756 = vunpack.c.h.b16 %v620
  %v1757 = vunpack.c.l.b16 %v621
  %v1758 = vunpack.c.l.b16 %v622
  %v1759 = vunpack.c.h.b16 %v622
  %v1760 = vunpack.c.l.b16 %v623
  %v1761 = vunpack.c.l.b16 %v624
  %v1762 = vunpack.c.h.b16 %v624
  %v1763 = vunpack.c.l.b16 %v625
  %v1764 = vunpack.c.l.b16 %v626
  %v1765 = vunpack.c.h.b16 %v626
  %v1766 = vunpack.c.l.b16 %v627
  %v1767 = vunpack.c.l.b16 %v628
  %v1768 = vunpack.c.h.b16 %v628
  %v1769 = vunpack.c.l.b16 %v629
  %v1770 = vunpack.c.l.b16 %v630
  %v1771 = vunpack.c.h.b16 %v630
  %v1772 = vunpack.c.l.b16 %v631
  %v1773 = vunpack.c.l.b16 %v632
  %v1774 = vunpack.c.h.b16 %v632
  %v1775 = vunpack.c.l.b16 %v633
  %v1776 = vunpack.c.l.b16 %v634
  %v1777 = vunpack.c.h.b16 %v634
  %v1778 = vunpack.c.l.b16 %v635
  %v1779 = vunpack.c.l.b16 %v636
  %v1780 = vunpack.c.h.b16 %v636
  %v1781 = vunpack.c.l.b16 %v637
  %v1782 = vunpack.c.l.b16 %v638
  %v1783 = vunpack.c.h.b16 %v638
  %v1784 = vunpack.c.l.b16 %v639
  %v1785 = vunpack.c.l.b16 %v640
  %v1786 = vunpack.c.h.b16 %v640
  %v1787 = vunpack.c.l.b16 %v641
  %v1788 = vunpack.c.l.b16 %v642
  %v1789 = vunpack.c.h.b16 %v642
  %v1790 = vunpack.c.l.b16 %v643
  %v1791 = vunpack.c.l.b16 %v644
  %v1792 = vunpack.c.h.b16 %v644
  %v1793 = vunpack.c.l.b16 %v645
  %v1794 = vunpack.c.l.b16 %v646
  %v1795 = vunpack.c.h.b16 %v646
  %v1796 = vunpack.c.l.b16 %v647
  %v1797 = vunpack.c.l.b16 %v648
  %v1798 = vunpack.c.h.b16 %v648
  %v1799 = vunpack.c.l.b16 %v649
  %v1800 = vunpack.c.l.b16 %v650
  %v1801 = vunpack.c.h.b16 %v650
  %v1802 = vunpack.c.l.b16 %v651
  %v1803 = vunpack.c.l.b16 %v652
  %v1804 = vunpack.c.h.b16 %v652
  %v1805 = vunpack.c.l.b16 %v653
  %v1806 = vunpack.c.l.b16 %v654
  %v1807 = vunpack.c.h.b16 %v654
  %v1808 = vunpack.c.l.b16 %v655
  %v1809 = vunpack.c.l.b16 %v656
  %v1810 = vunpack.c.h.b16 %v656
  %v1811 = vunpack.c.l.b16 %v657
  %v1812 = vunpack.c.l.b16 %v658
  %v1813 = vunpack.c.h.b16 %v658
  %v1814 = vunpack.c.l.b16 %v659
  %v1815 = vunpack.c.l.b16 %v660
  %v1816 = vunpack.c.h.b16 %v660
  %v1817 = vunpack.c.l.b16 %v661
  %v1818 = vunpack.c.l.b16 %v662
  %v1819 = vunpack.c.h.b16 %v662
  %v1820 = vunpack.c.l.b16 %v663
  %v1821 = vunpack.c.l.b16 %v664
  %v1822 = vunpack.c.h.b16 %v664
  %v1823 = vunpack.c.l.b16 %v665
  %v1824 = vunpack.c.l.b16 %v666
  %v1825 = vunpack.c.h.b16 %v666
  %v1826 = vunpack.c.l.b16 %v667
  %v1827 = vunpack.c.l.b16 %v668
  %v1828 = vunpack.c.h.b16 %v668
  %v1829 = vunpack.c.l.b16 %v669
  %v1830 = vunpack.c.l.b16 %v670
  %v1831 = vunpack.c.h.b16 %v670
  %v1832 = vunpack.c.l.b16 %v671
  %v1833 = vunpack.c.l.b16 %v672
  %v1834 = vunpack.c.h.b16 %v672
  %v1835 = vunpack.c.l.b16 %v673
  %v1836 = vunpack.c.l.b16 %v674
  %v1837 = vunpack.c.h.b16 %v674
  %v1838 = vunpack.c.l.b16 %v675
  %v1839 = vunpack.c.l.b16 %v676
  %v1840 = vunpack.c.h.b16 %v676
  %v1841 = vunpack.c.l.b16 %v677
  %v1842 = vunpack.c.l.b16 %v678
  %v1843 = vunpack.c.h.b16 %v678
  %v1844 = vunpack.c.l.b16 %v679
  %v1845 = vunpack.c.l.b16 %v680
  %v1846 = vunpack.c.h.b16 %v680
  %v1847 = vunpack.c.l.b16 %v681
  %v1848 = vunpack.c.l.b16 %v682
  %v1849 = vunpack.c.h.b16 %v682
  %v1850 = vunpack.c.l.b16 %v683
  %v1851 = vunpack.c.l.b16 %v684
  %v1852 = vunpack.c.h.b16 %v684
  %v1853 = vunpack.c.l.b16 %v685
  %v1854 = vunpack.c.l.b16 %v686
  %v1855 = vunpack.c.h.b16 %v686
  %v1856 = vunpack.c.l.b16 %v687
  %v1857 = vunpack.c.l.b16 %v688
  %v1858 = vunpack.c.h.b16 %v688
  %v1859 = vunpack.c.l.b16 %v689
  %v1860 = vunpack.c.l.b16 %v690
  %v1861 = vunpack.c.h.b16 %v690
  %v1862 = vunpack.c.l.b16 %v691
  %v1863 = vunpack.c.l.b16 %v692
  %v1864 = vunpack.c.h.b16 %v692
  %v1865 = vunpack.c.l.b16 %v693
  %v1866 = vunpack.c.l.b16 %v694
  %v1867 = vunpack.c.h.b16 %v694
  %v1868 = vunpack.c.l.b16 %v695
  %v1869 = vunpack.c.l.b16 %v696
  %v1870 = vunpack.c.h.b16 %v696
  %v1871 = vunpack.c.l.b16 %v697
  %v1872 = vunpack.c.l.b16 %v698
  %v1873 = vunpack.c.h.b16 %v698
  %v1874 = vunpack.c.l.b16 %v699
  %v1875 = vunpack.c.l.b16 %v700
  %v1876 = vunpack.c.h.b16 %v700
  %v1877 = vunpack.c.l.b16 %v701
  %v1878 = vunpack.c.l.b16 %v702
  %v1879 = vunpack.c.h.b16 %v702
  %v1880 = vunpack.c.l.b16 %v703
  %v1881 = vunpack.c.l.b16 %v704
  %v1882 = vunpack.c.h.b16 %v704
  %v1883 = vunpack.c.l.b16 %v705
  %v1884 = vunpack.c.l.b16 %v706
  %v1885 = vunpack.c.h.b16 %v706
  %v1886 = vunpack.c.l.b16 %v707
  %v1887 = vunpack.c.l.b16 %v708
  %v1888 = vunpack.c.h.b16 %v708
  %v1889 = vunpack.c.l.b16 %v709
  %v1890 = vunpack.c.l.b16 %v710
  %v1891 = vunpack.c.h.b16 %v710
  %v1892 = vunpack.c.l.b16 %v711
  %v1893 = vunpack.c.l.b16 %v712
  %v1894 = vunpack.c.h.b16 %v712
  %v1895 = vunpack.c.l.b16 %v713
  %v1896 = vunpack.c.l.b16 %v714
  %v1897 = vunpack.c.h.b16 %v714
  %v1898 = vunpack.c.l.b16 %v715
  %v1899 = vunpack.c.l.b16 %v716
  %v1900 = vunpack.c.h.b16 %v716
  %v1901 = vunpack.c.l.b16 %v717
  %v1902 = vunpack.c.l.b16 %v718
  %v1903 = vunpack.c.h.b16 %v718
  %v1904 = vunpack.c.l.b16 %v719
  %v1905 = vunpack.c.l.b16 %v720
  %v1906 = vunpack.c.h.b16 %v720
  %v1907 = vunpack.c.l.b16 %v721
  %v1908 = vunpack.c.l.b16 %v722
  %v1909 = vunpack.c.h.b16 %v722
  %v1910 = vunpack.c.l.b16 %v723
  %v1911 = vunpack.c.l.b16 %v724
  %v1912 = vunpack.c.h.b16 %v724
  %v1913 = vunpack.c.l.b16 %v725
  %v1914 = vunpack.c.l.b16 %v726
  %v1915 = vunpack.c.h.b16 %v726
  %v1916 = vunpack.c.l.b16 %v727
  %v1917 = vunpack.c.l.b16 %v728
  %v1918 = vunpack.c.h.b16 %v728
  %v1919 = vunpack.c.l.b16 %v729
  %v1920 = vunpack.c.l.b16 %v730
  %v1921 = vunpack.c.h.b16 %v730
  %v1922 = vunpack.c.l.b16 %v731
  %v1923 = vunpack.c.l.b16 %v732
  %v1924 = vunpack.c.h.b16 %v732
  %v1925 = vunpack.c.l.b16 %v733
  %v1926 = vunpack.c.l.b16 %v734
  %v1927 = vunpack.c.h.b16 %v734
  %v1928 = vunpack.c.l.b16 %v735
  %v1929 = vunpack.c.l.b16 %v736
  %v1930 = vunpack.c.h.b16 %v736
  %v1931 = vunpack.c.l.b16 %v737
  %v1932 = vunpack.c.l.b16 %v738
  %v1933 = vunpack.c.h.b16 %v738
  %v1934 = vunpack.c.l.b16 %v739
  %v1935 = vunpack.c.l.b16 %v740
  %v1936 = vunpack.c.h.b16 %v740
  %v1937 = vunpack.c.l.b16 %v741
  %v1938 = vunpack.c.l.b16 %v742
  %v1939 = vunpack.c.h.b16 %v742
  %v1940 = vunpack.c.l.b16 %v743
  %v1941 = vunpack.c.l.b16 %v744
  %v1942 = vunpack.c.h.b16 %v744
  %v1943 = vunpack.c.l.b16 %v745
  %v1944 = vunpack.c.l.b16 %v746
  %v1945 = vunpack.c.h.b16 %v746
  %v1946 = vunpack.c.l.b16 %v747
  %v1947 = vunpack.c.l.b16 %v748
  %v1948 = vunpack.c.h.b16 %v748
  %v1949 = vunpack.c.l.b16 %v749
  %v1950 = vunpack.c.l.b16 %v750
  %v1951 = vunpack.c.h.b16 %v750
  %v1952 = vunpack.c.l.b16 %v751
  %v1953 = vunpack.c.l.b16 %v752
  %v1954 = vunpack.c.h.b16 %v752
  %v1955 = vunpack.c.l.b16 %v753
  %v1956 = vunpack.c.l.b16 %v754
  %v1957 = vunpack.c.h.b16 %v754
  %v1958 = vunpack.c.l.b16 %v755
  %v1959 = vunpack.c.l.b16 %v756
  %v1960 = vunpack.c.h.b16 %v756
  %v1961 = vunpack.c.l.b16 %v757
  %v1962 = vunpack.c.l.b16 %v758
  %v1963 = vunpack.c.h.b16 %v758
  %v1964 = vunpack.c.l.b16 %v759
  %v1965 = vunpack.c.l.b16 %v760
  %v1966 = vunpack.c.h.b16 %v760
  %v1967 = vunpack.c.l.b16 %v761
  %v1968 = vunpack.c.l.b16 %v762
  %v1969 = vunpack.c.h.b16 %v762
  %v1970 = vunpack.c.l.b16 %v763
  %v1971 = vunpack.c.l.b16 %v764
  %v1972 = vunpack.c.h.b16 %v764
  %v1973 = vunpack.c.l.b16 %v765
  %v1974 = vunpack.c.l.b16 %v766
  %v1975 = vunpack.c.h.b16 %v766
  %v1976 = vunpack.c.l.b16 %v767
  %v1977 = vunpack.c.l.b16 %v768
  %v1978 = vunpack.c.h.b16 %v768
  %v1979 = vunpack.c.l.b16 %v769
  %v1980 = vunpack.c.l.b16 %v770
  %v1981 = vunpack.c.h.b16 %v770
  %v1982 = vunpack.c.l.b16 %v771
  %v1983 = vunpack.c.l.b16 %v772
  %v1984 = vunpack.c.h.b16 %v772
  %v1985 = vunpack.c.l.b16 %v773
  %v1986 = vunpack.c.l.b16 %v774
  %v1987 = vunpack.c.h.b16 %v774
  %v1988 = vunpack.c.l.b16 %v775
  %v1989 = vunpack.c.l.b16 %v776
  %v1990 = vunpack.c.h.b16 %v776
  %v1991 = vunpack.c.l.b16 %v777
  %v1992 = vunpack.c.l.b16 %v778
  %v1993 = vunpack.c.h.b16 %v778
  %v1994 = vunpack.c.l.b16 %v779
  %v1995 = vunpack.c.l.b16 %v780
  %v1996 = vunpack.c.h.b16 %v780
  %v1997 = vunpack.c.l.b16 %v781
  %v1998 = vunpack.c.l.b16 %v782
  %v1999 = vunpack.c.h.b16 %v782
  %v2000 = vunpack.c.l.b16 %v783
  %v2001 = vunpack.c.l.b16 %v784
  %v2002 = vunpack.c.h.b16 %v784
  %v2003 = vunpack.c.l.b16 %v785
  %v2004 = vunpack.c.l.b16 %v786
  %v2005 = vunpack.c.h.b16 %v786
  %v2006 = vunpack.c.l.b16 %v787
  %v2007 = vunpack.c.l.b16 %v788
  %v2008 = vunpack.c.h.b16 %v788
  %v2009 = vunpack.c.l.b16 %v789
  %v2010 = vunpack.c.l.b16 %v790
  %v2011 = vunpack.c.h.b16 %v790
  %v2012 = vunpack.c.l.b16 %v791
  %v2013 = vunpack.c.l.b16 %v792
  %v2014 = vunpack.c.h.b16 %v792
  %v2015 = vunpack.c.l.b16 %v793
  %v2016 = vunpack.c.l.b16 %v794
  %v2017 = vunpack.c.h.b16 %v794
  %v2018 = vunpack.c.l.b16 %v795
  %v2019 = vunpack.c.l.b16 %v796
  %v2020 = vunpack.c.h.b16 %v796
  %v2021 = vunpack.c.l.b16 %v797
  %v2022 = vunpack.c.l.b16 %v798
  %v2023 = vunpack.c.h.b16 %v798
  %v2024 = vunpack.c.l.b16 %v799
  %v2025 = vunpack.c.l.b16 %v800
  %v2026 = vunpack.c.h.b16 %v800
  %v2027 = vunpack.c.l.b16 %v801
  %v2028 = vunpack.c.l.b16 %v802
  %v2029 = vunpack.c.h.b16 %v802
  %v2030 = vunpack.c.l.b16 %v803
  %v2031 = vunpack.c.l.b16 %v804
  %v2032 = vunpack.c.h.b16 %v804
  %v2033 = vunpack.c.l.b16 %v805
  %v2034 = vunpack.c.l.b16 %v806
  %v2035 = vunpack.c.h.b16 %v806
  %v2036 = vunpack.c.l.b16 %v807
  %v2037 = vunpack.c.l.b16 %v808
  %v2038 = vunpack.c.h.b16 %v808
  %v2039 = vunpack.c.l.b16 %v809
  %v2040 = vunpack.c.l.b16 %v810
  %v2041 = vunpack.c.h.b16 %v810
  %v2042 = vunpack.c.l.b16 %v811
  %v2043 = vunpack.c.l.b16 %v812
  %v2044 = vunpack.c.h.b16 %v812
  %v2045 = vunpack.c.l.b16 %v813
  %v2046 = vunpack.c.l.b16 %v814
  %v2047 = vunpack.c.h.b16 %v814
  %v2048 = vunpack.c.l.b16 %v815
  %v2049 = vunpack.c.l.b16 %v816
  %v2050 = vunpack.c.h.b16 %v816
  %v2051 = vunpack.c.l.b16 %v817
  %v2052 = vunpack.c.l.b16 %v818
  %v2053 = vunpack.c.h.b16 %v818
  %v2054 = vunpack.c.l.b16 %v819
  %v2055 = vunpack.c.l.b16 %v820
  %v2056 = vunpack.c.h.b16 %v820
  %v2057 = vunpack.c.l.b16 %v821
  %v2058 = vunpack.c.l.b16 %v822
  %v2059 = vunpack.c.h.b16 %v822
  %v2060 = vunpack.c.l.b16 %v823
  %v2061 = vunpack.c.l.b16 %v824
  %v2062 = vunpack.c.h.b16 %v824
  %v2063 = vunpack.c.l.b16 %v825
  %v2064 = vunpack.c.l.b16 %v826
  %v2065 = vunpack.c.h.b16 %v826
  %v2066 = vunpack.c.l.b16 %v827
  %v2067 = vunpack.c.l.b16 %v828
  %v2068 = vunpack.c.h.b16 %v828
  %v2069 = vunpack.c.l.b16 %v829
  %v2070 = vunpack.c.l.b16 %v830
  %v2071 = vunpack.c.h.b16 %v830
  %v2072 = vunpack.c.l.b16 %v831
  %v2073 = vunpack.c.l.b16 %v832
  %v2074 = vunpack.c.h.b16 %v832
  %v2075 = vunpack.c.l.b16 %v833
  %v2076 = vunpack.c.l.b16 %v834
  %v2077 = vunpack.c.h.b16 %v834
  %v2078 = vunpack.c.l.b16 %v835
  %v2079 = vunpack.c.l.b16 %v836
  %v2080 = vunpack.c.h.b16 %v836
  %v2081 = vunpack.c.l.b16 %v837
  %v2082 = vunpack.c.l.b16 %v838
  %v2083 = vunpack.c.h.b16 %v838
  %v2084 = vunpack.c.l.b16 %v839
  %v2085 = vunpack.c.l.b16 %v840
  %v2086 = vunpack.c.h.b16 %v840
  %v2087 = vunpack.c.l.b16 %v841
  %v2088 = vunpack.c.l.b16 %v842
  %v2089 = vunpack.c.h.b16 %v842
  %v2090 = vunpack.c.l.b16 %v843
  %v2091 = vunpack.c.l.b16 %v844
  %v2092 = vunpack.c.h.b16 %v844
  %v2093 = vunpack.c.l.b16 %v845
  %v2094 = vunpack.c.l.b16 %v846
  %v2095 = vunpack.c.h.b16 %v846
  %v2096 = vunpack.c.l.b16 %v847
  %v2097 = vunpack.c.l.b16 %v848
  %v2098 = vunpack.c.h.b16 %v848
  %v2099 = vunpack.c.l.b16 %v849
  %v2100 = vunpack.c.l.b16 %v850
  %v2101 = vunpack.c.h.b16 %v850
  %v2102 = vunpack.c.l.b16 %v851
  %v2103 = vunpack.c.l.b16 %v852
  %v2104 = vunpack.c.h.b16 %v852
  %v2105 = vunpack.c.l.b16 %v853
  %v2106 = vunpack.c.l.b16 %v854
  %v2107 = vunpack.c.h.b16 %v854
  %v2108 = vunpack.c.l.b16 %v855
  %v2109 = vunpack.c.l.b16 %v856
  %v2110 = vunpack.c.h.b16 %v856
  %v2111 = vunpack.c.l.b16 %v857
  %v2112 = vunpack.c.l.b16 %v858
  %v2113 = vunpack.c.h.b16 %v858
  %v2114 = vunpack.c.l.b16 %v859
  %v2115 = vunpack.c.l.b16 %v860
  %v2116 = vunpack.c.h.b16 %v860
  %v2117 = vunpack.c.l.b16 %v861
  %v2118 = vunpack.c.l.b16 %v862
  %v2119 = vunpack.c.h.b16 %v862
  %v2120 = vunpack.c.l.b16 %v863
  %v2121 = vunpack.c.l.b16 %v864
  %v2122 = vunpack.c.h.b16 %v864
  %v2123 = vunpack.c.l.b16 %v865
  %v2124 = vunpack.c.l.b16 %v866
  %v2125 = vunpack.c.h.b16 %v866
  %v2126 = vunpack.c.l.b16 %v867
  %v2127 = vunpack.c.l.b16 %v868
  %v2128 = vunpack.c.h.b16 %v868
  %v2129 = vunpack.c.l.b16 %v869
  %v2130 = vunpack.c.l.b16 %v870
  %v2131 = vunpack.c.h.b16 %v870
  %v2132 = vunpack.c.l.b16 %v871
  %v2133 = vunpack.c.l.b16 %v872
  %v2134 = vunpack.c.h.b16 %v872
  %v2135 = vunpack.c.l.b16 %v873
  %v2136 = vunpack.c.l.b16 %v874
  %v2137 = vunpack.c.h.b16 %v874
  %v2138 = vunpack.c.l.b16 %v875
  %v2139 = vunpack.c.l.b16 %v876
  %v2140 = vunpack.c.h.b16 %v876
  %v2141 = vunpack.c.l.b16 %v877
  %v2142 = vunpack.c.l.b16 %v878
  %v2143 = vunpack.c.h.b16 %v878
  %v2144 = vunpack.c.l.b16 %v879
  %v2145 = vunpack.c.l.b16 %v880
  %v2146 = vunpack.c.h.b16 %v880
  %v2147 = vunpack.c.l.b16 %v881
  %v2148 = vunpack.c.l.b16 %v882
  %v2149 = vunpack.c.h.b16 %v882
  %v2150 = vunpack.c.l.b16 %v883
  %v2151 = vunpack.c.l.b16 %v884
  %v2152 = vunpack.c.h.b16 %v884
  %v2153 = vunpack.c.l.b16 %v885
  %v2154 = vunpack.c.l.b16 %v886
  %v2155 = vunpack.c.h.b16 %v886
  %v2156 = vunpack.c.l.b16 %v887
  %v2157 = vunpack.c.l.b16 %v888
  %v2158 = vunpack.c.h.b16 %v888
  %v2159 = vunpack.c.l.b16 %v889
  %v2160 = vunpack.c.l.b16 %v890
  %v2161 = vunpack.c.h.b16 %v890
  %v2162 = vunpack.c.l.b16 %v891
  %v2163 = vunpack.c.l.b16 %v892
  %v2164 = vunpack.c.h.b16 %v892
  %v2165 = vunpack.c.l.b16 %v893
  %v2166 = vunpack.c.l.b16 %v894
  %v2167 = vunpack.c.h.b16 %v894
  %v2168 = vunpack.c.l.b16 %v895
  %v2169 = vunpack.c.l.b16 %v896
  %v2170 = vunpack.c.h.b16 %v896
  %v2171 = vunpack.c.l.b16 %v897
  %v2172 = vunpack.c.l.b16 %v898
  %v2173 = vunpack.c.h.b16 %v898
  %v2174 = vunpack.c.l.b16 %v899
  %v2175 = vunpack.c.l.b16 %v900
  %v2176 = vunpack.c.h.b16 %v900
  %v2177 = vunpack.c.l.b16 %v901
  %v2178 = vunpack.c.l.b16 %v902
  %v2179 = vunpack.c.h.b16 %v902
  %v2180 = vunpack.c.l.b16 %v903
  %v2181 = vunpack.c.l.b16 %v904
  %v2182 = vunpack.c.h.b16 %v904
  %v2183 = vunpack.c.l.b16 %v905
  %v2184 = vunpack.c.l.b16 %v906
  %v2185 = vunpack.c.h.b16 %v906
  %v2186 = vunpack.c.l.b16 %v907
  %v2187 = vunpack.c.l.b16 %v908
  %v2188 = vunpack.c.h.b16 %v908
  %v2189 = vunpack.c.l.b16 %v909
  %v2190 = vunpack.c.l.b16 %v910
  %v2191 = vunpack.c.h.b16 %v910
  %v2192 = vunpack.c.l.b16 %v911
  %v2193 = vunpack.c.l.b16 %v912
  %v2194 = vunpack.c.h.b16 %v912
  %v2195 = vunpack.c.l.b16 %v913
  %v2196 = vunpack.c.l.b16 %v914
  %v2197 = vunpack.c.h.b16 %v914
  %v2198 = vunpack.c.l.b16 %v915
  %v2199 = vunpack.c.l.b16 %v916
  %v2200 = vunpack.c.h.b16 %v916
  %v2201 = vunpack.c.l.b16 %v917
  %v2202 = vunpack.c.l.b16 %v918
  %v2203 = vunpack.c.h.b16 %v918
  %v2204 = vunpack.c.l.b16 %v919
  %v2205 = vunpack.c.l.b16 %v920
  %v2206 = vunpack.c.h.b16 %v920
  %v2207 = vunpack.c.l.b16 %v921
  %v2208 = vunpack.c.l.b16 %v922
  %v2209 = vunpack.c.h.b16 %v922
  %v2210 = vunpack.c.l.b16 %v923
  %v2211 = vunpack.c.l.b16 %v924
  %v2212 = vunpack.c.h.b16 %v924
  %v2213 = vunpack.c.l.b16 %v925
  %v2214 = vunpack.c.l.b16 %v926
  %v2215 = vunpack.c.h.b16 %v926
  %v2216 = vunpack.c.l.b16 %v927
  %v2217 = vunpack.c.l.b16 %v928
  %v2218 = vunpack.c.h.b16 %v928
  %v2219 = vunpack.c.l.b16 %v929
  %v2220 = vpack.c.b16 %v1449, %v1446
  %v2221 = vpack.c.b16 %v1450, %v1447
  %v2222 = vpack.c.b16 %v1451, %v1448
  %v2223 = vpack.c.b16 %v1455, %v1452
  %v2224 = vpack.c.b16 %v1456, %v1453
  %v2225 = vpack.c.b16 %v1457, %v1454
  %v2226 = vpack.c.b16 %v1461, %v1458
  %v2227 = vpack.c.b16 %v1462, %v1459
  %v2228 = vpack.c.b16 %v1463, %v1460
  %v2229 = vpack.c.b16 %v1467, %v1464
  %v2230 = vpack.c.b16 %v1468, %v1465
  %v2231 = vpack.c.b16 %v1469, %v1466
  %v2232 = vpack.c.b16 %v1473, %v1470
  %v2233 = vpack.c.b16 %v1474, %v1471
  %v2234 = vpack.c.b16 %v1475, %v1472
  %v2235 = vpack.c.b16 %v1479, %v1476
  %v2236 = vpack.c.b16 %v1480, %v1477
  %v2237 = vpack.c.b16 %v1481, %v1478
  %v2238 = vpack.c.b16 %v1485, %v1482
  %v2239 = vpack.c.b16 %v1486, %v1483
  %v2240 = vpack.c.b16 %v1487, %v1484
  %v2241 = vpack.c.b16 %v1491, %v1488
  %v2242 = vpack.c.b16 %v1492, %v1489
  %v2243 = vpack.c.b16 %v1493, %v1490
  %v2244 = vpack.c.b16 %v1497, %v1494
  %v2245 = vpack.c.b16 %v1498, %v1495
  %v2246 = vpack.c.b16 %v1499, %v1496
  %v2247 = vpack.c.b16 %v1503, %v1500
  %v2248 = vpack.c.b16 %v1504, %v1501
  %v2249 = vpack.c.b16 %v1505, %v1502
  %v2250 = vpack.c.b16 %v1509, %v1506
  %v2251 = vpack.c.b16 %v1510, %v1507
  %v2252 = vpack.c.b16 %v1511, %v1508
  %v2253 = vpack.c.b16 %v1515, %v1512
  %v2254 = vpack.c.b16 %v1516, %v1513
  %v2255 = vpack.c.b16 %v1517, %v1514
  %v2256 = vpack.c.b16 %v1521, %v1518
  %v2257 = vpack.c.b16 %v1522, %v1519
  %v2258 = vpack.c.b16 %v1523, %v1520
  %v2259 = vpack.c.b16 %v1527, %v1524
  %v2260 = vpack.c.b16 %v1528, %v1525
  %v2261 = vpack.c.b16 %v1529, %v1526
  %v2262 = vpack.c.b16 %v1533, %v1530
  %v2263 = vpack.c.b16 %v1534, %v1531
  %v2264 = vpack.c.b16 %v1535, %v1532
  %v2265 = vpack.c.b16 %v1539, %v1536
  %v2266 = vpack.c.b16 %v1540, %v1537
  %v2267 = vpack.c.b16 %v1541, %v1538
  %v2268 = vpack.c.b16 %v1545, %v1542
  %v2269 = vpack.c.b16 %v1546, %v1543
  %v2270 = vpack.c.b16 %v1547, %v1544
  %v2271 = vpack.c.b16 %v1551, %v1548
  %v2272 = vpack.c.b16 %v1552, %v1549
  %v2273 = vpack.c.b16 %v1553, %v1550
  %v2274 = vpack.c.b16 %v1557, %v1554
  %v2275 = vpack.c.b16 %v1558, %v1555
  %v2276 = vpack.c.b16 %v1559, %v1556
  %v2277 = vpack.c.b16 %v1563, %v1560
  %v2278 = vpack.c.b16 %v1564, %v1561
  %v2279 = vpack.c.b16 %v1565, %v1562
  %v2280 = vpack.c.b16 %v1569, %v1566
  %v2281 = vpack.c.b16 %v1570, %v1567
  %v2282 = vpack.c.b16 %v1571, %v1568
  %v2283 = vpack.c.b16 %v1575, %v1572
  %v2284 = vpack.c.b16 %v1576, %v1573
  %v2285 = vpack.c.b16 %v1577, %v1574
  %v2286 = vpack.c.b16 %v1581, %v1578
  %v2287 = vpack.c.b16 %v1582, %v1579
  %v2288 = vpack.c.b16 %v1583, %v1580
  %v2289 = vpack.c.b16 %v1587, %v1584
  %v2290 = vpack.c.b16 %v1588, %v1585
  %v2291 = vpack.c.b16 %v1589, %v1586
  %v2292 = vpack.c.b16 %v1593, %v1590
  %v2293 = vpack.c.b16 %v1594, %v1591
  %v2294 = vpack.c.b16 %v1595, %v1592
  %v2295 = vpack.c.b16 %v1599, %v1596
  %v2296 = vpack.c.b16 %v1600, %v1597
  %v2297 = vpack.c.b16 %v1601, %v1598
  %v2298 = vpack.c.b16 %v1605, %v1602
  %v2299 = vpack.c.b16 %v1606, %v1603
  %v2300 = vpack.c.b16 %v1607, %v1604
  %v2301 = vpack.c.b16 %v1611, %v1608
  %v2302 = vpack.c.b16 %v1612, %v1609
  %v2303 = vpack.c.b16 %v1613, %v1610
  %v2304 = vpack.c.b16 %v1617, %v1614
  %v2305 = vpack.c.b16 %v1618, %v1615
  %v2306 = vpack.c.b16 %v1619, %v1616
  %v2307 = vpack.c.b16 %v1623, %v1620
  %v2308 = vpack.c.b16 %v1624, %v1621
  %v2309 = vpack.c.b16 %v1625, %v1622
  %v2310 = vpack.c.b16 %v1629, %v1626
  %v2311 = vpack.c.b16 %v1630, %v1627
  %v2312 = vpack.c.b16 %v1631, %v1628
  %v2313 = vpack.c.b16 %v1635, %v1632
  %v2314 = vpack.c.b16 %v1636, %v1633
  %v2315 = vpack.c.b16 %v1637, %v1634
  %v2316 = vpack.c.b16 %v1641, %v1638
  %v2317 = vpack.c.b16 %v1642, %v1639
  %v2318 = vpack.c.b16 %v1643, %v1640
  %v2319 = vpack.c.b16 %v1647, %v1644
  %v2320 = vpack.c.b16 %v1648, %v1645
  %v2321 = vpack.c.b16 %v1649, %v1646
  %v2322 = vpack.c.b16 %v1653, %v1650
  %v2323 = vpack.c.b16 %v1654, %v1651
  %v2324 = vpack.c.b16 %v1655, %v1652
  %v2325 = vpack.c.b16 %v1659, %v1656
  %v2326 = vpack.c.b16 %v1660, %v1657
  %v2327 = vpack.c.b16 %v1661, %v1658
  %v2328 = vpack.c.b16 %v1665, %v1662
  %v2329 = vpack.c.b16 %v1666, %v1663
  %v2330 = vpack.c.b16 %v1667, %v1664
  %v2331 = vpack.c.b16 %v1671, %v1668
  %v2332 = vpack.c.b16 %v1672, %v1669
  %v2333 = vpack.c.b16 %v1673, %v1670
  %v2334 = vpack.c.b16 %v1677, %v1674
  %v2335 = vpack.c.b16 %v1678, %v1675
  %v2336 = vpack.c.b16 %v1679, %v1676
  %v2337 = vpack.c.b16 %v1683, %v1680
  %v2338 = vpack.c.b16 %v1684, %v1681
  %v2339 = vpack.c.b16 %v1685, %v1682
  %v2340 = vpack.c.b16 %v1689, %v1686
  %v2341 = vpack.c.b16 %v1690, %v1687
  %v2342 = vpack.c.b16 %v1691, %v1688
  %v2343 = vpack.c.b16 %v1695, %v1692
  %v2344 = vpack.c.b16 %v1696, %v1693
  %v2345 = vpack.c.b16 %v1697, %v1694
  %v2346 = vpack.c.b16 %v1701, %v1698
  %v2347 = vpack.c.b16 %v1702, %v1699
  %v2348 = vpack.c.b16 %v1703, %v1700
  %v2349 = vpack.c.b16 %v1707, %v1704
  %v2350 = vpack.c.b16 %v1708, %v1705
  %v2351 = vpack.c.b16 %v1709, %v1706
  %v2352 = vpack.c.b16 %v1713, %v1710
  %v2353 = vpack.c.b16 %v1714, %v1711
  %v2354 = vpack.c.b16 %v1715, %v1712
  %v2355 = vpack.c.b16 %v1719, %v1716
  %v2356 = vpack.c.b16 %v1720, %v1717
  %v2357 = vpack.c.b16 %v1721, %v1718
  %v2358 = vpack.c.b16 %v1725, %v1722
  %v2359 = vpack.c.b16 %v1726, %v1723
  %v2360 = vpack.c.b16 %v1727, %v1724
  %v2361 = vpack.c.b16 %v1731, %v1728
  %v2362 = vpack.c.b16 %v1732, %v1729
  %v2363 = vpack.c.b16 %v1733, %v1730
  %v2364 = vpack.c.b16 %v1737, %v1734
  %v2365 = vpack.c.b16 %v1738, %v1735
  %v2366 = vpack.c.b16 %v1739, %v1736
  %v2367 = vpack.c.b16 %v1743, %v1740
  %v2368 = vpack.c.b16 %v1744, %v1741
  %v2369 = vpack.c.b16 %v1745, %v1742
  %v2370 = vpack.c.b16 %v1749, %v1746
  %v2371 = vpack.c.b16 %v1750, %v1747
  %v2372 = vpack.c.b16 %v1751, %v1748
  %v2373 = vpack.c.b16 %v1755, %v1752
  %v2374 = vpack.c.b16 %v1756, %v1753
  %v2375 = vpack.c.b16 %v1757, %v1754
  %v2376 = vpack.c.b16 %v1761, %v1758
  %v2377 = vpack.c.b16 %v1762, %v1759
  %v2378 = vpack.c.b16 %v1763, %v1760
  %v2379 = vpack.c.b16 %v1767, %v1764
  %v2380 = vpack.c.b16 %v1768, %v1765
  %v2381 = vpack.c.b16 %v1769, %v1766
  %v2382 = vpack.c.b16 %v1773, %v1770
  %v2383 = vpack.c.b16 %v1774, %v1771
  %v2384 = vpack.c.b16 %v1775, %v1772
  %v2385 = vpack.c.b16 %v1779, %v1776
  %v2386 = vpack.c.b16 %v1780, %v1777
  %v2387 = vpack.c.b16 %v1781, %v1778
  %v2388 = vpack.c.b16 %v1785, %v1782
  %v2389 = vpack.c.b16 %v1786, %v1783
  %v2390 = vpack.c.b16 %v1787, %v1784
  %v2391 = vpack.c.b16 %v1791, %v1788
  %v2392 = vpack.c.b16 %v1792, %v1789
  %v2393 = vpack.c.b16 %v1793, %v1790
  %v2394 = vpack.c.b16 %v1797, %v1794
  %v2395 = vpack.c.b16 %v1798, %v1795
  %v2396 = vpack.c.b16 %v1799, %v1796
  %v2397 = vpack.c.b16 %v1803, %v1800
  %v2398 = vpack.c.b16 %v1804, %v1801
  %v2399 = vpack.c.b16 %v1805, %v1802
  %v2400 = vpack.c.b16 %v1809, %v1806
  %v2401 = vpack.c.b16 %v1810, %v1807
  %v2402 = vpack.c.b16 %v1811, %v1808
  %v2403 = vpack.c.b16 %v1815, %v1812
  %v2404 = vpack.c.b16 %v1816, %v1813
  %v2405 = vpack.c.b16 %v1817, %v1814
  %v2406 = vpack.c.b16 %v1821, %v1818
  %v2407 = vpack.c.b16 %v1822, %v1819
  %v2408 = vpack.c.b16 %v1823, %v1820
  %v2409 = vpack.c.b16 %v1827, %v1824
  %v2410 = vpack.c.b16 %v1828, %v1825
  %v2411 = vpack.c.b16 %v1829, %v1826
  %v2412 = vpack.c.b16 %v1833, %v1830
  %v2413 = vpack.c.b16 %v1834, %v1831
  %v2414 = vpack.c.b16 %v1835, %v1832
  %v2415 = vpack.c.b16 %v1839, %v1836
  %v2416 = vpack.c.b16 %v1840, %v1837
  %v2417 = vpack.c.b16 %v1841, %v1838
  %v2418 = vpack.c.b16 %v1845, %v1842
  %v2419 = vpack.c.b16 %v1846, %v1843
  %v2420 = vpack.c.b16 %v1847, %v1844
  %v2421 = vpack.c.b16 %v1851, %v1848
  %v2422 = vpack.c.b16 %v1852, %v1849
  %v2423 = vpack.c.b16 %v1853, %v1850
  %v2424 = vpack.c.b16 %v1857, %v1854
  %v2425 = vpack.c.b16 %v1858, %v1855
  %v2426 = vpack.c.b16 %v1859, %v1856
  %v2427 = vpack.c.b16 %v1863, %v1860
  %v2428 = vpack.c.b16 %v1864, %v1861
  %v2429 = vpack.c.b16 %v1865, %v1862
  %v2430 = vpack.c.b16 %v1869, %v1866
  %v2431 = vpack.c.b16 %v1870, %v1867
  %v2432 = vpack.c.b16 %v1871, %v1868
  %v2433 = vpack.c.b16 %v1875, %v1872
  %v2434 = vpack.c.b16 %v1876, %v1873
  %v2435 = vpack.c.b16 %v1877, %v1874
  %v2436 = vpack.c.b16 %v1881, %v1878
  %v2437 = vpack.c.b16 %v1882, %v1879
  %v2438 = vpack.c.b16 %v1883, %v1880
  %v2439 = vpack.c.b16 %v1887, %v1884
  %v2440 = vpack.c.b16 %v1888, %v1885
  %v2441 = vpack.c.b16 %v1889, %v1886
  %v2442 = vpack.c.b16 %v1893, %v1890
  %v2443 = vpack.c.b16 %v1894, %v1891
  %v2444 = vpack.c.b16 %v1895, %v1892
  %v2445 = vpack.c.b16 %v1899, %v1896
  %v2446 = vpack.c.b16 %v1900, %v1897
  %v2447 = vpack.c.b16 %v1901, %v1898
  %v2448 = vpack.c.b16 %v1905, %v1902
  %v2449 = vpack.c.b16 %v1906, %v1903
  %v2450 = vpack.c.b16 %v1907, %v1904
  %v2451 = vpack.c.b16 %v1911, %v1908
  %v2452 = vpack.c.b16 %v1912, %v1909
  %v2453 = vpack.c.b16 %v1913, %v1910
  %v2454 = vpack.c.b16 %v1917, %v1914
  %v2455 = vpack.c.b16 %v1918, %v1915
  %v2456 = vpack.c.b16 %v1919, %v1916
  %v2457 = vpack.c.b16 %v1923, %v1920
  %v2458 = vpack.c.b16 %v1924, %v1921
  %v2459 = vpack.c.b16 %v1925, %v1922
  %v2460 = vpack.c.b16 %v1929, %v1926
  %v2461 = vpack.c.b16 %v1930, %v1927
  %v2462 = vpack.c.b16 %v1931, %v1928
  %v2463 = vpack.c.b16 %v1935, %v1932
  %v2464 = vpack.c.b16 %v1936, %v1933
  %v2465 = vpack.c.b16 %v1937, %v1934
  %v2466 = vpack.c.b16 %v1941, %v1938
  %v2467 = vpack.c.b16 %v1942, %v1939
  %v2468 = vpack.c.b16 %v1943, %v1940
  %v2469 = vpack.c.b16 %v1947, %v1944
  %v2470 = vpack.c.b16 %v1948, %v1945
  %v2471 = vpack.c.b16 %v1949, %v1946
  %v2472 = vpack.c.b16 %v1953, %v1950
  %v2473 = vpack.c.b16 %v1954, %v1951
  %v2474 = vpack.c.b16 %v1955, %v1952
  %v2475 = vpack.c.b16 %v1959, %v1956
  %v2476 = vpack.c.b16 %v1960, %v1957
  %v2477 = vpack.c.b16 %v1961, %v1958
  %v2478 = vpack.c.b16 %v1965, %v1962
  %v2479 = vpack.c.b16 %v1966, %v1963
  %v2480 = vpack.c.b16 %v1967, %v1964
  %v2481 = vpack.c.b16 %v1971, %v1968
  %v2482 = vpack.c.b16 %v1972, %v1969
  %v2483 = vpack.c.b16 %v1973, %v1970
  %v2484 = vpack.c.b16 %v1977, %v1974
  %v2485 = vpack.c.b16 %v1978, %v1975
  %v2486 = vpack.c.b16 %v1979, %v1976
  %v2487 = vpack.c.b16 %v1983, %v1980
  %v2488 = vpack.c.b16 %v1984, %v1981
  %v2489 = vpack.c.b16 %v1985, %v1982
  %v2490 = vpack.c.b16 %v1989, %v1986
  %v2491 = vpack.c.b16 %v1990, %v1987
  %v2492 = vpack.c.b16 %v1991, %v1988
  %v2493 = vpack.c.b16 %v1995, %v1992
  %v2494 = vpack.c.b16 %v1996, %v1993
  %v2495 = vpack.c.b16 %v1997, %v1994
  %v2496 = vpack.c.b16 %v2001, %v1998
  %v2497 = vpack.c.b16 %v2002, %v1999
  %v2498 = vpack.c.b16 %v2003, %v2000
  %v2499 = vpack.c.b16 %v2007, %v2004
  %v2500 = vpack.c.b16 %v2008, %v2005
  %v2501 = vpack.c.b16 %v2009, %v2006
  %v2502 = vpack.c.b16 %v2013, %v2010
  %v2503 = vpack.c.b16 %v2014, %v2011
  %v2504 = vpack.c.b16 %v2015, %v2012
  %v2505 = vpack.c.b16 %v2019, %v2016
  %v2506 = vpack.c.b16 %v2020, %v2017
  %v2507 = vpack.c.b16 %v2021, %v2018
  %v2508 = vpack.c.b16 %v2025, %v2022
  %v2509 = vpack.c.b16 %v2026, %v2023
  %v2510 = vpack.c.b16 %v2027, %v2024
  %v2511 = vpack.c.b16 %v2031, %v2028
  %v2512 = vpack.c.b16 %v2032, %v2029
  %v2513 = vpack.c.b16 %v2033, %v2030
  %v2514 = vpack.c.b16 %v2037, %v2034
  %v2515 = vpack.c.b16 %v2038, %v2035
  %v2516 = vpack.c.b16 %v2039, %v2036
  %v2517 = vpack.c.b16 %v2043, %v2040
  %v2518 = vpack.c.b16 %v2044, %v2041
  %v2519 = vpack.c.b16 %v2045, %v2042
  %v2520 = vpack.c.b16 %v2049, %v2046
  %v2521 = vpack.c.b16 %v2050, %v2047
  %v2522 = vpack.c.b16 %v2051, %v2048
  %v2523 = vpack.c.b16 %v2055, %v2052
  %v2524 = vpack.c.b16 %v2056, %v2053
  %v2525 = vpack.c.b16 %v2057, %v2054
  %v2526 = vpack.c.b16 %v2061, %v2058
  %v2527 = vpack.c.b16 %v2062, %v2059
  %v2528 = vpack.c.b16 %v2063, %v2060
  %v2529 = vpack.c.b16 %v2067, %v2064
  %v2530 = vpack.c.b16 %v2068, %v2065
  %v2531 = vpack.c.b16 %v2069, %v2066
  %v2532 = vpack.c.b16 %v2073, %v2070
  %v2533 = vpack.c.b16 %v2074, %v2071
  %v2534 = vpack.c.b16 %v2075, %v2072
  %v2535 = vpack.c.b16 %v2079, %v2076
  %v2536 = vpack.c.b16 %v2080, %v2077
  %v2537 = vpack.c.b16 %v2081, %v2078
  %v2538 = vpack.c.b16 %v2085, %v2082
  %v2539 = vpack.c.b16 %v2086, %v2083
  %v2540 = vpack.c.b16 %v2087, %v2084
  %v2541 = vpack.c.b16 %v2091, %v2088
  %v2542 = vpack.c.b16 %v2092, %v2089
  %v2543 = vpack.c.b16 %v2093, %v2090
  %v2544 = vpack.c.b16 %v2097, %v2094
  %v2545 = vpack.c.b16 %v2098, %v2095
  %v2546 = vpack.c.b16 %v2099, %v2096
  %v2547 = vpack.c.b16 %v2103, %v2100
  %v2548 = vpack.c.b16 %v2104, %v2101
  %v2549 = vpack.c.b16 %v2105, %v2102
  %v2550 = vpack.c.b16 %v2109, %v2106
  %v2551 = vpack.c.b16 %v2110, %v2107
  %v2552 = vpack.c.b16 %v2111, %v2108
  %v2553 = vpack.c.b16 %v2115, %v2112
  %v2554 = vpack.c.b16 %v2116, %v2113
  %v2555 = vpack.c.b16 %v2117, %v2114
  %v2556 = vpack.c.b16 %v2121, %v2118
  %v2557 = vpack.c.b16 %v2122, %v2119
  %v2558 = vpack.c.b16 %v2123, %v2120
  %v2559 = vpack.c.b16 %v2127, %v2124
  %v2560 = vpack.c.b16 %v2128, %v2125
  %v2561 = vpack.c.b16 %v2129, %v2126
  %v2562 = vpack.c.b16 %v2133, %v2130
  %v2563 = vpack.c.b16 %v2134, %v2131
  %v2564 = vpack.c.b16 %v2135, %v2132
  %v2565 = vpack.c.b16 %v2139, %v2136
  %v2566 = vpack.c.b16 %v2140, %v2137
  %v2567 = vpack.c.b16 %v2141, %v2138
  %v2568 = vpack.c.b16 %v2145, %v2142
  %v2569 = vpack.c.b16 %v2146, %v2143
  %v2570 = vpack.c.b16 %v2147, %v2144
  %v2571 = vpack.c.b16 %v2151, %v2148
  %v2572 = vpack.c.b16 %v2152, %v2149
  %v2573 = vpack.c.b16 %v2153, %v2150
  %v2574 = vpack.c.b16 %v2157, %v2154
  %v2575 = vpack.c.b16 %v2158, %v2155
  %v2576 = vpack.c.b16 %v2159, %v2156
  %v2577 = vpack.c.b16 %v2163, %v2160
  %v2578 = vpack.c.b16 %v2164, %v2161
  %v2579 = vpack.c.b16 %v2165, %v2162
  %v2580 = vpack.c.b16 %v2169, %v2166
  %v2581 = vpack.c.b16 %v2170, %v2167
  %v2582 = vpack.c.b16 %v2171, %v2168
  %v2583 = vpack.c.b16 %v2175, %v2172
  %v2584 = vpack.c.b16 %v2176, %v2173
  %v2585 = vpack.c.b16 %v2177, %v2174
  %v2586 = vpack.c.b16 %v2181, %v2178
  %v2587 = vpack.c.b16 %v2182, %v2179
  %v2588 = vpack.c.b16 %v2183, %v2180
  %v2589 = vpack.c.b16 %v2187, %v2184
  %v2590 = vpack.c.b16 %v2188, %v2185
  %v2591 = vpack.c.b16 %v2189, %v2186
  %v2592 = vpack.c.b16 %v2193, %v2190
  %v2593 = vpack.c.b16 %v2194, %v2191
  %v2594 = vpack.c.b16 %v2195, %v2192
  %v2595 = vpack.c.b16 %v2199, %v2196
  %v2596 = vpack.c.b16 %v2200, %v2197
  %v2597 = vpack.c.b16 %v2201, %v2198
  %v2598 = vpack.c.b16 %v2205, %v2202
  %v2599 = vpack.c.b16 %v2206, %v2203
  %v2600 = vpack.c.b16 %v2207, %v2204
  %v2601 = vpack.c.b16 %v2211, %v2208
  %v2602 = vpack.c.b16 %v2212, %v2209
  %v2603 = vpack.c.b16 %v2213, %v2210
  %v2604 = vpack.c.b16 %v2217, %v2214
  %v2605 = vpack.c.b16 %v2218, %v2215
  %v2606 = vpack.c.b16 %v2219, %v2216
  %vm2994 = vcmask 130048
  %v2996 = vsel %vm2994, %v362, 0
  %v2999 = vsel %vm2994, %v379, 0
  %v3002 = vsel %vm2994, %v396, 0
  %v3005 = vsel %vm2994, %v413, 0
  %3007 = vmatprep.subr.bf16.mxu0 %v2221
  %3008 = vmatpush1.bf16.msra.mxu0 %v2220
  %3009 = vmatprep.subr.bf16.mxu0 %v2224
  %3010 = vmatpush1.bf16.msra.mxu0 %v2223
  %3011 = vmatprep.subr.bf16.mxu0 %v2227
  %3012 = vmatpush1.bf16.msra.mxu0 %v2226
  %3013 = vmatprep.subr.bf16.mxu0 %v2230
  %3014 = vmatpush1.bf16.msra.mxu0 %v2229
  %3015 = vmatprep.subr.bf16.mxu0 %v2233
  %3016 = vmatpush1.bf16.msra.mxu0 %v2232
  %3017 = vmatprep.subr.bf16.mxu0 %v2236
  %3018 = vmatpush1.bf16.msra.mxu0 %v2235
  %3019 = vmatprep.subr.bf16.mxu0 %v2239
  %3020 = vmatpush1.bf16.msra.mxu0 %v2238
  %3021 = vmatprep.subr.bf16.mxu0 %v2242
  %3022 = vmatpush1.bf16.msra.mxu0 %v2241
  %3023 = vmatprep.subr.bf16.mxu0 %v2245
  %3024 = vmatpush1.bf16.msra.mxu0 %v2244
  %3025 = vmatprep.subr.bf16.mxu0 %v2248
  %3026 = vmatpush1.bf16.msra.mxu0 %v2247
  %3027 = vmatprep.subr.bf16.mxu0 %v2251
  %3028 = vmatpush1.bf16.msra.mxu0 %v2250
  %3029 = vmatprep.subr.bf16.mxu0 %v2254
  %3030 = vmatpush1.bf16.msra.mxu0 %v2253
  %3031 = vmatprep.subr.bf16.mxu0 %v2257
  %3032 = vmatpush1.bf16.msra.mxu0 %v2256
  %3033 = vmatprep.subr.bf16.mxu0 %v2260
  %3034 = vmatpush1.bf16.msra.mxu0 %v2259
  %3035 = vmatprep.subr.bf16.mxu0 %v2263
  %3036 = vmatpush1.bf16.msra.mxu0 %v2262
  %3037 = vmatprep.subr.bf16.mxu0 %v2266
  %3038 = vmatpush1.bf16.msra.mxu0 %v2265
  %3039 = vmatprep.mubr.bf16.mxu0 %v347
  %3040 = vmatmul.mubr.bf16.gmra.mrb[0].mxu0 %v346
  %v3041 = vpop.f32.mrb[0].mxu0
  %v3042 = vadd.f32 0.0, %v3041
  %v3043 = vpop.f32.mrb[0].mxu0
  %v3044 = vadd.f32 0.0, %v3043
  %v3045 = vpop.f32.mrb[0].mxu0
  %v3046 = vadd.f32 0.0, %v3045
  %v3047 = vpop.f32.mrb[0].mxu0
  %v3048 = vadd.f32 0.0, %v3047
  %3049 = vmatprep.mubr.bf16.mxu0 %v364
  %3050 = vmatmul.mubr.bf16.gmra.mrb[0].mxu0 %v363
  %v3051 = vpop.f32.mrb[0].mxu0
  %v3052 = vadd.f32 0.0, %v3051
  %v3053 = vpop.f32.mrb[0].mxu0
  %v3054 = vadd.f32 0.0, %v3053
  %v3055 = vpop.f32.mrb[0].mxu0
  %v3056 = vadd.f32 0.0, %v3055
  %v3057 = vpop.f32.mrb[0].mxu0
  %v3058 = vadd.f32 0.0, %v3057
  %3059 = vmatprep.mubr.bf16.mxu0 %v381
  %3060 = vmatmul.mubr.bf16.gmra.mrb[0].mxu0 %v380
  %v3061 = vpop.f32.mrb[0].mxu0
  %v3062 = vadd.f32 0.0, %v3061
  %v3063 = vpop.f32.mrb[0].mxu0
  %v3064 = vadd.f32 0.0, %v3063
  %v3065 = vpop.f32.mrb[0].mxu0
  %v3066 = vadd.f32 0.0, %v3065
  %v3067 = vpop.f32.mrb[0].mxu0
  %v3068 = vadd.f32 0.0, %v3067
  %3069 = vmatprep.mubr.bf16.mxu0 %v398
  %3070 = vmatmul.mubr.bf16.gmra.mrb[0].mxu0 %v397
  %v3071 = vpop.f32.mrb[0].mxu0
  %v3072 = vadd.f32 0.0, %v3071
  %v3073 = vpop.f32.mrb[0].mxu0
  %v3074 = vadd.f32 0.0, %v3073
  %v3075 = vpop.f32.mrb[0].mxu0
  %v3076 = vpop.f32.mrb[0].mxu0
  %3077 = vdwg.mxu0
  %3078 = vmatprep.subr.bf16.mxu0 %v2269
  %3079 = vmatpush1.bf16.msra.mxu0 %v2268
  %3080 = vmatprep.subr.bf16.mxu0 %v2272
  %3081 = vmatpush1.bf16.msra.mxu0 %v2271
  %3082 = vmatprep.subr.bf16.mxu0 %v2275
  %3083 = vmatpush1.bf16.msra.mxu0 %v2274
  %3084 = vmatprep.subr.bf16.mxu0 %v2278
  %3085 = vmatpush1.bf16.msra.mxu0 %v2277
  %3086 = vmatprep.subr.bf16.mxu0 %v2281
  %3087 = vmatpush1.bf16.msra.mxu0 %v2280
  %3088 = vmatprep.subr.bf16.mxu0 %v2284
  %3089 = vmatpush1.bf16.msra.mxu0 %v2283
  %3090 = vmatprep.subr.bf16.mxu0 %v2287
  %3091 = vmatpush1.bf16.msra.mxu0 %v2286
  %3092 = vmatprep.subr.bf16.mxu0 %v2290
  %3093 = vmatpush1.bf16.msra.mxu0 %v2289
  %3094 = vmatprep.subr.bf16.mxu0 %v2293
  %3095 = vmatpush1.bf16.msra.mxu0 %v2292
  %3096 = vmatprep.subr.bf16.mxu0 %v2296
  %3097 = vmatpush1.bf16.msra.mxu0 %v2295
  %3098 = vmatprep.subr.bf16.mxu0 %v2299
  %3099 = vmatpush1.bf16.msra.mxu0 %v2298
  %3100 = vmatprep.subr.bf16.mxu0 %v2302
  %3101 = vmatpush1.bf16.msra.mxu0 %v2301
  %3102 = vmatprep.subr.bf16.mxu0 %v2305
  %3103 = vmatpush1.bf16.msra.mxu0 %v2304
  %3104 = vmatprep.subr.bf16.mxu0 %v2308
  %3105 = vmatpush1.bf16.msra.mxu0 %v2307
  %3106 = vmatprep.subr.bf16.mxu0 %v2311
  %3107 = vmatpush1.bf16.msra.mxu0 %v2310
  %3108 = vmatprep.subr.bf16.mxu0 %v2314
  %3109 = vmatpush1.bf16.msra.mxu0 %v2313
  %3110 = vmatprep.mubr.bf16.mxu0 %v349
  %3111 = vmatmul.mubr.bf16.gmra.mrb[0].mxu0 %v348
  %v3112 = vpop.f32.mrb[0].mxu0
  %v3113 = vadd.f32 %v3042, %v3112
  %v3114 = vpop.f32.mrb[0].mxu0
  %v3115 = vadd.f32 %v3044, %v3114
  %v3116 = vpop.f32.mrb[0].mxu0
  %v3117 = vadd.f32 %v3046, %v3116
  %v3118 = vpop.f32.mrb[0].mxu0
  %v3119 = vadd.f32 %v3048, %v3118
  %3120 = vmatprep.mubr.bf16.mxu0 %v366
  %3121 = vmatmul.mubr.bf16.gmra.mrb[0].mxu0 %v365
  %v3122 = vpop.f32.mrb[0].mxu0
  %v3123 = vadd.f32 %v3052, %v3122
  %v3124 = vpop.f32.mrb[0].mxu0
  %v3125 = vadd.f32 %v3054, %v3124
  %v3126 = vpop.f32.mrb[0].mxu0
  %v3127 = vadd.f32 %v3056, %v3126
  %v3128 = vpop.f32.mrb[0].mxu0
  %v3129 = vadd.f32 %v3058, %v3128
  %3130 = vmatprep.mubr.bf16.mxu0 %v383
  %3131 = vmatmul.mubr.bf16.gmra.mrb[0].mxu0 %v382
  %v3132 = vpop.f32.mrb[0].mxu0
  %v3133 = vadd.f32 %v3062, %v3132
  %v3134 = vpop.f32.mrb[0].mxu0
  %v3135 = vadd.f32 %v3064, %v3134
  %v3136 = vpop.f32.mrb[0].mxu0
  %v3137 = vadd.f32 %v3066, %v3136
  %v3138 = vpop.f32.mrb[0].mxu0
  %v3139 = vadd.f32 %v3068, %v3138
  %3140 = vmatprep.mubr.bf16.mxu0 %v400
  %3141 = vmatmul.mubr.bf16.gmra.mrb[0].mxu0 %v399
  %v3142 = vpop.f32.mrb[0].mxu0
  %v3143 = vadd.f32 %v3072, %v3142
  %v3144 = vpop.f32.mrb[0].mxu0
  %v3145 = vadd.f32 %v3074, %v3144
  %v3146 = vpop.f32.mrb[0].mxu0
  %v3147 = vpop.f32.mrb[0].mxu0
  %3148 = vdwg.mxu0
  %3149 = vmatprep.subr.bf16.mxu0 %v2317
  %3150 = vmatpush1.bf16.msra.mxu0 %v2316
  %3151 = vmatprep.subr.bf16.mxu0 %v2320
  %3152 = vmatpush1.bf16.msra.mxu0 %v2319
  %3153 = vmatprep.subr.bf16.mxu0 %v2323
  %3154 = vmatpush1.bf16.msra.mxu0 %v2322
  %3155 = vmatprep.subr.bf16.mxu0 %v2326
  %3156 = vmatpush1.bf16.msra.mxu0 %v2325
  %3157 = vmatprep.subr.bf16.mxu0 %v2329
  %3158 = vmatpush1.bf16.msra.mxu0 %v2328
  %3159 = vmatprep.subr.bf16.mxu0 %v2332
  %3160 = vmatpush1.bf16.msra.mxu0 %v2331
  %3161 = vmatprep.subr.bf16.mxu0 %v2335
  %3162 = vmatpush1.bf16.msra.mxu0 %v2334
  %3163 = vmatprep.subr.bf16.mxu0 %v2338
  %3164 = vmatpush1.bf16.msra.mxu0 %v2337
  %3165 = vmatprep.subr.bf16.mxu0 %v2341
  %3166 = vmatpush1.bf16.msra.mxu0 %v2340
  %3167 = vmatprep.subr.bf16.mxu0 %v2344
  %3168 = vmatpush1.bf16.msra.mxu0 %v2343
  %3169 = vmatprep.subr.bf16.mxu0 %v2347
  %3170 = vmatpush1.bf16.msra.mxu0 %v2346
  %3171 = vmatprep.subr.bf16.mxu0 %v2350
  %3172 = vmatpush1.bf16.msra.mxu0 %v2349
  %3173 = vmatprep.subr.bf16.mxu0 %v2353
  %3174 = vmatpush1.bf16.msra.mxu0 %v2352
  %3175 = vmatprep.subr.bf16.mxu0 %v2356
  %3176 = vmatpush1.bf16.msra.mxu0 %v2355
  %3177 = vmatprep.subr.bf16.mxu0 %v2359
  %3178 = vmatpush1.bf16.msra.mxu0 %v2358
  %3179 = vmatprep.subr.bf16.mxu0 %v2362
  %3180 = vmatpush1.bf16.msra.mxu0 %v2361
  %3181 = vmatprep.mubr.bf16.mxu0 %v351
  %3182 = vmatmul.mubr.bf16.gmra.mrb[0].mxu0 %v350
  %v3183 = vpop.f32.mrb[0].mxu0
  %v3184 = vadd.f32 %v3113, %v3183
  %v3185 = vpop.f32.mrb[0].mxu0
  %v3186 = vadd.f32 %v3115, %v3185
  %v3187 = vpop.f32.mrb[0].mxu0
  %v3188 = vadd.f32 %v3117, %v3187
  %v3189 = vpop.f32.mrb[0].mxu0
  %v3190 = vadd.f32 %v3119, %v3189
  %3191 = vmatprep.mubr.bf16.mxu0 %v368
  %3192 = vmatmul.mubr.bf16.gmra.mrb[0].mxu0 %v367
  %v3193 = vpop.f32.mrb[0].mxu0
  %v3194 = vadd.f32 %v3123, %v3193
  %v3195 = vpop.f32.mrb[0].mxu0
  %v3196 = vadd.f32 %v3125, %v3195
  %v3197 = vpop.f32.mrb[0].mxu0
  %v3198 = vadd.f32 %v3127, %v3197
  %v3199 = vpop.f32.mrb[0].mxu0
  %v3200 = vadd.f32 %v3129, %v3199
  %3201 = vmatprep.mubr.bf16.mxu0 %v385
  %3202 = vmatmul.mubr.bf16.gmra.mrb[0].mxu0 %v384
  %v3203 = vpop.f32.mrb[0].mxu0
  %v3204 = vadd.f32 %v3133, %v3203
  %v3205 = vpop.f32.mrb[0].mxu0
  %v3206 = vadd.f32 %v3135, %v3205
  %v3207 = vpop.f32.mrb[0].mxu0
  %v3208 = vadd.f32 %v3137, %v3207
  %v3209 = vpop.f32.mrb[0].mxu0
  %v3210 = vadd.f32 %v3139, %v3209
  %3211 = vmatprep.mubr.bf16.mxu0 %v402
  %3212 = vmatmul.mubr.bf16.gmra.mrb[0].mxu0 %v401
  %v3213 = vpop.f32.mrb[0].mxu0
  %v3214 = vadd.f32 %v3143, %v3213
  %v3215 = vpop.f32.mrb[0].mxu0
  %v3216 = vadd.f32 %v3145, %v3215
  %v3217 = vpop.f32.mrb[0].mxu0
  %v3218 = vpop.f32.mrb[0].mxu0
  %3219 = vdwg.mxu0
  %3220 = vmatprep.subr.bf16.mxu0 %v2365
  %3221 = vmatpush1.bf16.msra.mxu0 %v2364
  %3222 = vmatprep.subr.bf16.mxu0 %v2368
  %3223 = vmatpush1.bf16.msra.mxu0 %v2367
  %3224 = vmatprep.subr.bf16.mxu0 %v2371
  %3225 = vmatpush1.bf16.msra.mxu0 %v2370
  %3226 = vmatprep.subr.bf16.mxu0 %v2374
  %3227 = vmatpush1.bf16.msra.mxu0 %v2373
  %3228 = vmatprep.subr.bf16.mxu0 %v2377
  %3229 = vmatpush1.bf16.msra.mxu0 %v2376
  %3230 = vmatprep.subr.bf16.mxu0 %v2380
  %3231 = vmatpush1.bf16.msra.mxu0 %v2379
  %3232 = vmatprep.subr.bf16.mxu0 %v2383
  %3233 = vmatpush1.bf16.msra.mxu0 %v2382
  %3234 = vmatprep.subr.bf16.mxu0 %v2386
  %3235 = vmatpush1.bf16.msra.mxu0 %v2385
  %3236 = vmatprep.subr.bf16.mxu0 %v2389
  %3237 = vmatpush1.bf16.msra.mxu0 %v2388
  %3238 = vmatprep.subr.bf16.mxu0 %v2392
  %3239 = vmatpush1.bf16.msra.mxu0 %v2391
  %3240 = vmatprep.subr.bf16.mxu0 %v2395
  %3241 = vmatpush1.bf16.msra.mxu0 %v2394
  %3242 = vmatprep.subr.bf16.mxu0 %v2398
  %3243 = vmatpush1.bf16.msra.mxu0 %v2397
  %3244 = vmatprep.subr.bf16.mxu0 %v2401
  %3245 = vmatpush1.bf16.msra.mxu0 %v2400
  %3246 = vmatprep.subr.bf16.mxu0 %v2404
  %3247 = vmatpush1.bf16.msra.mxu0 %v2403
  %3248 = vmatprep.subr.bf16.mxu0 %v2407
  %3249 = vmatpush1.bf16.msra.mxu0 %v2406
  %3250 = vmatprep.subr.bf16.mxu0 %v2410
  %3251 = vmatpush1.bf16.msra.mxu0 %v2409
  %3252 = vmatprep.mubr.bf16.mxu0 %v353
  %3253 = vmatmul.mubr.bf16.gmra.mrb[0].mxu0 %v352
  %v3254 = vpop.f32.mrb[0].mxu0
  %v3255 = vadd.f32 %v3184, %v3254
  %v3256 = vpop.f32.mrb[0].mxu0
  %v3257 = vadd.f32 %v3186, %v3256
  %v3258 = vpop.f32.mrb[0].mxu0
  %v3259 = vadd.f32 %v3188, %v3258
  %v3260 = vpop.f32.mrb[0].mxu0
  %v3261 = vadd.f32 %v3190, %v3260
  %3262 = vmatprep.mubr.bf16.mxu0 %v370
  %3263 = vmatmul.mubr.bf16.gmra.mrb[0].mxu0 %v369
  %v3264 = vpop.f32.mrb[0].mxu0
  %v3265 = vadd.f32 %v3194, %v3264
  %v3266 = vpop.f32.mrb[0].mxu0
  %v3267 = vadd.f32 %v3196, %v3266
  %v3268 = vpop.f32.mrb[0].mxu0
  %v3269 = vadd.f32 %v3198, %v3268
  %v3270 = vpop.f32.mrb[0].mxu0
  %v3271 = vadd.f32 %v3200, %v3270
  %3272 = vmatprep.mubr.bf16.mxu0 %v387
  %3273 = vmatmul.mubr.bf16.gmra.mrb[0].mxu0 %v386
  %v3274 = vpop.f32.mrb[0].mxu0
  %v3275 = vadd.f32 %v3204, %v3274
  %v3276 = vpop.f32.mrb[0].mxu0
  %v3277 = vadd.f32 %v3206, %v3276
  %v3278 = vpop.f32.mrb[0].mxu0
  %v3279 = vadd.f32 %v3208, %v3278
  %v3280 = vpop.f32.mrb[0].mxu0
  %v3281 = vadd.f32 %v3210, %v3280
  %3282 = vmatprep.mubr.bf16.mxu0 %v404
  %3283 = vmatmul.mubr.bf16.gmra.mrb[0].mxu0 %v403
  %v3284 = vpop.f32.mrb[0].mxu0
  %v3285 = vadd.f32 %v3214, %v3284
  %v3286 = vpop.f32.mrb[0].mxu0
  %v3287 = vadd.f32 %v3216, %v3286
  %v3288 = vpop.f32.mrb[0].mxu0
  %v3289 = vpop.f32.mrb[0].mxu0
  %3290 = vdwg.mxu0
  %3291 = vmatprep.subr.bf16.mxu0 %v2413
  %3292 = vmatpush1.bf16.msra.mxu0 %v2412
  %3293 = vmatprep.subr.bf16.mxu0 %v2416
  %3294 = vmatpush1.bf16.msra.mxu0 %v2415
  %3295 = vmatprep.subr.bf16.mxu0 %v2419
  %3296 = vmatpush1.bf16.msra.mxu0 %v2418
  %3297 = vmatprep.subr.bf16.mxu0 %v2422
  %3298 = vmatpush1.bf16.msra.mxu0 %v2421
  %3299 = vmatprep.subr.bf16.mxu0 %v2425
  %3300 = vmatpush1.bf16.msra.mxu0 %v2424
  %3301 = vmatprep.subr.bf16.mxu0 %v2428
  %3302 = vmatpush1.bf16.msra.mxu0 %v2427
  %3303 = vmatprep.subr.bf16.mxu0 %v2431
  %3304 = vmatpush1.bf16.msra.mxu0 %v2430
  %3305 = vmatprep.subr.bf16.mxu0 %v2434
  %3306 = vmatpush1.bf16.msra.mxu0 %v2433
  %3307 = vmatprep.subr.bf16.mxu0 %v2437
  %3308 = vmatpush1.bf16.msra.mxu0 %v2436
  %3309 = vmatprep.subr.bf16.mxu0 %v2440
  %3310 = vmatpush1.bf16.msra.mxu0 %v2439
  %3311 = vmatprep.subr.bf16.mxu0 %v2443
  %3312 = vmatpush1.bf16.msra.mxu0 %v2442
  %3313 = vmatprep.subr.bf16.mxu0 %v2446
  %3314 = vmatpush1.bf16.msra.mxu0 %v2445
  %3315 = vmatprep.subr.bf16.mxu0 %v2449
  %3316 = vmatpush1.bf16.msra.mxu0 %v2448
  %3317 = vmatprep.subr.bf16.mxu0 %v2452
  %3318 = vmatpush1.bf16.msra.mxu0 %v2451
  %3319 = vmatprep.subr.bf16.mxu0 %v2455
  %3320 = vmatpush1.bf16.msra.mxu0 %v2454
  %3321 = vmatprep.subr.bf16.mxu0 %v2458
  %3322 = vmatpush1.bf16.msra.mxu0 %v2457
  %3323 = vmatprep.mubr.bf16.mxu0 %v355
  %3324 = vmatmul.mubr.bf16.gmra.mrb[0].mxu0 %v354
  %v3325 = vpop.f32.mrb[0].mxu0
  %v3326 = vadd.f32 %v3255, %v3325
  %v3327 = vpop.f32.mrb[0].mxu0
  %v3328 = vadd.f32 %v3257, %v3327
  %v3329 = vpop.f32.mrb[0].mxu0
  %v3330 = vadd.f32 %v3259, %v3329
  %v3331 = vpop.f32.mrb[0].mxu0
  %v3332 = vadd.f32 %v3261, %v3331
  %3333 = vmatprep.mubr.bf16.mxu0 %v372
  %3334 = vmatmul.mubr.bf16.gmra.mrb[0].mxu0 %v371
  %v3335 = vpop.f32.mrb[0].mxu0
  %v3336 = vadd.f32 %v3265, %v3335
  %v3337 = vpop.f32.mrb[0].mxu0
  %v3338 = vadd.f32 %v3267, %v3337
  %v3339 = vpop.f32.mrb[0].mxu0
  %v3340 = vadd.f32 %v3269, %v3339
  %v3341 = vpop.f32.mrb[0].mxu0
  %v3342 = vadd.f32 %v3271, %v3341
  %3343 = vmatprep.mubr.bf16.mxu0 %v389
  %3344 = vmatmul.mubr.bf16.gmra.mrb[0].mxu0 %v388
  %v3345 = vpop.f32.mrb[0].mxu0
  %v3346 = vadd.f32 %v3275, %v3345
  %v3347 = vpop.f32.mrb[0].mxu0
  %v3348 = vadd.f32 %v3277, %v3347
  %v3349 = vpop.f32.mrb[0].mxu0
  %v3350 = vadd.f32 %v3279, %v3349
  %v3351 = vpop.f32.mrb[0].mxu0
  %v3352 = vadd.f32 %v3281, %v3351
  %3353 = vmatprep.mubr.bf16.mxu0 %v406
  %3354 = vmatmul.mubr.bf16.gmra.mrb[0].mxu0 %v405
  %v3355 = vpop.f32.mrb[0].mxu0
  %v3356 = vadd.f32 %v3285, %v3355
  %v3357 = vpop.f32.mrb[0].mxu0
  %v3358 = vadd.f32 %v3287, %v3357
  %v3359 = vpop.f32.mrb[0].mxu0
  %v3360 = vpop.f32.mrb[0].mxu0
  %3361 = vdwg.mxu0
  %3362 = vmatprep.subr.bf16.mxu0 %v2461
  %3363 = vmatpush1.bf16.msra.mxu0 %v2460
  %3364 = vmatprep.subr.bf16.mxu0 %v2464
  %3365 = vmatpush1.bf16.msra.mxu0 %v2463
  %3366 = vmatprep.subr.bf16.mxu0 %v2467
  %3367 = vmatpush1.bf16.msra.mxu0 %v2466
  %3368 = vmatprep.subr.bf16.mxu0 %v2470
  %3369 = vmatpush1.bf16.msra.mxu0 %v2469
  %3370 = vmatprep.subr.bf16.mxu0 %v2473
  %3371 = vmatpush1.bf16.msra.mxu0 %v2472
  %3372 = vmatprep.subr.bf16.mxu0 %v2476
  %3373 = vmatpush1.bf16.msra.mxu0 %v2475
  %3374 = vmatprep.subr.bf16.mxu0 %v2479
  %3375 = vmatpush1.bf16.msra.mxu0 %v2478
  %3376 = vmatprep.subr.bf16.mxu0 %v2482
  %3377 = vmatpush1.bf16.msra.mxu0 %v2481
  %3378 = vmatprep.subr.bf16.mxu0 %v2485
  %3379 = vmatpush1.bf16.msra.mxu0 %v2484
  %3380 = vmatprep.subr.bf16.mxu0 %v2488
  %3381 = vmatpush1.bf16.msra.mxu0 %v2487
  %3382 = vmatprep.subr.bf16.mxu0 %v2491
  %3383 = vmatpush1.bf16.msra.mxu0 %v2490
  %3384 = vmatprep.subr.bf16.mxu0 %v2494
  %3385 = vmatpush1.bf16.msra.mxu0 %v2493
  %3386 = vmatprep.subr.bf16.mxu0 %v2497
  %3387 = vmatpush1.bf16.msra.mxu0 %v2496
  %3388 = vmatprep.subr.bf16.mxu0 %v2500
  %3389 = vmatpush1.bf16.msra.mxu0 %v2499
  %3390 = vmatprep.subr.bf16.mxu0 %v2503
  %3391 = vmatpush1.bf16.msra.mxu0 %v2502
  %3392 = vmatprep.subr.bf16.mxu0 %v2506
  %3393 = vmatpush1.bf16.msra.mxu0 %v2505
  %3394 = vmatprep.mubr.bf16.mxu0 %v357
  %3395 = vmatmul.mubr.bf16.gmra.mrb[0].mxu0 %v356
  %v3396 = vpop.f32.mrb[0].mxu0
  %v3397 = vadd.f32 %v3326, %v3396
  %v3398 = vpop.f32.mrb[0].mxu0
  %v3399 = vadd.f32 %v3328, %v3398
  %v3400 = vpop.f32.mrb[0].mxu0
  %v3401 = vadd.f32 %v3330, %v3400
  %v3402 = vpop.f32.mrb[0].mxu0
  %v3403 = vadd.f32 %v3332, %v3402
  %3404 = vmatprep.mubr.bf16.mxu0 %v374
  %3405 = vmatmul.mubr.bf16.gmra.mrb[0].mxu0 %v373
  %v3406 = vpop.f32.mrb[0].mxu0
  %v3407 = vadd.f32 %v3336, %v3406
  %v3408 = vpop.f32.mrb[0].mxu0
  %v3409 = vadd.f32 %v3338, %v3408
  %v3410 = vpop.f32.mrb[0].mxu0
  %v3411 = vadd.f32 %v3340, %v3410
  %v3412 = vpop.f32.mrb[0].mxu0
  %v3413 = vadd.f32 %v3342, %v3412
  %3414 = vmatprep.mubr.bf16.mxu0 %v391
  %3415 = vmatmul.mubr.bf16.gmra.mrb[0].mxu0 %v390
  %v3416 = vpop.f32.mrb[0].mxu0
  %v3417 = vadd.f32 %v3346, %v3416
  %v3418 = vpop.f32.mrb[0].mxu0
  %v3419 = vadd.f32 %v3348, %v3418
  %v3420 = vpop.f32.mrb[0].mxu0
  %v3421 = vadd.f32 %v3350, %v3420
  %v3422 = vpop.f32.mrb[0].mxu0
  %v3423 = vadd.f32 %v3352, %v3422
  %3424 = vmatprep.mubr.bf16.mxu0 %v408
  %3425 = vmatmul.mubr.bf16.gmra.mrb[0].mxu0 %v407
  %v3426 = vpop.f32.mrb[0].mxu0
  %v3427 = vadd.f32 %v3356, %v3426
  %v3428 = vpop.f32.mrb[0].mxu0
  %v3429 = vadd.f32 %v3358, %v3428
  %v3430 = vpop.f32.mrb[0].mxu0
  %v3431 = vpop.f32.mrb[0].mxu0
  %3432 = vdwg.mxu0
  %3433 = vmatprep.subr.bf16.mxu0 %v2509
  %3434 = vmatpush1.bf16.msra.mxu0 %v2508
  %3435 = vmatprep.subr.bf16.mxu0 %v2512
  %3436 = vmatpush1.bf16.msra.mxu0 %v2511
  %3437 = vmatprep.subr.bf16.mxu0 %v2515
  %3438 = vmatpush1.bf16.msra.mxu0 %v2514
  %3439 = vmatprep.subr.bf16.mxu0 %v2518
  %3440 = vmatpush1.bf16.msra.mxu0 %v2517
  %3441 = vmatprep.subr.bf16.mxu0 %v2521
  %3442 = vmatpush1.bf16.msra.mxu0 %v2520
  %3443 = vmatprep.subr.bf16.mxu0 %v2524
  %3444 = vmatpush1.bf16.msra.mxu0 %v2523
  %3445 = vmatprep.subr.bf16.mxu0 %v2527
  %3446 = vmatpush1.bf16.msra.mxu0 %v2526
  %3447 = vmatprep.subr.bf16.mxu0 %v2530
  %3448 = vmatpush1.bf16.msra.mxu0 %v2529
  %3449 = vmatprep.subr.bf16.mxu0 %v2533
  %3450 = vmatpush1.bf16.msra.mxu0 %v2532
  %3451 = vmatprep.subr.bf16.mxu0 %v2536
  %3452 = vmatpush1.bf16.msra.mxu0 %v2535
  %3453 = vmatprep.subr.bf16.mxu0 %v2539
  %3454 = vmatpush1.bf16.msra.mxu0 %v2538
  %3455 = vmatprep.subr.bf16.mxu0 %v2542
  %3456 = vmatpush1.bf16.msra.mxu0 %v2541
  %3457 = vmatprep.subr.bf16.mxu0 %v2545
  %3458 = vmatpush1.bf16.msra.mxu0 %v2544
  %3459 = vmatprep.subr.bf16.mxu0 %v2548
  %3460 = vmatpush1.bf16.msra.mxu0 %v2547
  %3461 = vmatprep.subr.bf16.mxu0 %v2551
  %3462 = vmatpush1.bf16.msra.mxu0 %v2550
  %3463 = vmatprep.subr.bf16.mxu0 %v2554
  %3464 = vmatpush1.bf16.msra.mxu0 %v2553
  %3465 = vmatprep.mubr.bf16.mxu0 %v359
  %3466 = vmatmul.mubr.bf16.gmra.mrb[0].mxu0 %v358
  %v3467 = vpop.f32.mrb[0].mxu0
  %v3468 = vadd.f32 %v3397, %v3467
  %v3469 = vpop.f32.mrb[0].mxu0
  %v3470 = vadd.f32 %v3399, %v3469
  %v3471 = vpop.f32.mrb[0].mxu0
  %v3472 = vadd.f32 %v3401, %v3471
  %v3473 = vpop.f32.mrb[0].mxu0
  %v3474 = vadd.f32 %v3403, %v3473
  %3475 = vmatprep.mubr.bf16.mxu0 %v376
  %3476 = vmatmul.mubr.bf16.gmra.mrb[0].mxu0 %v375
  %v3477 = vpop.f32.mrb[0].mxu0
  %v3478 = vadd.f32 %v3407, %v3477
  %v3479 = vpop.f32.mrb[0].mxu0
  %v3480 = vadd.f32 %v3409, %v3479
  %v3481 = vpop.f32.mrb[0].mxu0
  %v3482 = vadd.f32 %v3411, %v3481
  %v3483 = vpop.f32.mrb[0].mxu0
  %v3484 = vadd.f32 %v3413, %v3483
  %3485 = vmatprep.mubr.bf16.mxu0 %v393
  %3486 = vmatmul.mubr.bf16.gmra.mrb[0].mxu0 %v392
  %v3487 = vpop.f32.mrb[0].mxu0
  %v3488 = vadd.f32 %v3417, %v3487
  %v3489 = vpop.f32.mrb[0].mxu0
  %v3490 = vadd.f32 %v3419, %v3489
  %v3491 = vpop.f32.mrb[0].mxu0
  %v3492 = vadd.f32 %v3421, %v3491
  %v3493 = vpop.f32.mrb[0].mxu0
  %v3494 = vadd.f32 %v3423, %v3493
  %3495 = vmatprep.mubr.bf16.mxu0 %v410
  %3496 = vmatmul.mubr.bf16.gmra.mrb[0].mxu0 %v409
  %v3497 = vpop.f32.mrb[0].mxu0
  %v3498 = vadd.f32 %v3427, %v3497
  %v3499 = vpop.f32.mrb[0].mxu0
  %v3500 = vadd.f32 %v3429, %v3499
  %v3501 = vpop.f32.mrb[0].mxu0
  %v3502 = vpop.f32.mrb[0].mxu0
  %3503 = vdwg.mxu0
  %3504 = vmatprep.subr.bf16.mxu0 %v2557
  %3505 = vmatpush1.bf16.msra.mxu0 %v2556
  %3506 = vmatprep.subr.bf16.mxu0 %v2560
  %3507 = vmatpush1.bf16.msra.mxu0 %v2559
  %3508 = vmatprep.subr.bf16.mxu0 %v2563
  %3509 = vmatpush1.bf16.msra.mxu0 %v2562
  %3510 = vmatprep.subr.bf16.mxu0 %v2566
  %3511 = vmatpush1.bf16.msra.mxu0 %v2565
  %3512 = vmatprep.subr.bf16.mxu0 %v2569
  %3513 = vmatpush1.bf16.msra.mxu0 %v2568
  %3514 = vmatprep.subr.bf16.mxu0 %v2572
  %3515 = vmatpush1.bf16.msra.mxu0 %v2571
  %3516 = vmatprep.subr.bf16.mxu0 %v2575
  %3517 = vmatpush1.bf16.msra.mxu0 %v2574
  %3518 = vmatprep.subr.bf16.mxu0 %v2578
  %3519 = vmatpush1.bf16.msra.mxu0 %v2577
  %3520 = vmatprep.subr.bf16.mxu0 %v2581
  %3521 = vmatpush1.bf16.msra.mxu0 %v2580
  %3522 = vmatprep.subr.bf16.mxu0 %v2584
  %3523 = vmatpush1.bf16.msra.mxu0 %v2583
  %3524 = vmatprep.subr.bf16.mxu0 %v2587
  %3525 = vmatpush1.bf16.msra.mxu0 %v2586
  %3526 = vmatprep.subr.bf16.mxu0 %v2590
  %3527 = vmatpush1.bf16.msra.mxu0 %v2589
  %3528 = vmatprep.subr.bf16.mxu0 %v2593
  %3529 = vmatpush1.bf16.msra.mxu0 %v2592
  %3530 = vmatprep.subr.bf16.mxu0 %v2596
  %3531 = vmatpush1.bf16.msra.mxu0 %v2595
  %3532 = vmatprep.subr.bf16.mxu0 %v2599
  %3533 = vmatpush1.bf16.msra.mxu0 %v2598
  %3534 = vmatprep.subr.bf16.mxu0 %v2602
  %3535 = vmatpush1.bf16.msra.mxu0 %v2601
  %3536 = vmatprep.mubr.bf16.mxu0 %v361
  %3537 = vmatmul.mubr.bf16.gmra.mrb[0].mxu0 %v360
  %v3538 = vpop.f32.mrb[0].mxu0
  %v3539 = vadd.f32 %v3468, %v3538
  %v3540 = vpop.f32.mrb[0].mxu0
  %v3541 = vadd.f32 %v3470, %v3540
  %v3542 = vpop.f32.mrb[0].mxu0
  %v3543 = vadd.f32 %v3472, %v3542
  %v3544 = vpop.f32.mrb[0].mxu0
  %v3545 = vadd.f32 %v3474, %v3544
  %3546 = vmatprep.mubr.bf16.mxu0 %v378
  %3547 = vmatmul.mubr.bf16.gmra.mrb[0].mxu0 %v377
  %v3548 = vpop.f32.mrb[0].mxu0
  %v3549 = vadd.f32 %v3478, %v3548
  %v3550 = vpop.f32.mrb[0].mxu0
  %v3551 = vadd.f32 %v3480, %v3550
  %v3552 = vpop.f32.mrb[0].mxu0
  %v3553 = vadd.f32 %v3482, %v3552
  %v3554 = vpop.f32.mrb[0].mxu0
  %v3555 = vadd.f32 %v3484, %v3554
  %3556 = vmatprep.mubr.bf16.mxu0 %v395
  %3557 = vmatmul.mubr.bf16.gmra.mrb[0].mxu0 %v394
  %v3558 = vpop.f32.mrb[0].mxu0
  %v3559 = vadd.f32 %v3488, %v3558
  %v3560 = vpop.f32.mrb[0].mxu0
  %v3561 = vadd.f32 %v3490, %v3560
  %v3562 = vpop.f32.mrb[0].mxu0
  %v3563 = vadd.f32 %v3492, %v3562
  %v3564 = vpop.f32.mrb[0].mxu0
  %v3565 = vadd.f32 %v3494, %v3564
  %3566 = vmatprep.mubr.bf16.mxu0 %v412
  %3567 = vmatmul.mubr.bf16.gmra.mrb[0].mxu0 %v411
  %v3568 = vpop.f32.mrb[0].mxu0
  %v3569 = vadd.f32 %v3498, %v3568
  %v3570 = vpop.f32.mrb[0].mxu0
  %v3571 = vadd.f32 %v3500, %v3570
  %v3572 = vpop.f32.mrb[0].mxu0
  %v3573 = vpop.f32.mrb[0].mxu0
  %3574 = vdwg.mxu0
  %3575 = vmatprep.subr.bf16.mxu0 %v2605
  %3576 = vmatpush1.bf16.msra.mxu0 %v2604
  %3577 = vmatprep.subr.bf16.mxu0 0
  %3578 = vmatpush1.bf16.msra.mxu0 0
  %3579 = vmatprep.subr.bf16.mxu0 0
  %3580 = vmatpush1.bf16.msra.mxu0 0
  %3581 = vmatprep.subr.bf16.mxu0 0
  %3582 = vmatpush1.bf16.msra.mxu0 0
  %3583 = vmatprep.subr.bf16.mxu0 0
  %3584 = vmatpush1.bf16.msra.mxu0 0
  %3585 = vmatprep.subr.bf16.mxu0 0
  %3586 = vmatpush1.bf16.msra.mxu0 0
  %3587 = vmatprep.subr.bf16.mxu0 0
  %3588 = vmatpush1.bf16.msra.mxu0 0
  %3589 = vmatprep.subr.bf16.mxu0 0
  %3590 = vmatpush1.bf16.msra.mxu0 0
  %3591 = vmatprep.subr.bf16.mxu0 0
  %3592 = vmatpush1.bf16.msra.mxu0 0
  %3593 = vmatprep.subr.bf16.mxu0 0
  %3594 = vmatpush1.bf16.msra.mxu0 0
  %3595 = vmatprep.subr.bf16.mxu0 0
  %3596 = vmatpush1.bf16.msra.mxu0 0
  %3597 = vmatprep.subr.bf16.mxu0 0
  %3598 = vmatpush1.bf16.msra.mxu0 0
  %3599 = vmatprep.subr.bf16.mxu0 0
  %3600 = vmatpush1.bf16.msra.mxu0 0
  %3601 = vmatprep.subr.bf16.mxu0 0
  %3602 = vmatpush1.bf16.msra.mxu0 0
  %3603 = vmatprep.subr.bf16.mxu0 0
  %3604 = vmatpush1.bf16.msra.mxu0 0
  %3605 = vmatprep.subr.bf16.mxu0 0
  %3606 = vmatpush1.bf16.msra.mxu0 0
  %3607 = vmatprep.mubr.bf16.mxu0 0
  %3608 = vmatmul.mubr.bf16.gmra.mrb[0].mxu0 %v2996
  %v3609 = vpop.f32.mrb[0].mxu0
  %v3610 = vadd.f32 %v3539, %v3609
  %v3611 = vpop.f32.mrb[0].mxu0
  %v3612 = vadd.f32 %v3541, %v3611
  %v3613 = vpop.f32.mrb[0].mxu0
  %v3614 = vadd.f32 %v3543, %v3613
  %v3615 = vpop.f32.mrb[0].mxu0
  %v3616 = vadd.f32 %v3545, %v3615
  %3617 = vmatprep.mubr.bf16.mxu0 0
  %3618 = vmatmul.mubr.bf16.gmra.mrb[0].mxu0 %v2999
  %v3619 = vpop.f32.mrb[0].mxu0
  %v3620 = vadd.f32 %v3549, %v3619
  %v3621 = vpop.f32.mrb[0].mxu0
  %v3622 = vadd.f32 %v3551, %v3621
  %v3623 = vpop.f32.mrb[0].mxu0
  %v3624 = vadd.f32 %v3553, %v3623
  %v3625 = vpop.f32.mrb[0].mxu0
  %v3626 = vadd.f32 %v3555, %v3625
  %3627 = vmatprep.mubr.bf16.mxu0 0
  %3628 = vmatmul.mubr.bf16.gmra.mrb[0].mxu0 %v3002
  %v3629 = vpop.f32.mrb[0].mxu0
  %v3630 = vadd.f32 %v3559, %v3629
  %v3631 = vpop.f32.mrb[0].mxu0
  %v3632 = vadd.f32 %v3561, %v3631
  %v3633 = vpop.f32.mrb[0].mxu0
  %v3634 = vadd.f32 %v3563, %v3633
  %v3635 = vpop.f32.mrb[0].mxu0
  %v3636 = vadd.f32 %v3565, %v3635
  %3637 = vmatprep.mubr.bf16.mxu0 0
  %3638 = vmatmul.mubr.bf16.gmra.mrb[0].mxu0 %v3005
  %v3639 = vpop.f32.mrb[0].mxu0
  %v3640 = vadd.f32 %v3569, %v3639
  %v3641 = vpop.f32.mrb[0].mxu0
  %v3642 = vadd.f32 %v3571, %v3641
  %v3643 = vpop.f32.mrb[0].mxu0
  %v3644 = vpop.f32.mrb[0].mxu0
  %3645 = vdwg.mxu0
  %3646 = vmatprep.subr.bf16.mxu0 0
  %3647 = vmatpush1.bf16.msra.mxu0 %v2222
  %3648 = vmatprep.subr.bf16.mxu0 0
  %3649 = vmatpush1.bf16.msra.mxu0 %v2225
  %3650 = vmatprep.subr.bf16.mxu0 0
  %3651 = vmatpush1.bf16.msra.mxu0 %v2228
  %3652 = vmatprep.subr.bf16.mxu0 0
  %3653 = vmatpush1.bf16.msra.mxu0 %v2231
  %3654 = vmatprep.subr.bf16.mxu0 0
  %3655 = vmatpush1.bf16.msra.mxu0 %v2234
  %3656 = vmatprep.subr.bf16.mxu0 0
  %3657 = vmatpush1.bf16.msra.mxu0 %v2237
  %3658 = vmatprep.subr.bf16.mxu0 0
  %3659 = vmatpush1.bf16.msra.mxu0 %v2240
  %3660 = vmatprep.subr.bf16.mxu0 0
  %3661 = vmatpush1.bf16.msra.mxu0 %v2243
  %3662 = vmatprep.subr.bf16.mxu0 0
  %3663 = vmatpush1.bf16.msra.mxu0 %v2246
  %3664 = vmatprep.subr.bf16.mxu0 0
  %3665 = vmatpush1.bf16.msra.mxu0 %v2249
  %3666 = vmatprep.subr.bf16.mxu0 0
  %3667 = vmatpush1.bf16.msra.mxu0 %v2252
  %3668 = vmatprep.subr.bf16.mxu0 0
  %3669 = vmatpush1.bf16.msra.mxu0 %v2255
  %3670 = vmatprep.subr.bf16.mxu0 0
  %3671 = vmatpush1.bf16.msra.mxu0 %v2258
  %3672 = vmatprep.subr.bf16.mxu0 0
  %3673 = vmatpush1.bf16.msra.mxu0 %v2261
  %3674 = vmatprep.subr.bf16.mxu0 0
  %3675 = vmatpush1.bf16.msra.mxu0 %v2264
  %3676 = vmatprep.subr.bf16.mxu0 0
  %3677 = vmatpush1.bf16.msra.mxu0 %v2267
  %3678 = vmatprep.mubr.bf16.mxu0 %v347
  %3679 = vmatmul.mubr.bf16.gmra.mrb[0].mxu0 %v346
  %v3680 = vpop.f32.mrb[0].mxu0
  %v3681 = vadd.f32 0.0, %v3680
  %v3682 = vpop.f32.mrb[0].mxu0
  %v3683 = vpop.f32.mrb[0].mxu0
  %v3684 = vadd.f32 0.0, %v3683
  %v3685 = vpop.f32.mrb[0].mxu0
  %3686 = vmatprep.mubr.bf16.mxu0 %v364
  %3687 = vmatmul.mubr.bf16.gmra.mrb[0].mxu0 %v363
  %v3688 = vpop.f32.mrb[0].mxu0
  %v3689 = vadd.f32 0.0, %v3688
  %v3690 = vpop.f32.mrb[0].mxu0
  %v3691 = vpop.f32.mrb[0].mxu0
  %v3692 = vadd.f32 0.0, %v3691
  %v3693 = vpop.f32.mrb[0].mxu0
  %3694 = vmatprep.mubr.bf16.mxu0 %v381
  %3695 = vmatmul.mubr.bf16.gmra.mrb[0].mxu0 %v380
  %v3696 = vpop.f32.mrb[0].mxu0
  %v3697 = vadd.f32 0.0, %v3696
  %v3698 = vpop.f32.mrb[0].mxu0
  %v3699 = vpop.f32.mrb[0].mxu0
  %v3700 = vadd.f32 0.0, %v3699
  %v3701 = vpop.f32.mrb[0].mxu0
  %3702 = vmatprep.mubr.bf16.mxu0 %v398
  %3703 = vmatmul.mubr.bf16.gmra.mrb[0].mxu0 %v397
  %v3704 = vpop.f32.mrb[0].mxu0
  %v3705 = vadd.f32 0.0, %v3704
  %v3706 = vpop.f32.mrb[0].mxu0
  %v3707 = vpop.f32.mrb[0].mxu0
  %v3708 = vpop.f32.mrb[0].mxu0
  %3709 = vdwg.mxu0
  %3710 = vmatprep.subr.bf16.mxu0 0
  %3711 = vmatpush1.bf16.msra.mxu0 %v2270
  %3712 = vmatprep.subr.bf16.mxu0 0
  %3713 = vmatpush1.bf16.msra.mxu0 %v2273
  %3714 = vmatprep.subr.bf16.mxu0 0
  %3715 = vmatpush1.bf16.msra.mxu0 %v2276
  %3716 = vmatprep.subr.bf16.mxu0 0
  %3717 = vmatpush1.bf16.msra.mxu0 %v2279
  %3718 = vmatprep.subr.bf16.mxu0 0
  %3719 = vmatpush1.bf16.msra.mxu0 %v2282
  %3720 = vmatprep.subr.bf16.mxu0 0
  %3721 = vmatpush1.bf16.msra.mxu0 %v2285
  %3722 = vmatprep.subr.bf16.mxu0 0
  %3723 = vmatpush1.bf16.msra.mxu0 %v2288
  %3724 = vmatprep.subr.bf16.mxu0 0
  %3725 = vmatpush1.bf16.msra.mxu0 %v2291
  %3726 = vmatprep.subr.bf16.mxu0 0
  %3727 = vmatpush1.bf16.msra.mxu0 %v2294
  %3728 = vmatprep.subr.bf16.mxu0 0
  %3729 = vmatpush1.bf16.msra.mxu0 %v2297
  %3730 = vmatprep.subr.bf16.mxu0 0
  %3731 = vmatpush1.bf16.msra.mxu0 %v2300
  %3732 = vmatprep.subr.bf16.mxu0 0
  %3733 = vmatpush1.bf16.msra.mxu0 %v2303
  %3734 = vmatprep.subr.bf16.mxu0 0
  %3735 = vmatpush1.bf16.msra.mxu0 %v2306
  %3736 = vmatprep.subr.bf16.mxu0 0
  %3737 = vmatpush1.bf16.msra.mxu0 %v2309
  %3738 = vmatprep.subr.bf16.mxu0 0
  %3739 = vmatpush1.bf16.msra.mxu0 %v2312
  %3740 = vmatprep.subr.bf16.mxu0 0
  %3741 = vmatpush1.bf16.msra.mxu0 %v2315
  %3742 = vmatprep.mubr.bf16.mxu0 %v349
  %3743 = vmatmul.mubr.bf16.gmra.mrb[0].mxu0 %v348
  %v3744 = vpop.f32.mrb[0].mxu0
  %v3745 = vadd.f32 %v3681, %v3744
  %v3746 = vpop.f32.mrb[0].mxu0
  %v3747 = vpop.f32.mrb[0].mxu0
  %v3748 = vadd.f32 %v3684, %v3747
  %v3749 = vpop.f32.mrb[0].mxu0
  %3750 = vmatprep.mubr.bf16.mxu0 %v366
  %3751 = vmatmul.mubr.bf16.gmra.mrb[0].mxu0 %v365
  %v3752 = vpop.f32.mrb[0].mxu0
  %v3753 = vadd.f32 %v3689, %v3752
  %v3754 = vpop.f32.mrb[0].mxu0
  %v3755 = vpop.f32.mrb[0].mxu0
  %v3756 = vadd.f32 %v3692, %v3755
  %v3757 = vpop.f32.mrb[0].mxu0
  %3758 = vmatprep.mubr.bf16.mxu0 %v383
  %3759 = vmatmul.mubr.bf16.gmra.mrb[0].mxu0 %v382
  %v3760 = vpop.f32.mrb[0].mxu0
  %v3761 = vadd.f32 %v3697, %v3760
  %v3762 = vpop.f32.mrb[0].mxu0
  %v3763 = vpop.f32.mrb[0].mxu0
  %v3764 = vadd.f32 %v3700, %v3763
  %v3765 = vpop.f32.mrb[0].mxu0
  %3766 = vmatprep.mubr.bf16.mxu0 %v400
  %3767 = vmatmul.mubr.bf16.gmra.mrb[0].mxu0 %v399
  %v3768 = vpop.f32.mrb[0].mxu0
  %v3769 = vadd.f32 %v3705, %v3768
  %v3770 = vpop.f32.mrb[0].mxu0
  %v3771 = vpop.f32.mrb[0].mxu0
  %v3772 = vpop.f32.mrb[0].mxu0
  %3773 = vdwg.mxu0
  %3774 = vmatprep.subr.bf16.mxu0 0
  %3775 = vmatpush1.bf16.msra.mxu0 %v2318
  %3776 = vmatprep.subr.bf16.mxu0 0
  %3777 = vmatpush1.bf16.msra.mxu0 %v2321
  %3778 = vmatprep.subr.bf16.mxu0 0
  %3779 = vmatpush1.bf16.msra.mxu0 %v2324
  %3780 = vmatprep.subr.bf16.mxu0 0
  %3781 = vmatpush1.bf16.msra.mxu0 %v2327
  %3782 = vmatprep.subr.bf16.mxu0 0
  %3783 = vmatpush1.bf16.msra.mxu0 %v2330
  %3784 = vmatprep.subr.bf16.mxu0 0
  %3785 = vmatpush1.bf16.msra.mxu0 %v2333
  %3786 = vmatprep.subr.bf16.mxu0 0
  %3787 = vmatpush1.bf16.msra.mxu0 %v2336
  %3788 = vmatprep.subr.bf16.mxu0 0
  %3789 = vmatpush1.bf16.msra.mxu0 %v2339
  %3790 = vmatprep.subr.bf16.mxu0 0
  %3791 = vmatpush1.bf16.msra.mxu0 %v2342
  %3792 = vmatprep.subr.bf16.mxu0 0
  %3793 = vmatpush1.bf16.msra.mxu0 %v2345
  %3794 = vmatprep.subr.bf16.mxu0 0
  %3795 = vmatpush1.bf16.msra.mxu0 %v2348
  %3796 = vmatprep.subr.bf16.mxu0 0
  %3797 = vmatpush1.bf16.msra.mxu0 %v2351
  %3798 = vmatprep.subr.bf16.mxu0 0
  %3799 = vmatpush1.bf16.msra.mxu0 %v2354
  %3800 = vmatprep.subr.bf16.mxu0 0
  %3801 = vmatpush1.bf16.msra.mxu0 %v2357
  %3802 = vmatprep.subr.bf16.mxu0 0
  %3803 = vmatpush1.bf16.msra.mxu0 %v2360
  %3804 = vmatprep.subr.bf16.mxu0 0
  %3805 = vmatpush1.bf16.msra.mxu0 %v2363
  %3806 = vmatprep.mubr.bf16.mxu0 %v351
  %3807 = vmatmul.mubr.bf16.gmra.mrb[0].mxu0 %v350
  %v3808 = vpop.f32.mrb[0].mxu0
  %v3809 = vadd.f32 %v3745, %v3808
  %v3810 = vpop.f32.mrb[0].mxu0
  %v3811 = vpop.f32.mrb[0].mxu0
  %v3812 = vadd.f32 %v3748, %v3811
  %v3813 = vpop.f32.mrb[0].mxu0
  %3814 = vmatprep.mubr.bf16.mxu0 %v368
  %3815 = vmatmul.mubr.bf16.gmra.mrb[0].mxu0 %v367
  %v3816 = vpop.f32.mrb[0].mxu0
  %v3817 = vadd.f32 %v3753, %v3816
  %v3818 = vpop.f32.mrb[0].mxu0
  %v3819 = vpop.f32.mrb[0].mxu0
  %v3820 = vadd.f32 %v3756, %v3819
  %v3821 = vpop.f32.mrb[0].mxu0
  %3822 = vmatprep.mubr.bf16.mxu0 %v385
  %3823 = vmatmul.mubr.bf16.gmra.mrb[0].mxu0 %v384
  %v3824 = vpop.f32.mrb[0].mxu0
  %v3825 = vadd.f32 %v3761, %v3824
  %v3826 = vpop.f32.mrb[0].mxu0
  %v3827 = vpop.f32.mrb[0].mxu0
  %v3828 = vadd.f32 %v3764, %v3827
  %v3829 = vpop.f32.mrb[0].mxu0
  %3830 = vmatprep.mubr.bf16.mxu0 %v402
  %3831 = vmatmul.mubr.bf16.gmra.mrb[0].mxu0 %v401
  %v3832 = vpop.f32.mrb[0].mxu0
  %v3833 = vadd.f32 %v3769, %v3832
  %v3834 = vpop.f32.mrb[0].mxu0
  %v3835 = vpop.f32.mrb[0].mxu0
  %v3836 = vpop.f32.mrb[0].mxu0
  %3837 = vdwg.mxu0
  %3838 = vmatprep.subr.bf16.mxu0 0
  %3839 = vmatpush1.bf16.msra.mxu0 %v2366
  %3840 = vmatprep.subr.bf16.mxu0 0
  %3841 = vmatpush1.bf16.msra.mxu0 %v2369
  %3842 = vmatprep.subr.bf16.mxu0 0
  %3843 = vmatpush1.bf16.msra.mxu0 %v2372
  %3844 = vmatprep.subr.bf16.mxu0 0
  %3845 = vmatpush1.bf16.msra.mxu0 %v2375
  %3846 = vmatprep.subr.bf16.mxu0 0
  %3847 = vmatpush1.bf16.msra.mxu0 %v2378
  %3848 = vmatprep.subr.bf16.mxu0 0
  %3849 = vmatpush1.bf16.msra.mxu0 %v2381
  %3850 = vmatprep.subr.bf16.mxu0 0
  %3851 = vmatpush1.bf16.msra.mxu0 %v2384
  %3852 = vmatprep.subr.bf16.mxu0 0
  %3853 = vmatpush1.bf16.msra.mxu0 %v2387
  %3854 = vmatprep.subr.bf16.mxu0 0
  %3855 = vmatpush1.bf16.msra.mxu0 %v2390
  %3856 = vmatprep.subr.bf16.mxu0 0
  %3857 = vmatpush1.bf16.msra.mxu0 %v2393
  %3858 = vmatprep.subr.bf16.mxu0 0
  %3859 = vmatpush1.bf16.msra.mxu0 %v2396
  %3860 = vmatprep.subr.bf16.mxu0 0
  %3861 = vmatpush1.bf16.msra.mxu0 %v2399
  %3862 = vmatprep.subr.bf16.mxu0 0
  %3863 = vmatpush1.bf16.msra.mxu0 %v2402
  %3864 = vmatprep.subr.bf16.mxu0 0
  %3865 = vmatpush1.bf16.msra.mxu0 %v2405
  %3866 = vmatprep.subr.bf16.mxu0 0
  %3867 = vmatpush1.bf16.msra.mxu0 %v2408
  %3868 = vmatprep.subr.bf16.mxu0 0
  %3869 = vmatpush1.bf16.msra.mxu0 %v2411
  %3870 = vmatprep.mubr.bf16.mxu0 %v353
  %3871 = vmatmul.mubr.bf16.gmra.mrb[0].mxu0 %v352
  %v3872 = vpop.f32.mrb[0].mxu0
  %v3873 = vadd.f32 %v3809, %v3872
  %v3874 = vpop.f32.mrb[0].mxu0
  %v3875 = vpop.f32.mrb[0].mxu0
  %v3876 = vadd.f32 %v3812, %v3875
  %v3877 = vpop.f32.mrb[0].mxu0
  %3878 = vmatprep.mubr.bf16.mxu0 %v370
  %3879 = vmatmul.mubr.bf16.gmra.mrb[0].mxu0 %v369
  %v3880 = vpop.f32.mrb[0].mxu0
  %v3881 = vadd.f32 %v3817, %v3880
  %v3882 = vpop.f32.mrb[0].mxu0
  %v3883 = vpop.f32.mrb[0].mxu0
  %v3884 = vadd.f32 %v3820, %v3883
  %v3885 = vpop.f32.mrb[0].mxu0
  %3886 = vmatprep.mubr.bf16.mxu0 %v387
  %3887 = vmatmul.mubr.bf16.gmra.mrb[0].mxu0 %v386
  %v3888 = vpop.f32.mrb[0].mxu0
  %v3889 = vadd.f32 %v3825, %v3888
  %v3890 = vpop.f32.mrb[0].mxu0
  %v3891 = vpop.f32.mrb[0].mxu0
  %v3892 = vadd.f32 %v3828, %v3891
  %v3893 = vpop.f32.mrb[0].mxu0
  %3894 = vmatprep.mubr.bf16.mxu0 %v404
  %3895 = vmatmul.mubr.bf16.gmra.mrb[0].mxu0 %v403
  %v3896 = vpop.f32.mrb[0].mxu0
  %v3897 = vadd.f32 %v3833, %v3896
  %v3898 = vpop.f32.mrb[0].mxu0
  %v3899 = vpop.f32.mrb[0].mxu0
  %v3900 = vpop.f32.mrb[0].mxu0
  %3901 = vdwg.mxu0
  %3902 = vmatprep.subr.bf16.mxu0 0
  %3903 = vmatpush1.bf16.msra.mxu0 %v2414
  %3904 = vmatprep.subr.bf16.mxu0 0
  %3905 = vmatpush1.bf16.msra.mxu0 %v2417
  %3906 = vmatprep.subr.bf16.mxu0 0
  %3907 = vmatpush1.bf16.msra.mxu0 %v2420
  %3908 = vmatprep.subr.bf16.mxu0 0
  %3909 = vmatpush1.bf16.msra.mxu0 %v2423
  %3910 = vmatprep.subr.bf16.mxu0 0
  %3911 = vmatpush1.bf16.msra.mxu0 %v2426
  %3912 = vmatprep.subr.bf16.mxu0 0
  %3913 = vmatpush1.bf16.msra.mxu0 %v2429
  %3914 = vmatprep.subr.bf16.mxu0 0
  %3915 = vmatpush1.bf16.msra.mxu0 %v2432
  %3916 = vmatprep.subr.bf16.mxu0 0
  %3917 = vmatpush1.bf16.msra.mxu0 %v2435
  %3918 = vmatprep.subr.bf16.mxu0 0
  %3919 = vmatpush1.bf16.msra.mxu0 %v2438
  %3920 = vmatprep.subr.bf16.mxu0 0
  %3921 = vmatpush1.bf16.msra.mxu0 %v2441
  %3922 = vmatprep.subr.bf16.mxu0 0
  %3923 = vmatpush1.bf16.msra.mxu0 %v2444
  %3924 = vmatprep.subr.bf16.mxu0 0
  %3925 = vmatpush1.bf16.msra.mxu0 %v2447
  %3926 = vmatprep.subr.bf16.mxu0 0
  %3927 = vmatpush1.bf16.msra.mxu0 %v2450
  %3928 = vmatprep.subr.bf16.mxu0 0
  %3929 = vmatpush1.bf16.msra.mxu0 %v2453
  %3930 = vmatprep.subr.bf16.mxu0 0
  %3931 = vmatpush1.bf16.msra.mxu0 %v2456
  %3932 = vmatprep.subr.bf16.mxu0 0
  %3933 = vmatpush1.bf16.msra.mxu0 %v2459
  %3934 = vmatprep.mubr.bf16.mxu0 %v355
  %3935 = vmatmul.mubr.bf16.gmra.mrb[0].mxu0 %v354
  %v3936 = vpop.f32.mrb[0].mxu0
  %v3937 = vadd.f32 %v3873, %v3936
  %v3938 = vpop.f32.mrb[0].mxu0
  %v3939 = vpop.f32.mrb[0].mxu0
  %v3940 = vadd.f32 %v3876, %v3939
  %v3941 = vpop.f32.mrb[0].mxu0
  %3942 = vmatprep.mubr.bf16.mxu0 %v372
  %3943 = vmatmul.mubr.bf16.gmra.mrb[0].mxu0 %v371
  %v3944 = vpop.f32.mrb[0].mxu0
  %v3945 = vadd.f32 %v3881, %v3944
  %v3946 = vpop.f32.mrb[0].mxu0
  %v3947 = vpop.f32.mrb[0].mxu0
  %v3948 = vadd.f32 %v3884, %v3947
  %v3949 = vpop.f32.mrb[0].mxu0
  %3950 = vmatprep.mubr.bf16.mxu0 %v389
  %3951 = vmatmul.mubr.bf16.gmra.mrb[0].mxu0 %v388
  %v3952 = vpop.f32.mrb[0].mxu0
  %v3953 = vadd.f32 %v3889, %v3952
  %v3954 = vpop.f32.mrb[0].mxu0
  %v3955 = vpop.f32.mrb[0].mxu0
  %v3956 = vadd.f32 %v3892, %v3955
  %v3957 = vpop.f32.mrb[0].mxu0
  %3958 = vmatprep.mubr.bf16.mxu0 %v406
  %3959 = vmatmul.mubr.bf16.gmra.mrb[0].mxu0 %v405
  %v3960 = vpop.f32.mrb[0].mxu0
  %v3961 = vadd.f32 %v3897, %v3960
  %v3962 = vpop.f32.mrb[0].mxu0
  %v3963 = vpop.f32.mrb[0].mxu0
  %v3964 = vpop.f32.mrb[0].mxu0
  %3965 = vdwg.mxu0
  %3966 = vmatprep.subr.bf16.mxu0 0
  %3967 = vmatpush1.bf16.msra.mxu0 %v2462
  %3968 = vmatprep.subr.bf16.mxu0 0
  %3969 = vmatpush1.bf16.msra.mxu0 %v2465
  %3970 = vmatprep.subr.bf16.mxu0 0
  %3971 = vmatpush1.bf16.msra.mxu0 %v2468
  %3972 = vmatprep.subr.bf16.mxu0 0
  %3973 = vmatpush1.bf16.msra.mxu0 %v2471
  %3974 = vmatprep.subr.bf16.mxu0 0
  %3975 = vmatpush1.bf16.msra.mxu0 %v2474
  %3976 = vmatprep.subr.bf16.mxu0 0
  %3977 = vmatpush1.bf16.msra.mxu0 %v2477
  %3978 = vmatprep.subr.bf16.mxu0 0
  %3979 = vmatpush1.bf16.msra.mxu0 %v2480
  %3980 = vmatprep.subr.bf16.mxu0 0
  %3981 = vmatpush1.bf16.msra.mxu0 %v2483
  %3982 = vmatprep.subr.bf16.mxu0 0
  %3983 = vmatpush1.bf16.msra.mxu0 %v2486
  %3984 = vmatprep.subr.bf16.mxu0 0
  %3985 = vmatpush1.bf16.msra.mxu0 %v2489
  %3986 = vmatprep.subr.bf16.mxu0 0
  %3987 = vmatpush1.bf16.msra.mxu0 %v2492
  %3988 = vmatprep.subr.bf16.mxu0 0
  %3989 = vmatpush1.bf16.msra.mxu0 %v2495
  %3990 = vmatprep.subr.bf16.mxu0 0
  %3991 = vmatpush1.bf16.msra.mxu0 %v2498
  %3992 = vmatprep.subr.bf16.mxu0 0
  %3993 = vmatpush1.bf16.msra.mxu0 %v2501
  %3994 = vmatprep.subr.bf16.mxu0 0
  %3995 = vmatpush1.bf16.msra.mxu0 %v2504
  %3996 = vmatprep.subr.bf16.mxu0 0
  %3997 = vmatpush1.bf16.msra.mxu0 %v2507
  %3998 = vmatprep.mubr.bf16.mxu0 %v357
  %3999 = vmatmul.mubr.bf16.gmra.mrb[0].mxu0 %v356
  %v4000 = vpop.f32.mrb[0].mxu0
  %v4001 = vadd.f32 %v3937, %v4000
  %v4002 = vpop.f32.mrb[0].mxu0
  %v4003 = vpop.f32.mrb[0].mxu0
  %v4004 = vadd.f32 %v3940, %v4003
  %v4005 = vpop.f32.mrb[0].mxu0
  %4006 = vmatprep.mubr.bf16.mxu0 %v374
  %4007 = vmatmul.mubr.bf16.gmra.mrb[0].mxu0 %v373
  %v4008 = vpop.f32.mrb[0].mxu0
  %v4009 = vadd.f32 %v3945, %v4008
  %v4010 = vpop.f32.mrb[0].mxu0
  %v4011 = vpop.f32.mrb[0].mxu0
  %v4012 = vadd.f32 %v3948, %v4011
  %v4013 = vpop.f32.mrb[0].mxu0
  %4014 = vmatprep.mubr.bf16.mxu0 %v391
  %4015 = vmatmul.mubr.bf16.gmra.mrb[0].mxu0 %v390
  %v4016 = vpop.f32.mrb[0].mxu0
  %v4017 = vadd.f32 %v3953, %v4016
  %v4018 = vpop.f32.mrb[0].mxu0
  %v4019 = vpop.f32.mrb[0].mxu0
  %v4020 = vadd.f32 %v3956, %v4019
  %v4021 = vpop.f32.mrb[0].mxu0
  %4022 = vmatprep.mubr.bf16.mxu0 %v408
  %4023 = vmatmul.mubr.bf16.gmra.mrb[0].mxu0 %v407
  %v4024 = vpop.f32.mrb[0].mxu0
  %v4025 = vadd.f32 %v3961, %v4024
  %v4026 = vpop.f32.mrb[0].mxu0
  %v4027 = vpop.f32.mrb[0].mxu0
  %v4028 = vpop.f32.mrb[0].mxu0
  %4029 = vdwg.mxu0
  %4030 = vmatprep.subr.bf16.mxu0 0
  %4031 = vmatpush1.bf16.msra.mxu0 %v2510
  %4032 = vmatprep.subr.bf16.mxu0 0
  %4033 = vmatpush1.bf16.msra.mxu0 %v2513
  %4034 = vmatprep.subr.bf16.mxu0 0
  %4035 = vmatpush1.bf16.msra.mxu0 %v2516
  %4036 = vmatprep.subr.bf16.mxu0 0
  %4037 = vmatpush1.bf16.msra.mxu0 %v2519
  %4038 = vmatprep.subr.bf16.mxu0 0
  %4039 = vmatpush1.bf16.msra.mxu0 %v2522
  %4040 = vmatprep.subr.bf16.mxu0 0
  %4041 = vmatpush1.bf16.msra.mxu0 %v2525
  %4042 = vmatprep.subr.bf16.mxu0 0
  %4043 = vmatpush1.bf16.msra.mxu0 %v2528
  %4044 = vmatprep.subr.bf16.mxu0 0
  %4045 = vmatpush1.bf16.msra.mxu0 %v2531
  %4046 = vmatprep.subr.bf16.mxu0 0
  %4047 = vmatpush1.bf16.msra.mxu0 %v2534
  %4048 = vmatprep.subr.bf16.mxu0 0
  %4049 = vmatpush1.bf16.msra.mxu0 %v2537
  %4050 = vmatprep.subr.bf16.mxu0 0
  %4051 = vmatpush1.bf16.msra.mxu0 %v2540
  %4052 = vmatprep.subr.bf16.mxu0 0
  %4053 = vmatpush1.bf16.msra.mxu0 %v2543
  %4054 = vmatprep.subr.bf16.mxu0 0
  %4055 = vmatpush1.bf16.msra.mxu0 %v2546
  %4056 = vmatprep.subr.bf16.mxu0 0
  %4057 = vmatpush1.bf16.msra.mxu0 %v2549
  %4058 = vmatprep.subr.bf16.mxu0 0
  %4059 = vmatpush1.bf16.msra.mxu0 %v2552
  %4060 = vmatprep.subr.bf16.mxu0 0
  %4061 = vmatpush1.bf16.msra.mxu0 %v2555
  %4062 = vmatprep.mubr.bf16.mxu0 %v359
  %4063 = vmatmul.mubr.bf16.gmra.mrb[0].mxu0 %v358
  %v4064 = vpop.f32.mrb[0].mxu0
  %v4065 = vadd.f32 %v4001, %v4064
  %v4066 = vpop.f32.mrb[0].mxu0
  %v4067 = vpop.f32.mrb[0].mxu0
  %v4068 = vadd.f32 %v4004, %v4067
  %v4069 = vpop.f32.mrb[0].mxu0
  %4070 = vmatprep.mubr.bf16.mxu0 %v376
  %4071 = vmatmul.mubr.bf16.gmra.mrb[0].mxu0 %v375
  %v4072 = vpop.f32.mrb[0].mxu0
  %v4073 = vadd.f32 %v4009, %v4072
  %v4074 = vpop.f32.mrb[0].mxu0
  %v4075 = vpop.f32.mrb[0].mxu0
  %v4076 = vadd.f32 %v4012, %v4075
  %v4077 = vpop.f32.mrb[0].mxu0
  %4078 = vmatprep.mubr.bf16.mxu0 %v393
  %4079 = vmatmul.mubr.bf16.gmra.mrb[0].mxu0 %v392
  %v4080 = vpop.f32.mrb[0].mxu0
  %v4081 = vadd.f32 %v4017, %v4080
  %v4082 = vpop.f32.mrb[0].mxu0
  %v4083 = vpop.f32.mrb[0].mxu0
  %v4084 = vadd.f32 %v4020, %v4083
  %v4085 = vpop.f32.mrb[0].mxu0
  %4086 = vmatprep.mubr.bf16.mxu0 %v410
  %4087 = vmatmul.mubr.bf16.gmra.mrb[0].mxu0 %v409
  %v4088 = vpop.f32.mrb[0].mxu0
  %v4089 = vadd.f32 %v4025, %v4088
  %v4090 = vpop.f32.mrb[0].mxu0
  %v4091 = vpop.f32.mrb[0].mxu0
  %v4092 = vpop.f32.mrb[0].mxu0
  %4093 = vdwg.mxu0
  %4094 = vmatprep.subr.bf16.mxu0 0
  %4095 = vmatpush1.bf16.msra.mxu0 %v2558
  %4096 = vmatprep.subr.bf16.mxu0 0
  %4097 = vmatpush1.bf16.msra.mxu0 %v2561
  %4098 = vmatprep.subr.bf16.mxu0 0
  %4099 = vmatpush1.bf16.msra.mxu0 %v2564
  %4100 = vmatprep.subr.bf16.mxu0 0
  %4101 = vmatpush1.bf16.msra.mxu0 %v2567
  %4102 = vmatprep.subr.bf16.mxu0 0
  %4103 = vmatpush1.bf16.msra.mxu0 %v2570
  %4104 = vmatprep.subr.bf16.mxu0 0
  %4105 = vmatpush1.bf16.msra.mxu0 %v2573
  %4106 = vmatprep.subr.bf16.mxu0 0
  %4107 = vmatpush1.bf16.msra.mxu0 %v2576
  %4108 = vmatprep.subr.bf16.mxu0 0
  %4109 = vmatpush1.bf16.msra.mxu0 %v2579
  %4110 = vmatprep.subr.bf16.mxu0 0
  %4111 = vmatpush1.bf16.msra.mxu0 %v2582
  %4112 = vmatprep.subr.bf16.mxu0 0
  %4113 = vmatpush1.bf16.msra.mxu0 %v2585
  %4114 = vmatprep.subr.bf16.mxu0 0
  %4115 = vmatpush1.bf16.msra.mxu0 %v2588
  %4116 = vmatprep.subr.bf16.mxu0 0
  %4117 = vmatpush1.bf16.msra.mxu0 %v2591
  %4118 = vmatprep.subr.bf16.mxu0 0
  %4119 = vmatpush1.bf16.msra.mxu0 %v2594
  %4120 = vmatprep.subr.bf16.mxu0 0
  %4121 = vmatpush1.bf16.msra.mxu0 %v2597
  %4122 = vmatprep.subr.bf16.mxu0 0
  %4123 = vmatpush1.bf16.msra.mxu0 %v2600
  %4124 = vmatprep.subr.bf16.mxu0 0
  %4125 = vmatpush1.bf16.msra.mxu0 %v2603
  %4126 = vmatprep.mubr.bf16.mxu0 %v361
  %4127 = vmatmul.mubr.bf16.gmra.mrb[0].mxu0 %v360
  %v4128 = vpop.f32.mrb[0].mxu0
  %v4129 = vadd.f32 %v4065, %v4128
  %v4130 = vpop.f32.mrb[0].mxu0
  %v4131 = vpop.f32.mrb[0].mxu0
  %v4132 = vadd.f32 %v4068, %v4131
  %v4133 = vpop.f32.mrb[0].mxu0
  %4134 = vmatprep.mubr.bf16.mxu0 %v378
  %4135 = vmatmul.mubr.bf16.gmra.mrb[0].mxu0 %v377
  %v4136 = vpop.f32.mrb[0].mxu0
  %v4137 = vadd.f32 %v4073, %v4136
  %v4138 = vpop.f32.mrb[0].mxu0
  %v4139 = vpop.f32.mrb[0].mxu0
  %v4140 = vadd.f32 %v4076, %v4139
  %v4141 = vpop.f32.mrb[0].mxu0
  %4142 = vmatprep.mubr.bf16.mxu0 %v395
  %4143 = vmatmul.mubr.bf16.gmra.mrb[0].mxu0 %v394
  %v4144 = vpop.f32.mrb[0].mxu0
  %v4145 = vadd.f32 %v4081, %v4144
  %v4146 = vpop.f32.mrb[0].mxu0
  %v4147 = vpop.f32.mrb[0].mxu0
  %v4148 = vadd.f32 %v4084, %v4147
  %v4149 = vpop.f32.mrb[0].mxu0
  %4150 = vmatprep.mubr.bf16.mxu0 %v412
  %4151 = vmatmul.mubr.bf16.gmra.mrb[0].mxu0 %v411
  %v4152 = vpop.f32.mrb[0].mxu0
  %v4153 = vadd.f32 %v4089, %v4152
  %v4154 = vpop.f32.mrb[0].mxu0
  %v4155 = vpop.f32.mrb[0].mxu0
  %v4156 = vpop.f32.mrb[0].mxu0
  %4157 = vdwg.mxu0
  %4158 = vmatprep.subr.bf16.mxu0 0
  %4159 = vmatpush1.bf16.msra.mxu0 %v2606
  %4160 = vmatprep.subr.bf16.mxu0 0
  %4161 = vmatpush1.bf16.msra.mxu0 0
  %4162 = vmatprep.subr.bf16.mxu0 0
  %4163 = vmatpush1.bf16.msra.mxu0 0
  %4164 = vmatprep.subr.bf16.mxu0 0
  %4165 = vmatpush1.bf16.msra.mxu0 0
  %4166 = vmatprep.subr.bf16.mxu0 0
  %4167 = vmatpush1.bf16.msra.mxu0 0
  %4168 = vmatprep.subr.bf16.mxu0 0
  %4169 = vmatpush1.bf16.msra.mxu0 0
  %4170 = vmatprep.subr.bf16.mxu0 0
  %4171 = vmatpush1.bf16.msra.mxu0 0
  %4172 = vmatprep.subr.bf16.mxu0 0
  %4173 = vmatpush1.bf16.msra.mxu0 0
  %4174 = vmatprep.subr.bf16.mxu0 0
  %4175 = vmatpush1.bf16.msra.mxu0 0
  %4176 = vmatprep.subr.bf16.mxu0 0
  %4177 = vmatpush1.bf16.msra.mxu0 0
  %4178 = vmatprep.subr.bf16.mxu0 0
  %4179 = vmatpush1.bf16.msra.mxu0 0
  %4180 = vmatprep.subr.bf16.mxu0 0
  %4181 = vmatpush1.bf16.msra.mxu0 0
  %4182 = vmatprep.subr.bf16.mxu0 0
  %4183 = vmatpush1.bf16.msra.mxu0 0
  %4184 = vmatprep.subr.bf16.mxu0 0
  %4185 = vmatpush1.bf16.msra.mxu0 0
  %4186 = vmatprep.subr.bf16.mxu0 0
  %4187 = vmatpush1.bf16.msra.mxu0 0
  %4188 = vmatprep.subr.bf16.mxu0 0
  %4189 = vmatpush1.bf16.msra.mxu0 0
  %4190 = vmatprep.mubr.bf16.mxu0 0
  %4191 = vmatmul.mubr.bf16.gmra.mrb[0].mxu0 %v2996
  %v4192 = vpop.f32.mrb[0].mxu0
  %v4193 = vadd.f32 %v4129, %v4192
  %v4194 = vpop.f32.mrb[0].mxu0
  %v4195 = vpop.f32.mrb[0].mxu0
  %v4196 = vadd.f32 %v4132, %v4195
  %v4197 = vpop.f32.mrb[0].mxu0
  %4198 = vmatprep.mubr.bf16.mxu0 0
  %4199 = vmatmul.mubr.bf16.gmra.mrb[0].mxu0 %v2999
  %v4200 = vpop.f32.mrb[0].mxu0
  %v4201 = vadd.f32 %v4137, %v4200
  %v4202 = vpop.f32.mrb[0].mxu0
  %v4203 = vpop.f32.mrb[0].mxu0
  %v4204 = vadd.f32 %v4140, %v4203
  %v4205 = vpop.f32.mrb[0].mxu0
  %4206 = vmatprep.mubr.bf16.mxu0 0
  %4207 = vmatmul.mubr.bf16.gmra.mrb[0].mxu0 %v3002
  %v4208 = vpop.f32.mrb[0].mxu0
  %v4209 = vadd.f32 %v4145, %v4208
  %v4210 = vpop.f32.mrb[0].mxu0
  %v4211 = vpop.f32.mrb[0].mxu0
  %v4212 = vadd.f32 %v4148, %v4211
  %v4213 = vpop.f32.mrb[0].mxu0
  %4214 = vmatprep.mubr.bf16.mxu0 0
  %4215 = vmatmul.mubr.bf16.gmra.mrb[0].mxu0 %v3005
  %v4216 = vpop.f32.mrb[0].mxu0
  %v4217 = vadd.f32 %v4153, %v4216
  %v4218 = vpop.f32.mrb[0].mxu0
  %v4219 = vpop.f32.mrb[0].mxu0
  %v4220 = vpop.f32.mrb[0].mxu0
  %4221 = vdwg.mxu0
  %4222 = vst [vmem:[%s3] sm:$0xff] %v3610
  %4223 = vst [vmem:[%s3 + $0x8] sm:$0xff] %v3612
  %4224 = vst [vmem:[%s3 + $0x10] sm:$0xff] %v4193
  %4225 = vst [vmem:[%s3 + $0x18] sm:$0xff] %v3614
  %4226 = vst [vmem:[%s3 + $0x20] sm:$0xff] %v3616
  %4227 = vst [vmem:[%s3 + $0x28] sm:$0xff] %v4196
  %4228 = vst [vmem:[%s3 + $0x30] sm:$0xff] %v3620
  %4229 = vst [vmem:[%s3 + $0x38] sm:$0xff] %v3622
  %4230 = vst [vmem:[%s3 + $0x40] sm:$0xff] %v4201
  %4231 = vst [vmem:[%s3 + $0x48] sm:$0xff] %v3624
  %4232 = vst [vmem:[%s3 + $0x50] sm:$0xff] %v3626
  %4233 = vst [vmem:[%s3 + $0x58] sm:$0xff] %v4204
  %4234 = vst [vmem:[%s3 + $0x60] sm:$0xff] %v3630
  %4235 = vst [vmem:[%s3 + $0x68] sm:$0xff] %v3632
  %4236 = vst [vmem:[%s3 + $0x70] sm:$0xff] %v4209
  %4237 = vst [vmem:[%s3 + $0x78] sm:$0xff] %v3634
  %4238 = vst [vmem:[%s3 + $0x80] sm:$0xff] %v3636
  %4239 = vst [vmem:[%s3 + $0x88] sm:$0xff] %v4212
  %4240 = vst [vmem:[%s3 + $0x90] sm:$0xff] %v3640
  %4241 = vst [vmem:[%s3 + $0x98] sm:$0xff] %v3642
  %4242 = vst [vmem:[%s3 + $0xa0] sm:$0xff] %v4217
  %v4243 = vadd.f32 %v3610, %v3614
  %v4244 = vadd.f32 %v4243, %v3620
  %v4245 = vadd.f32 %v4244, %v3624
  %v4246 = vadd.f32 %v4245, %v3630
  %v4247 = vadd.f32 %v4246, %v3634
  %v4248 = vadd.f32 %v4247, %v3640
  %v4249 = vrot.slane %v4248, 4
  %v4250 = vadd.f32 %v4248, %v4249
  %v4251 = vrot.slane %v4250, 2
  %v4252 = vadd.f32 %v4250, %v4251
  %v4253 = vrot.slane %v4252, 1
  %v4254 = vadd.f32 %v4252, %v4253
  %v4255 = vadd.f32 %v3612, %v3616
  %v4256 = vadd.f32 %v4255, %v3622
  %v4257 = vadd.f32 %v4256, %v3626
  %v4258 = vadd.f32 %v4257, %v3632
  %v4259 = vadd.f32 %v4258, %v3636
  %v4260 = vadd.f32 %v4259, %v3642
  %v4261 = vrot.slane %v4260, 4
  %v4262 = vadd.f32 %v4260, %v4261
  %v4263 = vrot.slane %v4262, 2
  %v4264 = vadd.f32 %v4262, %v4263
  %v4265 = vrot.slane %v4264, 1
  %v4266 = vadd.f32 %v4264, %v4265
  %v4267 = vadd.f32 %v4193, %v4196
  %v4268 = vadd.f32 %v4267, %v4201
  %v4269 = vadd.f32 %v4268, %v4204
  %v4270 = vadd.f32 %v4269, %v4209
  %v4271 = vadd.f32 %v4270, %v4212
  %v4272 = vadd.f32 %v4271, %v4217
  %v4273 = vrot.slane %v4272, 4
  %v4274 = vadd.f32 %v4272, %v4273
  %v4275 = vrot.slane %v4274, 2
  %v4276 = vadd.f32 %v4274, %v4275
  %v4277 = vrot.slane %v4276, 1
  %v4278 = vadd.f32 %v4276, %v4277
  %v4279 = vmul.f32 %v3610, %v3610
  %v4280 = vmul.f32 %v3612, %v3612
  %v4281 = vmul.f32 %v4193, %v4193
  %v4282 = vmul.f32 %v3614, %v3614
  %v4283 = vmul.f32 %v3616, %v3616
  %v4284 = vmul.f32 %v4196, %v4196
  %v4285 = vmul.f32 %v3620, %v3620
  %v4286 = vmul.f32 %v3622, %v3622
  %v4287 = vmul.f32 %v4201, %v4201
  %v4288 = vmul.f32 %v3624, %v3624
  %v4289 = vmul.f32 %v3626, %v3626
  %v4290 = vmul.f32 %v4204, %v4204
  %v4291 = vmul.f32 %v3630, %v3630
  %v4292 = vmul.f32 %v3632, %v3632
  %v4293 = vmul.f32 %v4209, %v4209
  %v4294 = vmul.f32 %v3634, %v3634
  %v4295 = vmul.f32 %v3636, %v3636
  %v4296 = vmul.f32 %v4212, %v4212
  %v4297 = vmul.f32 %v3640, %v3640
  %v4298 = vmul.f32 %v3642, %v3642
  %v4299 = vmul.f32 %v4217, %v4217
  %v4300 = vadd.f32 %v4279, %v4282
  %v4301 = vadd.f32 %v4300, %v4285
  %v4302 = vadd.f32 %v4301, %v4288
  %v4303 = vadd.f32 %v4302, %v4291
  %v4304 = vadd.f32 %v4303, %v4294
  %v4305 = vadd.f32 %v4304, %v4297
  %v4306 = vrot.slane %v4305, 4
  %v4307 = vadd.f32 %v4305, %v4306
  %v4308 = vrot.slane %v4307, 2
  %v4309 = vadd.f32 %v4307, %v4308
  %v4310 = vrot.slane %v4309, 1
  %v4311 = vadd.f32 %v4309, %v4310
  %v4312 = vadd.f32 %v4280, %v4283
  %v4313 = vadd.f32 %v4312, %v4286
  %v4314 = vadd.f32 %v4313, %v4289
  %v4315 = vadd.f32 %v4314, %v4292
  %v4316 = vadd.f32 %v4315, %v4295
  %v4317 = vadd.f32 %v4316, %v4298
  %v4318 = vrot.slane %v4317, 4
  %v4319 = vadd.f32 %v4317, %v4318
  %v4320 = vrot.slane %v4319, 2
  %v4321 = vadd.f32 %v4319, %v4320
  %v4322 = vrot.slane %v4321, 1
  %v4323 = vadd.f32 %v4321, %v4322
  %v4324 = vadd.f32 %v4281, %v4284
  %v4325 = vadd.f32 %v4324, %v4287
  %v4326 = vadd.f32 %v4325, %v4290
  %v4327 = vadd.f32 %v4326, %v4293
  %v4328 = vadd.f32 %v4327, %v4296
  %v4329 = vadd.f32 %v4328, %v4299
  %v4330 = vrot.slane %v4329, 4
  %v4331 = vadd.f32 %v4329, %v4330
  %v4332 = vrot.slane %v4331, 2
  %v4333 = vadd.f32 %v4331, %v4332
  %v4334 = vrot.slane %v4333, 1
  %v4335 = vadd.f32 %v4333, %v4334
  %vm4336 = vcmask 1040384
  %v4337 = vsel %vm4336, %v4254, %v4311
  %v4338 = vsel %vm4336, %v4266, %v4323
  %v4339 = vsel %vm4336, %v4278, %v4335
  %v4343 = vcombine.low %v4337, %v4338
  %v4345 = vunpack.c.l.s4 1983009808
  %v4346 = vunpack.c.0.s8 %v4345
  %v4347 = vlaneseq
  %v4348 = vshrl.u32 %v4347, 7
  %v4349 = vsub.s32 %v4346, %v4348
  %v4350 = vrot.slane %v4343, %v4349
  %v4352 = vunpack.c.l.s4 1983009808
  %v4353 = vunpack.c.0.s8 %v4352
  %v4354 = vlaneseq
  %v4355 = vshrl.u32 %v4354, 7
  %v4356 = vsub.s32 %v4353, %v4355
  %v4357 = vrot.slane %v4339, %v4356
  %v4358 = vcombine.low %v4350, %v4357
  %4360 = vst [vmem:[%s4] sm:$0x3f] %v4358
  // Predicated region
  $region14: #{fused_mul_conv1x1_bn.2} parent=0 // pred_check
    _
  $region15: #{fused_mul_conv1x1_bn.2} parent=0 // pred_check_branch
    %4362 = sbr.rel (0) target = $region17
  $region16: #{fused_mul_conv1x1_bn.2} parent=0 // pred_region
    _
  $region17: #{fused_mul_conv1x1_bn.2} parent=0 // pred_fallthru
    _
  // Predicated region
  $region18: #{fused_mul_conv1x1_bn.2} parent=0 // pred_check
    _
  $region19: #{fused_mul_conv1x1_bn.2} parent=0 // pred_check_branch
    %4364 = sbr.rel (0) target = $region21
  $region20: #{fused_mul_conv1x1_bn.2} parent=0 // pred_region
    _
  $region21: #{fused_mul_conv1x1_bn.2} parent=0 // pred_fallthru
    _
  // Predicated region
  $region22: #{fused_mul_conv1x1_bn.2} parent=0 // pred_check
    _
  $region23: #{fused_mul_conv1x1_bn.2} parent=0 // pred_check_branch
    %4366 = sbr.rel (0) target = $region25
  $region24: #{fused_mul_conv1x1_bn.2} parent=0 // pred_region
    _
  $region25: #{fused_mul_conv1x1_bn.2} parent=0 // pred_fallthru
    _
  // Predicated region
  $region26: #{fused_mul_conv1x1_bn.2} parent=0 // pred_check
    _
  $region27: #{fused_mul_conv1x1_bn.2} parent=0 // pred_check_branch
    %4368 = sbr.rel (0) target = $region29
  $region28: #{fused_mul_conv1x1_bn.2} parent=0 // pred_region
    _
  $region29: #{fused_mul_conv1x1_bn.2} parent=0 // pred_fallthru
    _

</llo_original>
